<compile_context>
chip_gen: v6e
topology: v6e:2x2x1
jax: 0.10.0
libtpu: 0.0.40
codegen_flags: <defaults>
</compile_context>

<pallas_src>
import functools
import math

import jax
import jax.numpy as jnp
from jax.experimental import pallas as pl
from jax.experimental.pallas import tpu as pltpu

EPS = 1e-5            # nn.LayerNorm default
BF16 = jnp.bfloat16


def _layernorm(y, g, b):
    mu = jnp.mean(y, axis=-1, keepdims=True)
    var = jnp.mean((y - mu) ** 2, axis=-1, keepdims=True)
    return (y - mu) * jax.lax.rsqrt(var + EPS) * g + b


# ------------------ Kernel A: self-attn + norm2 + MSDA projections ------------------

def _sa_msda_proj_kernel(tgt_ref, pos_ref, val_ref, keep_ref,
                         wqk_ref, bqk_ref, wv_ref, bv_ref, wo_ref, bo_ref,
                         g2_ref, be2_ref, wsa_ref, bsa_ref, wcv_ref, bcv_ref,
                         tgt2_ref, soaw_ref, valp_ref, *, n_heads, head_dim):
    d = n_heads * head_dim
    scale = 1.0 / math.sqrt(head_dim)

    t = tgt_ref[0]                                   # (nq, d) f32
    p = pos_ref[0]
    qk = (t + p).astype(BF16)                        # q = k = tgt + pos

    # fused q/k projection: single (nq, d) x (d, 2d) matmul on the MXU
    qkp = jnp.dot(qk, wqk_ref[...], preferred_element_type=jnp.float32) + bqk_ref[...]
    q = qkp[:, :d].astype(BF16)
    k = qkp[:, d:].astype(BF16)
    v = (jnp.dot(t.astype(BF16), wv_ref[...],
                 preferred_element_type=jnp.float32) + bv_ref[...]).astype(BF16)

    # per-head SDPA; output projection folded into the head loop:
    #   concat_h(o_h) @ Wo == sum_h o_h @ Wo[h*Dh:(h+1)*Dh, :]
    attn = jnp.zeros((t.shape[0], d), jnp.float32)
    for h in range(n_heads):
        lo, hi = h * head_dim, (h + 1) * head_dim
        qh, kh, vh = q[:, lo:hi], k[:, lo:hi], v[:, lo:hi]
        s = jnp.einsum("qd,kd->qk", qh, kh,
                       preferred_element_type=jnp.float32) * scale
        s = s - jnp.max(s, axis=-1, keepdims=True)
        e = jnp.exp(s)
        pw = e * pl.reciprocal(jnp.sum(e, axis=-1, keepdims=True), approx=True)
        oh = jnp.dot(pw.astype(BF16), vh, preferred_element_type=jnp.float32)
        attn = attn + jnp.dot(oh.astype(BF16), wo_ref[lo:hi, :],
                              preferred_element_type=jnp.float32)
    attn = attn + bo_ref[...]

    # tgt = norm2(tgt + self_attn_out)     (dropout2 = identity)
    tgt2 = _layernorm(t + attn, g2_ref[...], be2_ref[...])
    tgt2_ref[0] = tgt2

    # MSDA query-side projections (sampling offsets + attention logits, fused matmul)
    x2 = (tgt2 + p).astype(BF16)
    soaw_ref[0] = (jnp.dot(x2, wsa_ref[...], preferred_element_type=jnp.float32)
                   + bsa_ref[...])

    # MSDA value projection + key-padding-mask zeroing
    vp = (jnp.dot(val_ref[0].astype(BF16), wcv_ref[...],
                  preferred_element_type=jnp.float32) + bcv_ref[...])
    valp_ref[0] = vp * keep_ref[0]


def sa_and_msda_proj(tgt_b, pos_b, value_b, keep_b, params, n_heads):
    bs, nq, d = tgt_b.shape
    nv = value_b.shape[1]
    soaw_dim = params["ca_wsoaw"].shape[1]

    def rep(x):  # whole-array ("replicated") spec for weights / biases
        return pl.BlockSpec(x.shape, lambda b, n=x.ndim: (0,) * n)

    in_specs = [
        pl.BlockSpec((1, nq, d), lambda b: (b, 0, 0)),
        pl.BlockSpec((1, nq, d), lambda b: (b, 0, 0)),
        pl.BlockSpec((1, nv, d), lambda b: (b, 0, 0)),
        pl.BlockSpec((1, nv, 1), lambda b: (b, 0, 0)),
        rep(params["sa_wqk"]), rep(params["sa_bqk"]),
        rep(params["sa_wv"]), rep(params["sa_bv"]),
        rep(params["sa_wo"]), rep(params["sa_bo"]),
        rep(params["norm2_g"]), rep(params["norm2_b"]),
        rep(params["ca_wsoaw"]), rep(params["ca_bsoaw"]),
        rep(params["ca_wv"]), rep(params["ca_bv"]),
    ]
    out_specs = (
        pl.BlockSpec((1, nq, d), lambda b: (b, 0, 0)),
        pl.BlockSpec((1, nq, soaw_dim), lambda b: (b, 0, 0)),
        pl.BlockSpec((1, nv, d), lambda b: (b, 0, 0)),
    )
    out_shape = (
        jax.ShapeDtypeStruct((bs, nq, d), jnp.float32),
        jax.ShapeDtypeStruct((bs, nq, soaw_dim), jnp.float32),
        jax.ShapeDtypeStruct((bs, nv, d), jnp.float32),
    )
    kern = functools.partial(_sa_msda_proj_kernel,
                             n_heads=n_heads, head_dim=d // n_heads)
    return pl.pallas_call(
        kern, grid=(bs,), in_specs=in_specs, out_specs=out_specs, out_shape=out_shape,
        compiler_params=pltpu.CompilerParams(dimension_semantics=("parallel",)),
    )(tgt_b, pos_b, value_b, keep_b,
      params["sa_wqk"], params["sa_bqk"], params["sa_wv"], params["sa_bv"],
      params["sa_wo"], params["sa_bo"], params["norm2_g"], params["norm2_b"],
      params["ca_wsoaw"], params["ca_bsoaw"], params["ca_wv"], params["ca_bv"])


# ------------- Kernel B: MSDA aggregate + out proj + norm1 + FFN + norm3 -------------

def _msda_agg_ffn_kernel(logit_ref, samp_ref, idn_ref,
                         wco_ref, bco_ref, g1_ref, be1_ref,
                         w1_ref, b1_ref, w2_ref, b2_ref, g3_ref, be3_ref,
                         o_ref, *, n_heads, head_dim, n_lp):
    ident = idn_ref[0]                               # (nq, d)
    logits = logit_ref[0]                            # (nq, H*LP) raw logits
    samp = samp_ref[0]                               # (nq, LP, d)  heads folded in channels

    # per-head softmax over (levels*points) + weighted sum; output projection folded in
    x = jnp.zeros_like(ident)
    for h in range(n_heads):
        lh = logits[:, h * n_lp:(h + 1) * n_lp]      # (nq, LP)
        lh = lh - jnp.max(lh, axis=-1, keepdims=True)
        e = jnp.exp(lh)
        w = e * pl.reciprocal(jnp.sum(e, axis=-1, keepdims=True), approx=True)
        sh = samp[:, :, h * head_dim:(h + 1) * head_dim]      # (nq, LP, Dh)
        agg = jnp.sum(sh * w[:, :, None], axis=1)             # (nq, Dh)
        x = x + jnp.dot(agg.astype(BF16),
                        wco_ref[h * head_dim:(h + 1) * head_dim, :],
                        preferred_element_type=jnp.float32)
    x = x + bco_ref[...]

    # tgt = norm1(identity + cross_attn_out)      (MSDA dropout = identity)
    t1 = _layernorm(ident + x, g1_ref[...], be1_ref[...])

    # FFN: norm3(t1 + linear2(relu(linear1(t1))))  (dropout3/4 = identity)
    h1 = jnp.dot(t1.astype(BF16), w1_ref[...],
                 preferred_element_type=jnp.float32) + b1_ref[...]
    h1 = jnp.maximum(h1, 0.0)
    y = jnp.dot(h1.astype(BF16), w2_ref[...],
                preferred_element_type=jnp.float32) + b2_ref[...]
    o_ref[0] = _layernorm(t1 + y, g3_ref[...], be3_ref[...])


def msda_agg_and_ffn(logits, samp, identity, params, n_heads, n_lp):
    bs, nq, d = identity.shape

    def rep(x):
        return pl.BlockSpec(x.shape, lambda b, n=x.ndim: (0,) * n)

    in_specs = [
        pl.BlockSpec((1, nq, n_heads * n_lp), lambda b: (b, 0, 0)),
        pl.BlockSpec((1, nq, n_lp, d), lambda b: (b, 0, 0, 0)),
        pl.BlockSpec((1, nq, d), lambda b: (b, 0, 0)),
        rep(params["ca_wo"]), rep(params["ca_bo"]),
        rep(params["norm1_g"]), rep(params["norm1_b"]),
        rep(params["ff_w1"]), rep(params["ff_b1"]),
        rep(params["ff_w2"]), rep(params["ff_b2"]),
        rep(params["norm3_g"]), rep(params["norm3_b"]),
    ]
    kern = functools.partial(_msda_agg_ffn_kernel, n_heads=n_heads,
                             head_dim=d // n_heads, n_lp=n_lp)
    return pl.pallas_call(
        kern, grid=(bs,), in_specs=in_specs,
        out_specs=pl.BlockSpec((1, nq, d), lambda b: (b, 0, 0)),
        out_shape=jax.ShapeDtypeStruct((bs, nq, d), jnp.float32),
        compiler_params=pltpu.CompilerParams(dimension_semantics=("parallel",)),
    )(logits, samp, identity,
      params["ca_wo"], params["ca_bo"], params["norm1_g"], params["norm1_b"],
      params["ff_w1"], params["ff_b1"], params["ff_w2"], params["ff_b2"],
      params["norm3_g"], params["norm3_b"])


# ----------------------------- JAX glue: flattened bilinear sampling ----------------

def msda_sample(val_proj, soaw, ref_points_bfirst, spatial_shapes_list,
                n_heads, n_levels, n_points):
    # TODO(synk): the bilinear gather is a data-dependent gather; kept as a single
    # flattened take_along_axis in XLA glue (a scalar-prefetch DMA-gather Pallas kernel
    # would be the production path at large num_value).
    bs, nq, _ = soaw.shape
    nv, d = val_proj.shape[1], val_proj.shape[2]
    H, L, P = n_heads, n_levels, n_points
    Dh = d // H
    HLP = H * L * P

    so = soaw[..., : 2 * HLP].reshape(bs, nq, H, L, P, 2)
    aw_logits = soaw[..., 2 * HLP:]                         # (bs, nq, H*L*P)

    hw = jnp.asarray(spatial_shapes_list, jnp.float32)      # (L, 2) as (H_l, W_l)
    Hl_f, Wl_f = hw[:, 0], hw[:, 1]
    starts, acc = [], 0
    for (h_, w_) in spatial_shapes_list:
        starts.append(acc)
        acc += h_ * w_
    level_start = jnp.asarray(starts, jnp.int32)
    Wl_i = jnp.asarray([w_ for (_, w_) in spatial_shapes_list], jnp.int32)

    ref = ref_points_bfirst                                 # (bs, nq, L, 2|4)
    if ref.shape[-1] == 2:
        norm = jnp.stack([Wl_f, Hl_f], axis=-1)             # (W, H)
        loc = ref[:, :, None, :, None, :] + so / norm[None, None, None, :, None, :]
    else:
        loc = (ref[:, :, None, :, None, :2]
               + so / float(P) * ref[:, :, None, :, None, 2:] * 0.5)
    # (bs, nq, H, L, P, 2); put heads last so one gather covers all levels/points
    loc = jnp.transpose(loc, (0, 1, 3, 4, 2, 5))            # (bs, nq, L, P, H, 2)

    Wb = Wl_f[None, None, :, None, None]
    Hb = Hl_f[None, None, :, None, None]
    Sb = level_start[None, None, :, None, None]
    Wib = Wl_i[None, None, :, None, None]

    # grid_sample(align_corners=False, padding_mode='zeros') pixel coordinates
    x = loc[..., 0] * Wb - 0.5                              # (bs, nq, L, P, H)
    y = loc[..., 1] * Hb - 0.5
    x0 = jnp.floor(x)
    y0 = jnp.floor(y)
    x1 = x0 + 1.0
    y1 = y0 + 1.0
    wx1 = x - x0
    wx0 = 1.0 - wx1
    wy1 = y - y0
    wy0 = 1.0 - wy1

    val_h = val_proj.reshape(bs, nv, H, Dh)
    N = nq * L * P

    def corner(xi, yi, w):
        valid = (xi >= 0.0) & (xi < Wb) & (yi >= 0.0) & (yi < Hb)
        xc = jnp.clip(xi, 0.0, Wb - 1.0).astype(jnp.int32)
        yc = jnp.clip(yi, 0.0, Hb - 1.0).astype(jnp.int32)
        idx = (Sb + yc * Wib + xc).reshape(bs, N, H)[..., None]   # (bs, N, H, 1)
        g = jnp.take_along_axis(val_h, idx, axis=1)               # (bs, N, H, Dh)
        we = (w * valid.astype(jnp.float32)).reshape(bs, N, H)
        return g * we[..., None]

    samp = (corner(x0, y0, wx0 * wy0) + corner(x1, y0, wx1 * wy0)
            + corner(x0, y1, wx0 * wy1) + corner(x1, y1, wx1 * wy1))
    samp = samp.reshape(bs, nq, L * P, d)    # heads folded back into channels (head-major)
    return samp, aw_logits


# ----------------------------- full layer forward -----------------------------------

def decoder_layer_forward(tgt, tgt_query_pos, tgt_reference_points, memory,
                          memory_key_padding_mask, params, *,
                          spatial_shapes_list, n_heads, n_levels, n_points):
    nq, bs, d = tgt.shape
    nv = memory.shape[0]

    # single layout switch to batch-first; everything downstream stays batch-first
    tgt_b = jnp.transpose(tgt, (1, 0, 2))
    pos_b = (jnp.zeros_like(tgt_b) if tgt_query_pos is None
             else jnp.transpose(tgt_query_pos, (1, 0, 2)))
    mem_b = jnp.transpose(memory, (1, 0, 2))
    ref_b = jnp.transpose(tgt_reference_points, (1, 0, 2, 3))   # .transpose(0, 1)
    if memory_key_padding_mask is None:
        keep_b = jnp.ones((bs, nv, 1), jnp.float32)
    else:
        keep_b = 1.0 - memory_key_padding_mask.astype(jnp.float32)[..., None]

    # TODO(synk): self_attn_mask / cross_attn_mask are not supported (None in this test).
    # Kernel A: self-attention + norm2, MSDA offset/weight projection, value projection.
    tgt2_b, soaw, val_proj = sa_and_msda_proj(tgt_b, pos_b, mem_b, keep_b,
                                              params, n_heads)

    # key_aware_type is None -> skipped.

    # XLA glue: flattened multi-level bilinear sampling (data-dependent gather).
    samp, aw_logits = msda_sample(val_proj, soaw, ref_b, spatial_shapes_list,
                                  n_heads, n_levels, n_points)

    # Kernel B: MSDA aggregation + output projection + norm1 + FFN + norm3.
    out_b = msda_agg_and_ffn(aw_logits, samp, tgt2_b, params, n_heads,
                             n_levels * n_points)
    return jnp.transpose(out_b, (1, 0, 2))     # back to (nq, bs, d)


# ----------------------------- parameter init ---------------------------------------

def init_params(key, d_model, d_ffn, n_heads, n_levels, n_points):
    keys = jax.random.split(key, 24)
    it = iter(keys)

    def w(shape, s=0.02, dtype=jnp.float32):
        return (jax.random.normal(next(it), shape, jnp.float32) * s).astype(dtype)

    H, L, P = n_heads, n_levels, n_points
    HLP = H * L * P
    return {
        # self attention (nn.MultiheadAttention); q/k projections fused into one matmul
        "sa_wqk": w((d_model, 2 * d_model), dtype=BF16),
        "sa_bqk": w((1, 2 * d_model)),
        "sa_wv": w((d_model, d_model), dtype=BF16), "sa_bv": w((1, d_model)),
        "sa_wo": w((d_model, d_model), dtype=BF16), "sa_bo": w((1, d_model)),
        "norm2_g": jnp.ones((1, d_model), jnp.float32),
        "norm2_b": jnp.zeros((1, d_model), jnp.float32),
        # MSDA cross attention; sampling-offset + attention-weight projections fused
        "ca_wv": w((d_model, d_model), dtype=BF16), "ca_bv": w((1, d_model)),
        "ca_wsoaw": w((d_model, 3 * HLP), dtype=BF16),
        "ca_bsoaw": jnp.concatenate([w((1, 2 * HLP), 0.5), w((1, HLP))], axis=-1),
        "ca_wo": w((d_model, d_model), dtype=BF16), "ca_bo": w((1, d_model)),
        "norm1_g": jnp.ones((1, d_model), jnp.float32),
        "norm1_b": jnp.zeros((1, d_model), jnp.float32),
        # FFN
        "ff_w1": w((d_model, d_ffn), dtype=BF16), "ff_b1": w((1, d_ffn)),
        "ff_w2": w((d_ffn, d_model), dtype=BF16), "ff_b2": w((1, d_model)),
        "norm3_g": jnp.ones((1, d_model), jnp.float32),
        "norm3_b": jnp.zeros((1, d_model), jnp.float32),
    }


# ----------------------------- main --------------------------------------------------

if __name__ == "__main__":
    d_model, d_ffn = 32, 64
    n_heads, n_levels, n_points = 4, 2, 2
    nq, bs = 8, 2
    spatial_shapes_list = ((8, 8), (4, 4))            # (H, W) per level
    nv = sum(h * w for h, w in spatial_shapes_list)   # 80

    key = jax.random.PRNGKey(0)
    kt, kp, km, kr, kparam = jax.random.split(key, 5)

    tgt = jax.random.normal(kt, (nq, bs, d_model), jnp.float32)
    tgt_query_pos = jax.random.normal(kp, (nq, bs, d_model), jnp.float32)
    memory = jax.random.normal(km, (nv, bs, d_model), jnp.float32)
    # reference boxes (cx, cy, w, h) per level, normalized: (nq, bs, n_levels, 4)
    tgt_reference_points = jax.random.uniform(
        kr, (nq, bs, n_levels, 4), jnp.float32, 0.2, 0.8)
    memory_key_padding_mask = jnp.zeros((bs, nv), jnp.bool_).at[:, -4:].set(True)

    params = init_params(kparam, d_model, d_ffn, n_heads, n_levels, n_points)

    fwd = jax.jit(functools.partial(
        decoder_layer_forward,
        spatial_shapes_list=spatial_shapes_list,
        n_heads=n_heads, n_levels=n_levels, n_points=n_points))

    out = fwd(tgt, tgt_query_pos, tgt_reference_points, memory,
              memory_key_padding_mask, params)
    out = jax.block_until_ready(out)

    assert out.shape == (nq, bs, d_model), out.shape
    assert bool(jnp.all(jnp.isfinite(out)))
    print("KERNEL_OK")
</pallas_src>

<mosaic_0001>
module attributes {stable_mosaic.version = 11 : i64} {
  func.func @_sa_msda_proj_kernel(%arg0: i32, %arg1: memref<1x8x32xf32, #tpu.memory_space<vmem>>, %arg2: memref<1x8x32xf32, #tpu.memory_space<vmem>>, %arg3: memref<1x80x32xf32, #tpu.memory_space<vmem>>, %arg4: memref<1x80x1xf32, #tpu.memory_space<vmem>>, %arg5: memref<32x64xbf16, #tpu.memory_space<vmem>>, %arg6: memref<1x64xf32, #tpu.memory_space<vmem>>, %arg7: memref<32x32xbf16, #tpu.memory_space<vmem>>, %arg8: memref<1x32xf32, #tpu.memory_space<vmem>>, %arg9: memref<32x32xbf16, #tpu.memory_space<vmem>>, %arg10: memref<1x32xf32, #tpu.memory_space<vmem>>, %arg11: memref<1x32xf32, #tpu.memory_space<vmem>>, %arg12: memref<1x32xf32, #tpu.memory_space<vmem>>, %arg13: memref<32x48xbf16, #tpu.memory_space<vmem>>, %arg14: memref<1x48xf32, #tpu.memory_space<vmem>>, %arg15: memref<32x32xbf16, #tpu.memory_space<vmem>>, %arg16: memref<1x32xf32, #tpu.memory_space<vmem>>, %arg17: memref<1x8x32xf32, #tpu.memory_space<vmem>>, %arg18: memref<1x8x48xf32, #tpu.memory_space<vmem>>, %arg19: memref<1x80x32xf32, #tpu.memory_space<vmem>>) attributes {dimension_semantics = [#tpu.dimension_semantics<parallel>], iteration_bounds = array<i64: 2>, scalar_prefetch = 0 : i64, scratch_operands = 0 : i64, tpu.core_type = #tpu.core_type<tc>, window_params = [{transform_indices = @transform_0, window_bounds = array<i64: 1, 8, 32>}, {transform_indices = @transform_1, window_bounds = array<i64: 1, 8, 32>}, {transform_indices = @transform_2, window_bounds = array<i64: 1, 80, 32>}, {transform_indices = @transform_3, window_bounds = array<i64: 1, 80, 1>}, {pipeline_mode = #tpu.pipeline_mode<synchronous>, transform_indices = @transform_4, window_bounds = array<i64: 32, 64>}, {pipeline_mode = #tpu.pipeline_mode<synchronous>, transform_indices = @transform_5, window_bounds = array<i64: 1, 64>}, {pipeline_mode = #tpu.pipeline_mode<synchronous>, transform_indices = @transform_6, window_bounds = array<i64: 32, 32>}, {pipeline_mode = #tpu.pipeline_mode<synchronous>, transform_indices = @transform_7, window_bounds = array<i64: 1, 32>}, {pipeline_mode = #tpu.pipeline_mode<synchronous>, transform_indices = @transform_8, window_bounds = array<i64: 32, 32>}, {pipeline_mode = #tpu.pipeline_mode<synchronous>, transform_indices = @transform_9, window_bounds = array<i64: 1, 32>}, {pipeline_mode = #tpu.pipeline_mode<synchronous>, transform_indices = @transform_10, window_bounds = array<i64: 1, 32>}, {pipeline_mode = #tpu.pipeline_mode<synchronous>, transform_indices = @transform_11, window_bounds = array<i64: 1, 32>}, {pipeline_mode = #tpu.pipeline_mode<synchronous>, transform_indices = @transform_12, window_bounds = array<i64: 32, 48>}, {pipeline_mode = #tpu.pipeline_mode<synchronous>, transform_indices = @transform_13, window_bounds = array<i64: 1, 48>}, {pipeline_mode = #tpu.pipeline_mode<synchronous>, transform_indices = @transform_14, window_bounds = array<i64: 32, 32>}, {pipeline_mode = #tpu.pipeline_mode<synchronous>, transform_indices = @transform_15, window_bounds = array<i64: 1, 32>}, {transform_indices = @transform_16, window_bounds = array<i64: 1, 8, 32>}, {transform_indices = @transform_17, window_bounds = array<i64: 1, 8, 48>}, {transform_indices = @transform_18, window_bounds = array<i64: 1, 80, 32>}]} {
    %c0 = arith.constant 0 : index
    %c0_0 = arith.constant 0 : index
    %c0_1 = arith.constant 0 : index
    %0 = vector.load %arg1[%c0, %c0_0, %c0_1] : memref<1x8x32xf32, #tpu.memory_space<vmem>>, vector<1x8x32xf32>
    %1 = vector.shape_cast %0 : vector<1x8x32xf32> to vector<8x32xf32>
    %c0_2 = arith.constant 0 : index
    %c0_3 = arith.constant 0 : index
    %c0_4 = arith.constant 0 : index
    %2 = vector.load %arg2[%c0_2, %c0_3, %c0_4] : memref<1x8x32xf32, #tpu.memory_space<vmem>>, vector<1x8x32xf32>
    %3 = vector.shape_cast %2 : vector<1x8x32xf32> to vector<8x32xf32>
    %4 = arith.addf %1, %3 : vector<8x32xf32>
    %5 = arith.truncf %4 : vector<8x32xf32> to vector<8x32xbf16>
    %c0_5 = arith.constant 0 : index
    %c0_6 = arith.constant 0 : index
    %6 = vector.load %arg5[%c0_5, %c0_6] : memref<32x64xbf16, #tpu.memory_space<vmem>>, vector<32x64xbf16>
    %cst = arith.constant dense<0.000000e+00> : vector<8x64xf32>
    %7 = tpu.matmul %5, %6, %cst {dimension_numbers = #tpu.dot_dimension_numbers<[1], [0], [0], [1], [0, 0, 1, 1], [], []>} : vector<8x32xbf16>, vector<32x64xbf16>, vector<8x64xf32> -> vector<8x64xf32>
    %c0_7 = arith.constant 0 : index
    %c0_8 = arith.constant 0 : index
    %8 = vector.load %arg6[%c0_7, %c0_8] : memref<1x64xf32, #tpu.memory_space<vmem>>, vector<1x64xf32>
    %9 = vector.broadcast %8 : vector<1x64xf32> to vector<8x64xf32>
    %10 = arith.addf %7, %9 : vector<8x64xf32>
    %11 = vector.extract_strided_slice %10 {offsets = [0, 0], sizes = [8, 32], strides = [1, 1]} : vector<8x64xf32> to vector<8x32xf32>
    %12 = arith.truncf %11 : vector<8x32xf32> to vector<8x32xbf16>
    %13 = vector.extract_strided_slice %10 {offsets = [0, 32], sizes = [8, 32], strides = [1, 1]} : vector<8x64xf32> to vector<8x32xf32>
    %14 = arith.truncf %13 : vector<8x32xf32> to vector<8x32xbf16>
    %15 = arith.truncf %1 : vector<8x32xf32> to vector<8x32xbf16>
    %c0_9 = arith.constant 0 : index
    %c0_10 = arith.constant 0 : index
    %16 = vector.load %arg7[%c0_9, %c0_10] : memref<32x32xbf16, #tpu.memory_space<vmem>>, vector<32x32xbf16>
    %cst_11 = arith.constant dense<0.000000e+00> : vector<8x32xf32>
    %17 = tpu.matmul %15, %16, %cst_11 {dimension_numbers = #tpu.dot_dimension_numbers<[1], [0], [0], [1], [0, 0, 1, 1], [], []>} : vector<8x32xbf16>, vector<32x32xbf16>, vector<8x32xf32> -> vector<8x32xf32>
    %c0_12 = arith.constant 0 : index
    %c0_13 = arith.constant 0 : index
    %18 = vector.load %arg8[%c0_12, %c0_13] : memref<1x32xf32, #tpu.memory_space<vmem>>, vector<1x32xf32>
    %19 = vector.broadcast %18 : vector<1x32xf32> to vector<8x32xf32>
    %20 = arith.addf %17, %19 : vector<8x32xf32>
    %21 = arith.truncf %20 : vector<8x32xf32> to vector<8x32xbf16>
    %cst_14 = arith.constant 0.000000e+00 : f32
    %22 = vector.broadcast %cst_14 : f32 to vector<8x32xf32>
    %23 = vector.extract_strided_slice %12 {offsets = [0, 0], sizes = [8, 8], strides = [1, 1]} : vector<8x32xbf16> to vector<8x8xbf16>
    %24 = vector.extract_strided_slice %14 {offsets = [0, 0], sizes = [8, 8], strides = [1, 1]} : vector<8x32xbf16> to vector<8x8xbf16>
    %25 = vector.extract_strided_slice %21 {offsets = [0, 0], sizes = [8, 8], strides = [1, 1]} : vector<8x32xbf16> to vector<8x8xbf16>
    "tpu.trace_start"() <{level = 10 : i32, message = "qd,kd->qk"}> : () -> ()
    %cst_15 = arith.constant dense<0.000000e+00> : vector<8x8xf32>
    %26 = tpu.matmul %23, %24, %cst_15 {dimension_numbers = #tpu.dot_dimension_numbers<[1], [1], [0], [0], [0, 0, 1, 0], [], []>} : vector<8x8xbf16>, vector<8x8xbf16>, vector<8x8xf32> -> vector<8x8xf32>
    "tpu.trace_stop"() : () -> ()
    %cst_16 = arith.constant 0.353553385 : f32
    %27 = vector.broadcast %cst_16 : f32 to vector<8x8xf32>
    %28 = arith.mulf %26, %27 : vector<8x8xf32>
    %cst_17 = arith.constant dense<0xFF800000> : vector<8xf32>
    %29 = vector.multi_reduction <maximumf>, %28, %cst_17 [1] : vector<8x8xf32> to vector<8xf32>
    %30 = vector.shape_cast %29 : vector<8xf32> to vector<8x1xf32>
    %31 = vector.broadcast %30 : vector<8x1xf32> to vector<8x8xf32>
    %32 = arith.subf %28, %31 : vector<8x8xf32>
    %33 = math.exp %32 : vector<8x8xf32>
    %cst_18 = arith.constant dense<0.000000e+00> : vector<8xf32>
    %34 = vector.multi_reduction <add>, %33, %cst_18 [1] : vector<8x8xf32> to vector<8xf32>
    %35 = vector.shape_cast %34 : vector<8xf32> to vector<8x1xf32>
    %36 = tpu.reciprocal %35 {approx = true} : vector<8x1xf32> -> vector<8x1xf32>
    %37 = vector.broadcast %36 : vector<8x1xf32> to vector<8x8xf32>
    %38 = arith.mulf %33, %37 : vector<8x8xf32>
    %39 = arith.truncf %38 : vector<8x8xf32> to vector<8x8xbf16>
    %cst_19 = arith.constant dense<0.000000e+00> : vector<8x8xf32>
    %40 = tpu.matmul %39, %25, %cst_19 {dimension_numbers = #tpu.dot_dimension_numbers<[1], [0], [0], [1], [0, 0, 1, 1], [], []>} : vector<8x8xbf16>, vector<8x8xbf16>, vector<8x8xf32> -> vector<8x8xf32>
    %41 = arith.truncf %40 : vector<8x8xf32> to vector<8x8xbf16>
    %c0_20 = arith.constant 0 : index
    %c0_21 = arith.constant 0 : index
    %42 = vector.load %arg9[%c0_20, %c0_21] : memref<32x32xbf16, #tpu.memory_space<vmem>>, vector<8x32xbf16>
    %cst_22 = arith.constant dense<0.000000e+00> : vector<8x32xf32>
    %43 = tpu.matmul %41, %42, %cst_22 {dimension_numbers = #tpu.dot_dimension_numbers<[1], [0], [0], [1], [0, 0, 1, 1], [], []>} : vector<8x8xbf16>, vector<8x32xbf16>, vector<8x32xf32> -> vector<8x32xf32>
    %44 = arith.addf %22, %43 : vector<8x32xf32>
    %45 = vector.extract_strided_slice %12 {offsets = [0, 8], sizes = [8, 8], strides = [1, 1]} : vector<8x32xbf16> to vector<8x8xbf16>
    %46 = vector.extract_strided_slice %14 {offsets = [0, 8], sizes = [8, 8], strides = [1, 1]} : vector<8x32xbf16> to vector<8x8xbf16>
    %47 = vector.extract_strided_slice %21 {offsets = [0, 8], sizes = [8, 8], strides = [1, 1]} : vector<8x32xbf16> to vector<8x8xbf16>
    "tpu.trace_start"() <{level = 10 : i32, message = "qd,kd->qk"}> : () -> ()
    %cst_23 = arith.constant dense<0.000000e+00> : vector<8x8xf32>
    %48 = tpu.matmul %45, %46, %cst_23 {dimension_numbers = #tpu.dot_dimension_numbers<[1], [1], [0], [0], [0, 0, 1, 0], [], []>} : vector<8x8xbf16>, vector<8x8xbf16>, vector<8x8xf32> -> vector<8x8xf32>
    "tpu.trace_stop"() : () -> ()
    %cst_24 = arith.constant 0.353553385 : f32
    %49 = vector.broadcast %cst_24 : f32 to vector<8x8xf32>
    %50 = arith.mulf %48, %49 : vector<8x8xf32>
    %cst_25 = arith.constant dense<0xFF800000> : vector<8xf32>
    %51 = vector.multi_reduction <maximumf>, %50, %cst_25 [1] : vector<8x8xf32> to vector<8xf32>
    %52 = vector.shape_cast %51 : vector<8xf32> to vector<8x1xf32>
    %53 = vector.broadcast %52 : vector<8x1xf32> to vector<8x8xf32>
    %54 = arith.subf %50, %53 : vector<8x8xf32>
    %55 = math.exp %54 : vector<8x8xf32>
    %cst_26 = arith.constant dense<0.000000e+00> : vector<8xf32>
    %56 = vector.multi_reduction <add>, %55, %cst_26 [1] : vector<8x8xf32> to vector<8xf32>
    %57 = vector.shape_cast %56 : vector<8xf32> to vector<8x1xf32>
    %58 = tpu.reciprocal %57 {approx = true} : vector<8x1xf32> -> vector<8x1xf32>
    %59 = vector.broadcast %58 : vector<8x1xf32> to vector<8x8xf32>
    %60 = arith.mulf %55, %59 : vector<8x8xf32>
    %61 = arith.truncf %60 : vector<8x8xf32> to vector<8x8xbf16>
    %cst_27 = arith.constant dense<0.000000e+00> : vector<8x8xf32>
    %62 = tpu.matmul %61, %47, %cst_27 {dimension_numbers = #tpu.dot_dimension_numbers<[1], [0], [0], [1], [0, 0, 1, 1], [], []>} : vector<8x8xbf16>, vector<8x8xbf16>, vector<8x8xf32> -> vector<8x8xf32>
    %63 = arith.truncf %62 : vector<8x8xf32> to vector<8x8xbf16>
    %c8 = arith.constant 8 : index
    %c0_28 = arith.constant 0 : index
    %64 = vector.load %arg9[%c8, %c0_28] : memref<32x32xbf16, #tpu.memory_space<vmem>>, vector<8x32xbf16>
    %cst_29 = arith.constant dense<0.000000e+00> : vector<8x32xf32>
    %65 = tpu.matmul %63, %64, %cst_29 {dimension_numbers = #tpu.dot_dimension_numbers<[1], [0], [0], [1], [0, 0, 1, 1], [], []>} : vector<8x8xbf16>, vector<8x32xbf16>, vector<8x32xf32> -> vector<8x32xf32>
    %66 = arith.addf %44, %65 : vector<8x32xf32>
    %67 = vector.extract_strided_slice %12 {offsets = [0, 16], sizes = [8, 8], strides = [1, 1]} : vector<8x32xbf16> to vector<8x8xbf16>
    %68 = vector.extract_strided_slice %14 {offsets = [0, 16], sizes = [8, 8], strides = [1, 1]} : vector<8x32xbf16> to vector<8x8xbf16>
    %69 = vector.extract_strided_slice %21 {offsets = [0, 16], sizes = [8, 8], strides = [1, 1]} : vector<8x32xbf16> to vector<8x8xbf16>
    "tpu.trace_start"() <{level = 10 : i32, message = "qd,kd->qk"}> : () -> ()
    %cst_30 = arith.constant dense<0.000000e+00> : vector<8x8xf32>
    %70 = tpu.matmul %67, %68, %cst_30 {dimension_numbers = #tpu.dot_dimension_numbers<[1], [1], [0], [0], [0, 0, 1, 0], [], []>} : vector<8x8xbf16>, vector<8x8xbf16>, vector<8x8xf32> -> vector<8x8xf32>
    "tpu.trace_stop"() : () -> ()
    %cst_31 = arith.constant 0.353553385 : f32
    %71 = vector.broadcast %cst_31 : f32 to vector<8x8xf32>
    %72 = arith.mulf %70, %71 : vector<8x8xf32>
    %cst_32 = arith.constant dense<0xFF800000> : vector<8xf32>
    %73 = vector.multi_reduction <maximumf>, %72, %cst_32 [1] : vector<8x8xf32> to vector<8xf32>
    %74 = vector.shape_cast %73 : vector<8xf32> to vector<8x1xf32>
    %75 = vector.broadcast %74 : vector<8x1xf32> to vector<8x8xf32>
    %76 = arith.subf %72, %75 : vector<8x8xf32>
    %77 = math.exp %76 : vector<8x8xf32>
    %cst_33 = arith.constant dense<0.000000e+00> : vector<8xf32>
    %78 = vector.multi_reduction <add>, %77, %cst_33 [1] : vector<8x8xf32> to vector<8xf32>
    %79 = vector.shape_cast %78 : vector<8xf32> to vector<8x1xf32>
    %80 = tpu.reciprocal %79 {approx = true} : vector<8x1xf32> -> vector<8x1xf32>
    %81 = vector.broadcast %80 : vector<8x1xf32> to vector<8x8xf32>
    %82 = arith.mulf %77, %81 : vector<8x8xf32>
    %83 = arith.truncf %82 : vector<8x8xf32> to vector<8x8xbf16>
    %cst_34 = arith.constant dense<0.000000e+00> : vector<8x8xf32>
    %84 = tpu.matmul %83, %69, %cst_34 {dimension_numbers = #tpu.dot_dimension_numbers<[1], [0], [0], [1], [0, 0, 1, 1], [], []>} : vector<8x8xbf16>, vector<8x8xbf16>, vector<8x8xf32> -> vector<8x8xf32>
    %85 = arith.truncf %84 : vector<8x8xf32> to vector<8x8xbf16>
    %c16 = arith.constant 16 : index
    %c0_35 = arith.constant 0 : index
    %86 = vector.load %arg9[%c16, %c0_35] : memref<32x32xbf16, #tpu.memory_space<vmem>>, vector<8x32xbf16>
    %cst_36 = arith.constant dense<0.000000e+00> : vector<8x32xf32>
    %87 = tpu.matmul %85, %86, %cst_36 {dimension_numbers = #tpu.dot_dimension_numbers<[1], [0], [0], [1], [0, 0, 1, 1], [], []>} : vector<8x8xbf16>, vector<8x32xbf16>, vector<8x32xf32> -> vector<8x32xf32>
    %88 = arith.addf %66, %87 : vector<8x32xf32>
    %89 = vector.extract_strided_slice %12 {offsets = [0, 24], sizes = [8, 8], strides = [1, 1]} : vector<8x32xbf16> to vector<8x8xbf16>
    %90 = vector.extract_strided_slice %14 {offsets = [0, 24], sizes = [8, 8], strides = [1, 1]} : vector<8x32xbf16> to vector<8x8xbf16>
    %91 = vector.extract_strided_slice %21 {offsets = [0, 24], sizes = [8, 8], strides = [1, 1]} : vector<8x32xbf16> to vector<8x8xbf16>
    "tpu.trace_start"() <{level = 10 : i32, message = "qd,kd->qk"}> : () -> ()
    %cst_37 = arith.constant dense<0.000000e+00> : vector<8x8xf32>
    %92 = tpu.matmul %89, %90, %cst_37 {dimension_numbers = #tpu.dot_dimension_numbers<[1], [1], [0], [0], [0, 0, 1, 0], [], []>} : vector<8x8xbf16>, vector<8x8xbf16>, vector<8x8xf32> -> vector<8x8xf32>
    "tpu.trace_stop"() : () -> ()
    %cst_38 = arith.constant 0.353553385 : f32
    %93 = vector.broadcast %cst_38 : f32 to vector<8x8xf32>
    %94 = arith.mulf %92, %93 : vector<8x8xf32>
    %cst_39 = arith.constant dense<0xFF800000> : vector<8xf32>
    %95 = vector.multi_reduction <maximumf>, %94, %cst_39 [1] : vector<8x8xf32> to vector<8xf32>
    %96 = vector.shape_cast %95 : vector<8xf32> to vector<8x1xf32>
    %97 = vector.broadcast %96 : vector<8x1xf32> to vector<8x8xf32>
    %98 = arith.subf %94, %97 : vector<8x8xf32>
    %99 = math.exp %98 : vector<8x8xf32>
    %cst_40 = arith.constant dense<0.000000e+00> : vector<8xf32>
    %100 = vector.multi_reduction <add>, %99, %cst_40 [1] : vector<8x8xf32> to vector<8xf32>
    %101 = vector.shape_cast %100 : vector<8xf32> to vector<8x1xf32>
    %102 = tpu.reciprocal %101 {approx = true} : vector<8x1xf32> -> vector<8x1xf32>
    %103 = vector.broadcast %102 : vector<8x1xf32> to vector<8x8xf32>
    %104 = arith.mulf %99, %103 : vector<8x8xf32>
    %105 = arith.truncf %104 : vector<8x8xf32> to vector<8x8xbf16>
    %cst_41 = arith.constant dense<0.000000e+00> : vector<8x8xf32>
    %106 = tpu.matmul %105, %91, %cst_41 {dimension_numbers = #tpu.dot_dimension_numbers<[1], [0], [0], [1], [0, 0, 1, 1], [], []>} : vector<8x8xbf16>, vector<8x8xbf16>, vector<8x8xf32> -> vector<8x8xf32>
    %107 = arith.truncf %106 : vector<8x8xf32> to vector<8x8xbf16>
    %c24 = arith.constant 24 : index
    %c0_42 = arith.constant 0 : index
    %108 = vector.load %arg9[%c24, %c0_42] : memref<32x32xbf16, #tpu.memory_space<vmem>>, vector<8x32xbf16>
    %cst_43 = arith.constant dense<0.000000e+00> : vector<8x32xf32>
    %109 = tpu.matmul %107, %108, %cst_43 {dimension_numbers = #tpu.dot_dimension_numbers<[1], [0], [0], [1], [0, 0, 1, 1], [], []>} : vector<8x8xbf16>, vector<8x32xbf16>, vector<8x32xf32> -> vector<8x32xf32>
    %110 = arith.addf %88, %109 : vector<8x32xf32>
    %c0_44 = arith.constant 0 : index
    %c0_45 = arith.constant 0 : index
    %111 = vector.load %arg10[%c0_44, %c0_45] : memref<1x32xf32, #tpu.memory_space<vmem>>, vector<1x32xf32>
    %112 = vector.broadcast %111 : vector<1x32xf32> to vector<8x32xf32>
    %113 = arith.addf %110, %112 : vector<8x32xf32>
    %114 = arith.addf %1, %113 : vector<8x32xf32>
    %c0_46 = arith.constant 0 : index
    %c0_47 = arith.constant 0 : index
    %115 = vector.load %arg11[%c0_46, %c0_47] : memref<1x32xf32, #tpu.memory_space<vmem>>, vector<1x32xf32>
    %c0_48 = arith.constant 0 : index
    %c0_49 = arith.constant 0 : index
    %116 = vector.load %arg12[%c0_48, %c0_49] : memref<1x32xf32, #tpu.memory_space<vmem>>, vector<1x32xf32>
    %cst_50 = arith.constant dense<0.000000e+00> : vector<8xf32>
    %117 = vector.multi_reduction <add>, %114, %cst_50 [1] : vector<8x32xf32> to vector<8xf32>
    %118 = vector.shape_cast %117 : vector<8xf32> to vector<8x1xf32>
    %cst_51 = arith.constant 3.200000e+01 : f32
    %119 = vector.broadcast %cst_51 : f32 to vector<8x1xf32>
    %120 = arith.divf %118, %119 : vector<8x1xf32>
    %121 = vector.broadcast %120 : vector<8x1xf32> to vector<8x32xf32>
    %122 = arith.subf %114, %121 : vector<8x32xf32>
    %123 = arith.mulf %122, %122 : vector<8x32xf32>
    %cst_52 = arith.constant dense<0.000000e+00> : vector<8xf32>
    %124 = vector.multi_reduction <add>, %123, %cst_52 [1] : vector<8x32xf32> to vector<8xf32>
    %125 = vector.shape_cast %124 : vector<8xf32> to vector<8x1xf32>
    %cst_53 = arith.constant 3.200000e+01 : f32
    %126 = vector.broadcast %cst_53 : f32 to vector<8x1xf32>
    %127 = arith.divf %125, %126 : vector<8x1xf32>
    %128 = vector.broadcast %120 : vector<8x1xf32> to vector<8x32xf32>
    %129 = arith.subf %114, %128 : vector<8x32xf32>
    %cst_54 = arith.constant 9.99999974E-6 : f32
    %130 = vector.broadcast %cst_54 : f32 to vector<8x1xf32>
    %131 = arith.addf %127, %130 : vector<8x1xf32>
    %132 = math.rsqrt %131 : vector<8x1xf32>
    %133 = vector.broadcast %132 : vector<8x1xf32> to vector<8x32xf32>
    %134 = arith.mulf %129, %133 : vector<8x32xf32>
    %135 = vector.broadcast %115 : vector<1x32xf32> to vector<8x32xf32>
    %136 = arith.mulf %134, %135 : vector<8x32xf32>
    %137 = vector.broadcast %116 : vector<1x32xf32> to vector<8x32xf32>
    %138 = arith.addf %136, %137 : vector<8x32xf32>
    %c0_55 = arith.constant 0 : index
    %c0_56 = arith.constant 0 : index
    %c0_57 = arith.constant 0 : index
    %139 = vector.load %arg17[%c0_55, %c0_56, %c0_57] : memref<1x8x32xf32, #tpu.memory_space<vmem>>, vector<1x8x32xf32>
    %140 = vector.shape_cast %139 : vector<1x8x32xf32> to vector<8x32xf32>
    %141 = vector.shape_cast %138 : vector<8x32xf32> to vector<1x8x32xf32>
    tpu.vector_store %arg17[%c0_55, %c0_56, %c0_57], %141 {strides = array<i32>} : memref<1x8x32xf32, #tpu.memory_space<vmem>>, vector<1x8x32xf32>,
    %142 = arith.addf %138, %3 : vector<8x32xf32>
    %143 = arith.truncf %142 : vector<8x32xf32> to vector<8x32xbf16>
    %c0_58 = arith.constant 0 : index
    %c0_59 = arith.constant 0 : index
    %144 = vector.load %arg13[%c0_58, %c0_59] : memref<32x48xbf16, #tpu.memory_space<vmem>>, vector<32x48xbf16>
    %cst_60 = arith.constant dense<0.000000e+00> : vector<8x48xf32>
    %145 = tpu.matmul %143, %144, %cst_60 {dimension_numbers = #tpu.dot_dimension_numbers<[1], [0], [0], [1], [0, 0, 1, 1], [], []>} : vector<8x32xbf16>, vector<32x48xbf16>, vector<8x48xf32> -> vector<8x48xf32>
    %c0_61 = arith.constant 0 : index
    %c0_62 = arith.constant 0 : index
    %146 = vector.load %arg14[%c0_61, %c0_62] : memref<1x48xf32, #tpu.memory_space<vmem>>, vector<1x48xf32>
    %147 = vector.broadcast %146 : vector<1x48xf32> to vector<8x48xf32>
    %148 = arith.addf %145, %147 : vector<8x48xf32>
    %c0_63 = arith.constant 0 : index
    %c0_64 = arith.constant 0 : index
    %c0_65 = arith.constant 0 : index
    %149 = vector.load %arg18[%c0_63, %c0_64, %c0_65] : memref<1x8x48xf32, #tpu.memory_space<vmem>>, vector<1x8x48xf32>
    %150 = vector.shape_cast %149 : vector<1x8x48xf32> to vector<8x48xf32>
    %151 = vector.shape_cast %148 : vector<8x48xf32> to vector<1x8x48xf32>
    tpu.vector_store %arg18[%c0_63, %c0_64, %c0_65], %151 {strides = array<i32>} : memref<1x8x48xf32, #tpu.memory_space<vmem>>, vector<1x8x48xf32>,
    %c0_66 = arith.constant 0 : index
    %c0_67 = arith.constant 0 : index
    %c0_68 = arith.constant 0 : index
    %152 = vector.load %arg3[%c0_66, %c0_67, %c0_68] : memref<1x80x32xf32, #tpu.memory_space<vmem>>, vector<1x80x32xf32>
    %153 = vector.shape_cast %152 : vector<1x80x32xf32> to vector<80x32xf32>
    %154 = arith.truncf %153 : vector<80x32xf32> to vector<80x32xbf16>
    %c0_69 = arith.constant 0 : index
    %c0_70 = arith.constant 0 : index
    %155 = vector.load %arg15[%c0_69, %c0_70] : memref<32x32xbf16, #tpu.memory_space<vmem>>, vector<32x32xbf16>
    %cst_71 = arith.constant dense<0.000000e+00> : vector<80x32xf32>
    %156 = tpu.matmul %154, %155, %cst_71 {dimension_numbers = #tpu.dot_dimension_numbers<[1], [0], [0], [1], [0, 0, 1, 1], [], []>} : vector<80x32xbf16>, vector<32x32xbf16>, vector<80x32xf32> -> vector<80x32xf32>
    %c0_72 = arith.constant 0 : index
    %c0_73 = arith.constant 0 : index
    %157 = vector.load %arg16[%c0_72, %c0_73] : memref<1x32xf32, #tpu.memory_space<vmem>>, vector<1x32xf32>
    %158 = vector.broadcast %157 : vector<1x32xf32> to vector<80x32xf32>
    %159 = arith.addf %156, %158 : vector<80x32xf32>
    %c0_74 = arith.constant 0 : index
    %c0_75 = arith.constant 0 : index
    %c0_76 = arith.constant 0 : index
    %160 = vector.load %arg4[%c0_74, %c0_75, %c0_76] : memref<1x80x1xf32, #tpu.memory_space<vmem>>, vector<1x80x1xf32>
    %161 = vector.shape_cast %160 : vector<1x80x1xf32> to vector<80x1xf32>
    %162 = vector.broadcast %161 : vector<80x1xf32> to vector<80x32xf32>
    %163 = arith.mulf %159, %162 : vector<80x32xf32>
    %c0_77 = arith.constant 0 : index
    %c0_78 = arith.constant 0 : index
    %c0_79 = arith.constant 0 : index
    %164 = vector.load %arg19[%c0_77, %c0_78, %c0_79] : memref<1x80x32xf32, #tpu.memory_space<vmem>>, vector<1x80x32xf32>
    %165 = vector.shape_cast %164 : vector<1x80x32xf32> to vector<80x32xf32>
    %166 = vector.shape_cast %163 : vector<80x32xf32> to vector<1x80x32xf32>
    tpu.vector_store %arg19[%c0_77, %c0_78, %c0_79], %166 {strides = array<i32>} : memref<1x80x32xf32, #tpu.memory_space<vmem>>, vector<1x80x32xf32>,
    return
  }
  func.func @transform_0(%arg0: i32) -> (i32, i32, i32) {
    %c0_i32 = arith.constant 0 : i32
    %c0_i32_0 = arith.constant 0 : i32
    %c0_i32_1 = arith.constant 0 : i32
    return %arg0, %c0_i32, %c0_i32_0 : i32, i32, i32
  }
  func.func @transform_1(%arg0: i32) -> (i32, i32, i32) {
    %c0_i32 = arith.constant 0 : i32
    %c0_i32_0 = arith.constant 0 : i32
    %c0_i32_1 = arith.constant 0 : i32
    return %arg0, %c0_i32, %c0_i32_0 : i32, i32, i32
  }
  func.func @transform_2(%arg0: i32) -> (i32, i32, i32) {
    %c0_i32 = arith.constant 0 : i32
    %c0_i32_0 = arith.constant 0 : i32
    %c0_i32_1 = arith.constant 0 : i32
    return %arg0, %c0_i32, %c0_i32_0 : i32, i32, i32
  }
  func.func @transform_3(%arg0: i32) -> (i32, i32, i32) {
    %c0_i32 = arith.constant 0 : i32
    %c0_i32_0 = arith.constant 0 : i32
    %c0_i32_1 = arith.constant 0 : i32
    return %arg0, %c0_i32, %c0_i32_0 : i32, i32, i32
  }
  func.func @transform_4(%arg0: i32) -> (i32, i32) {
    %c0_i32 = arith.constant 0 : i32
    %c0_i32_0 = arith.constant 0 : i32
    %c0_i32_1 = arith.constant 0 : i32
    return %c0_i32, %c0_i32_0 : i32, i32
  }
  func.func @transform_5(%arg0: i32) -> (i32, i32) {
    %c0_i32 = arith.constant 0 : i32
    %c0_i32_0 = arith.constant 0 : i32
    %c0_i32_1 = arith.constant 0 : i32
    return %c0_i32, %c0_i32_0 : i32, i32
  }
  func.func @transform_6(%arg0: i32) -> (i32, i32) {
    %c0_i32 = arith.constant 0 : i32
    %c0_i32_0 = arith.constant 0 : i32
    %c0_i32_1 = arith.constant 0 : i32
    return %c0_i32, %c0_i32_0 : i32, i32
  }
  func.func @transform_7(%arg0: i32) -> (i32, i32) {
    %c0_i32 = arith.constant 0 : i32
    %c0_i32_0 = arith.constant 0 : i32
    %c0_i32_1 = arith.constant 0 : i32
    return %c0_i32, %c0_i32_0 : i32, i32
  }
  func.func @transform_8(%arg0: i32) -> (i32, i32) {
    %c0_i32 = arith.constant 0 : i32
    %c0_i32_0 = arith.constant 0 : i32
    %c0_i32_1 = arith.constant 0 : i32
    return %c0_i32, %c0_i32_0 : i32, i32
  }
  func.func @transform_9(%arg0: i32) -> (i32, i32) {
    %c0_i32 = arith.constant 0 : i32
    %c0_i32_0 = arith.constant 0 : i32
    %c0_i32_1 = arith.constant 0 : i32
    return %c0_i32, %c0_i32_0 : i32, i32
  }
  func.func @transform_10(%arg0: i32) -> (i32, i32) {
    %c0_i32 = arith.constant 0 : i32
    %c0_i32_0 = arith.constant 0 : i32
    %c0_i32_1 = arith.constant 0 : i32
    return %c0_i32, %c0_i32_0 : i32, i32
  }
  func.func @transform_11(%arg0: i32) -> (i32, i32) {
    %c0_i32 = arith.constant 0 : i32
    %c0_i32_0 = arith.constant 0 : i32
    %c0_i32_1 = arith.constant 0 : i32
    return %c0_i32, %c0_i32_0 : i32, i32
  }
  func.func @transform_12(%arg0: i32) -> (i32, i32) {
    %c0_i32 = arith.constant 0 : i32
    %c0_i32_0 = arith.constant 0 : i32
    %c0_i32_1 = arith.constant 0 : i32
    return %c0_i32, %c0_i32_0 : i32, i32
  }
  func.func @transform_13(%arg0: i32) -> (i32, i32) {
    %c0_i32 = arith.constant 0 : i32
    %c0_i32_0 = arith.constant 0 : i32
    %c0_i32_1 = arith.constant 0 : i32
    return %c0_i32, %c0_i32_0 : i32, i32
  }
  func.func @transform_14(%arg0: i32) -> (i32, i32) {
    %c0_i32 = arith.constant 0 : i32
    %c0_i32_0 = arith.constant 0 : i32
    %c0_i32_1 = arith.constant 0 : i32
    return %c0_i32, %c0_i32_0 : i32, i32
  }
  func.func @transform_15(%arg0: i32) -> (i32, i32) {
    %c0_i32 = arith.constant 0 : i32
    %c0_i32_0 = arith.constant 0 : i32
    %c0_i32_1 = arith.constant 0 : i32
    return %c0_i32, %c0_i32_0 : i32, i32
  }
  func.func @transform_16(%arg0: i32) -> (i32, i32, i32) {
    %c0_i32 = arith.constant 0 : i32
    %c0_i32_0 = arith.constant 0 : i32
    %c0_i32_1 = arith.constant 0 : i32
    return %arg0, %c0_i32, %c0_i32_0 : i32, i32, i32
  }
  func.func @transform_17(%arg0: i32) -> (i32, i32, i32) {
    %c0_i32 = arith.constant 0 : i32
    %c0_i32_0 = arith.constant 0 : i32
    %c0_i32_1 = arith.constant 0 : i32
    return %arg0, %c0_i32, %c0_i32_0 : i32, i32, i32
  }
  func.func @transform_18(%arg0: i32) -> (i32, i32, i32) {
    %c0_i32 = arith.constant 0 : i32
    %c0_i32_0 = arith.constant 0 : i32
    %c0_i32_1 = arith.constant 0 : i32
    return %arg0, %c0_i32, %c0_i32_0 : i32, i32, i32
  }
}

module attributes {stable_mosaic.version = 11 : i64} {
  func.func @_msda_agg_ffn_kernel(%arg0: i32, %arg1: memref<1x8x16xf32, #tpu.memory_space<vmem>>, %arg2: memref<1x8x4x32xf32, #tpu.memory_space<vmem>>, %arg3: memref<1x8x32xf32, #tpu.memory_space<vmem>>, %arg4: memref<32x32xbf16, #tpu.memory_space<vmem>>, %arg5: memref<1x32xf32, #tpu.memory_space<vmem>>, %arg6: memref<1x32xf32, #tpu.memory_space<vmem>>, %arg7: memref<1x32xf32, #tpu.memory_space<vmem>>, %arg8: memref<32x64xbf16, #tpu.memory_space<vmem>>, %arg9: memref<1x64xf32, #tpu.memory_space<vmem>>, %arg10: memref<64x32xbf16, #tpu.memory_space<vmem>>, %arg11: memref<1x32xf32, #tpu.memory_space<vmem>>, %arg12: memref<1x32xf32, #tpu.memory_space<vmem>>, %arg13: memref<1x32xf32, #tpu.memory_space<vmem>>, %arg14: memref<1x8x32xf32, #tpu.memory_space<vmem>>) attributes {dimension_semantics = [#tpu.dimension_semantics<parallel>], iteration_bounds = array<i64: 2>, scalar_prefetch = 0 : i64, scratch_operands = 0 : i64, tpu.core_type = #tpu.core_type<tc>, window_params = [{transform_indices = @transform_0, window_bounds = array<i64: 1, 8, 16>}, {transform_indices = @transform_1, window_bounds = array<i64: 1, 8, 4, 32>}, {transform_indices = @transform_2, window_bounds = array<i64: 1, 8, 32>}, {pipeline_mode = #tpu.pipeline_mode<synchronous>, transform_indices = @transform_3, window_bounds = array<i64: 32, 32>}, {pipeline_mode = #tpu.pipeline_mode<synchronous>, transform_indices = @transform_4, window_bounds = array<i64: 1, 32>}, {pipeline_mode = #tpu.pipeline_mode<synchronous>, transform_indices = @transform_5, window_bounds = array<i64: 1, 32>}, {pipeline_mode = #tpu.pipeline_mode<synchronous>, transform_indices = @transform_6, window_bounds = array<i64: 1, 32>}, {pipeline_mode = #tpu.pipeline_mode<synchronous>, transform_indices = @transform_7, window_bounds = array<i64: 32, 64>}, {pipeline_mode = #tpu.pipeline_mode<synchronous>, transform_indices = @transform_8, window_bounds = array<i64: 1, 64>}, {pipeline_mode = #tpu.pipeline_mode<synchronous>, transform_indices = @transform_9, window_bounds = array<i64: 64, 32>}, {pipeline_mode = #tpu.pipeline_mode<synchronous>, transform_indices = @transform_10, window_bounds = array<i64: 1, 32>}, {pipeline_mode = #tpu.pipeline_mode<synchronous>, transform_indices = @transform_11, window_bounds = array<i64: 1, 32>}, {pipeline_mode = #tpu.pipeline_mode<synchronous>, transform_indices = @transform_12, window_bounds = array<i64: 1, 32>}, {transform_indices = @transform_13, window_bounds = array<i64: 1, 8, 32>}]} {
    %c0 = arith.constant 0 : index
    %c0_0 = arith.constant 0 : index
    %c0_1 = arith.constant 0 : index
    %0 = vector.load %arg3[%c0, %c0_0, %c0_1] : memref<1x8x32xf32, #tpu.memory_space<vmem>>, vector<1x8x32xf32>
    %1 = vector.shape_cast %0 : vector<1x8x32xf32> to vector<8x32xf32>
    %c0_2 = arith.constant 0 : index
    %c0_3 = arith.constant 0 : index
    %c0_4 = arith.constant 0 : index
    %2 = vector.load %arg1[%c0_2, %c0_3, %c0_4] : memref<1x8x16xf32, #tpu.memory_space<vmem>>, vector<1x8x16xf32>
    %3 = vector.shape_cast %2 : vector<1x8x16xf32> to vector<8x16xf32>
    %c0_5 = arith.constant 0 : index
    %c0_6 = arith.constant 0 : index
    %c0_7 = arith.constant 0 : index
    %c0_8 = arith.constant 0 : index
    %4 = vector.load %arg2[%c0_5, %c0_6, %c0_7, %c0_8] : memref<1x8x4x32xf32, #tpu.memory_space<vmem>>, vector<1x8x4x32xf32>
    %5 = vector.shape_cast %4 : vector<1x8x4x32xf32> to vector<8x4x32xf32>
    %cst = arith.constant 0.000000e+00 : f32
    %6 = vector.broadcast %cst : f32 to vector<8x32xf32>
    %7 = vector.extract_strided_slice %3 {offsets = [0, 0], sizes = [8, 4], strides = [1, 1]} : vector<8x16xf32> to vector<8x4xf32>
    %cst_9 = arith.constant dense<0xFF800000> : vector<8xf32>
    %8 = vector.multi_reduction <maximumf>, %7, %cst_9 [1] : vector<8x4xf32> to vector<8xf32>
    %9 = vector.shape_cast %8 : vector<8xf32> to vector<8x1xf32>
    %10 = vector.broadcast %9 : vector<8x1xf32> to vector<8x4xf32>
    %11 = arith.subf %7, %10 : vector<8x4xf32>
    %12 = math.exp %11 : vector<8x4xf32>
    %cst_10 = arith.constant dense<0.000000e+00> : vector<8xf32>
    %13 = vector.multi_reduction <add>, %12, %cst_10 [1] : vector<8x4xf32> to vector<8xf32>
    %14 = vector.shape_cast %13 : vector<8xf32> to vector<8x1xf32>
    %15 = tpu.reciprocal %14 {approx = true} : vector<8x1xf32> -> vector<8x1xf32>
    %16 = vector.broadcast %15 : vector<8x1xf32> to vector<8x4xf32>
    %17 = arith.mulf %12, %16 : vector<8x4xf32>
    %18 = vector.extract_strided_slice %5 {offsets = [0, 0, 0], sizes = [8, 4, 8], strides = [1, 1, 1]} : vector<8x4x32xf32> to vector<8x4x8xf32>
    %19 = vector.shape_cast %17 : vector<8x4xf32> to vector<8x4x1xf32>
    %20 = vector.broadcast %19 : vector<8x4x1xf32> to vector<8x4x8xf32>
    %21 = arith.mulf %18, %20 : vector<8x4x8xf32>
    %cst_11 = arith.constant dense<0.000000e+00> : vector<8x8xf32>
    %22 = vector.multi_reduction <add>, %21, %cst_11 [1] : vector<8x4x8xf32> to vector<8x8xf32>
    %23 = arith.truncf %22 : vector<8x8xf32> to vector<8x8xbf16>
    %c0_12 = arith.constant 0 : index
    %c0_13 = arith.constant 0 : index
    %24 = vector.load %arg4[%c0_12, %c0_13] : memref<32x32xbf16, #tpu.memory_space<vmem>>, vector<8x32xbf16>
    %cst_14 = arith.constant dense<0.000000e+00> : vector<8x32xf32>
    %25 = tpu.matmul %23, %24, %cst_14 {dimension_numbers = #tpu.dot_dimension_numbers<[1], [0], [0], [1], [0, 0, 1, 1], [], []>} : vector<8x8xbf16>, vector<8x32xbf16>, vector<8x32xf32> -> vector<8x32xf32>
    %26 = arith.addf %6, %25 : vector<8x32xf32>
    %27 = vector.extract_strided_slice %3 {offsets = [0, 4], sizes = [8, 4], strides = [1, 1]} : vector<8x16xf32> to vector<8x4xf32>
    %cst_15 = arith.constant dense<0xFF800000> : vector<8xf32>
    %28 = vector.multi_reduction <maximumf>, %27, %cst_15 [1] : vector<8x4xf32> to vector<8xf32>
    %29 = vector.shape_cast %28 : vector<8xf32> to vector<8x1xf32>
    %30 = vector.broadcast %29 : vector<8x1xf32> to vector<8x4xf32>
    %31 = arith.subf %27, %30 : vector<8x4xf32>
    %32 = math.exp %31 : vector<8x4xf32>
    %cst_16 = arith.constant dense<0.000000e+00> : vector<8xf32>
    %33 = vector.multi_reduction <add>, %32, %cst_16 [1] : vector<8x4xf32> to vector<8xf32>
    %34 = vector.shape_cast %33 : vector<8xf32> to vector<8x1xf32>
    %35 = tpu.reciprocal %34 {approx = true} : vector<8x1xf32> -> vector<8x1xf32>
    %36 = vector.broadcast %35 : vector<8x1xf32> to vector<8x4xf32>
    %37 = arith.mulf %32, %36 : vector<8x4xf32>
    %38 = vector.extract_strided_slice %5 {offsets = [0, 0, 8], sizes = [8, 4, 8], strides = [1, 1, 1]} : vector<8x4x32xf32> to vector<8x4x8xf32>
    %39 = vector.shape_cast %37 : vector<8x4xf32> to vector<8x4x1xf32>
    %40 = vector.broadcast %39 : vector<8x4x1xf32> to vector<8x4x8xf32>
    %41 = arith.mulf %38, %40 : vector<8x4x8xf32>
    %cst_17 = arith.constant dense<0.000000e+00> : vector<8x8xf32>
    %42 = vector.multi_reduction <add>, %41, %cst_17 [1] : vector<8x4x8xf32> to vector<8x8xf32>
    %43 = arith.truncf %42 : vector<8x8xf32> to vector<8x8xbf16>
    %c8 = arith.constant 8 : index
    %c0_18 = arith.constant 0 : index
    %44 = vector.load %arg4[%c8, %c0_18] : memref<32x32xbf16, #tpu.memory_space<vmem>>, vector<8x32xbf16>
    %cst_19 = arith.constant dense<0.000000e+00> : vector<8x32xf32>
    %45 = tpu.matmul %43, %44, %cst_19 {dimension_numbers = #tpu.dot_dimension_numbers<[1], [0], [0], [1], [0, 0, 1, 1], [], []>} : vector<8x8xbf16>, vector<8x32xbf16>, vector<8x32xf32> -> vector<8x32xf32>
    %46 = arith.addf %26, %45 : vector<8x32xf32>
    %47 = vector.extract_strided_slice %3 {offsets = [0, 8], sizes = [8, 4], strides = [1, 1]} : vector<8x16xf32> to vector<8x4xf32>
    %cst_20 = arith.constant dense<0xFF800000> : vector<8xf32>
    %48 = vector.multi_reduction <maximumf>, %47, %cst_20 [1] : vector<8x4xf32> to vector<8xf32>
    %49 = vector.shape_cast %48 : vector<8xf32> to vector<8x1xf32>
    %50 = vector.broadcast %49 : vector<8x1xf32> to vector<8x4xf32>
    %51 = arith.subf %47, %50 : vector<8x4xf32>
    %52 = math.exp %51 : vector<8x4xf32>
    %cst_21 = arith.constant dense<0.000000e+00> : vector<8xf32>
    %53 = vector.multi_reduction <add>, %52, %cst_21 [1] : vector<8x4xf32> to vector<8xf32>
    %54 = vector.shape_cast %53 : vector<8xf32> to vector<8x1xf32>
    %55 = tpu.reciprocal %54 {approx = true} : vector<8x1xf32> -> vector<8x1xf32>
    %56 = vector.broadcast %55 : vector<8x1xf32> to vector<8x4xf32>
    %57 = arith.mulf %52, %56 : vector<8x4xf32>
    %58 = vector.extract_strided_slice %5 {offsets = [0, 0, 16], sizes = [8, 4, 8], strides = [1, 1, 1]} : vector<8x4x32xf32> to vector<8x4x8xf32>
    %59 = vector.shape_cast %57 : vector<8x4xf32> to vector<8x4x1xf32>
    %60 = vector.broadcast %59 : vector<8x4x1xf32> to vector<8x4x8xf32>
    %61 = arith.mulf %58, %60 : vector<8x4x8xf32>
    %cst_22 = arith.constant dense<0.000000e+00> : vector<8x8xf32>
    %62 = vector.multi_reduction <add>, %61, %cst_22 [1] : vector<8x4x8xf32> to vector<8x8xf32>
    %63 = arith.truncf %62 : vector<8x8xf32> to vector<8x8xbf16>
    %c16 = arith.constant 16 : index
    %c0_23 = arith.constant 0 : index
    %64 = vector.load %arg4[%c16, %c0_23] : memref<32x32xbf16, #tpu.memory_space<vmem>>, vector<8x32xbf16>
    %cst_24 = arith.constant dense<0.000000e+00> : vector<8x32xf32>
    %65 = tpu.matmul %63, %64, %cst_24 {dimension_numbers = #tpu.dot_dimension_numbers<[1], [0], [0], [1], [0, 0, 1, 1], [], []>} : vector<8x8xbf16>, vector<8x32xbf16>, vector<8x32xf32> -> vector<8x32xf32>
    %66 = arith.addf %46, %65 : vector<8x32xf32>
    %67 = vector.extract_strided_slice %3 {offsets = [0, 12], sizes = [8, 4], strides = [1, 1]} : vector<8x16xf32> to vector<8x4xf32>
    %cst_25 = arith.constant dense<0xFF800000> : vector<8xf32>
    %68 = vector.multi_reduction <maximumf>, %67, %cst_25 [1] : vector<8x4xf32> to vector<8xf32>
    %69 = vector.shape_cast %68 : vector<8xf32> to vector<8x1xf32>
    %70 = vector.broadcast %69 : vector<8x1xf32> to vector<8x4xf32>
    %71 = arith.subf %67, %70 : vector<8x4xf32>
    %72 = math.exp %71 : vector<8x4xf32>
    %cst_26 = arith.constant dense<0.000000e+00> : vector<8xf32>
    %73 = vector.multi_reduction <add>, %72, %cst_26 [1] : vector<8x4xf32> to vector<8xf32>
    %74 = vector.shape_cast %73 : vector<8xf32> to vector<8x1xf32>
    %75 = tpu.reciprocal %74 {approx = true} : vector<8x1xf32> -> vector<8x1xf32>
    %76 = vector.broadcast %75 : vector<8x1xf32> to vector<8x4xf32>
    %77 = arith.mulf %72, %76 : vector<8x4xf32>
    %78 = vector.extract_strided_slice %5 {offsets = [0, 0, 24], sizes = [8, 4, 8], strides = [1, 1, 1]} : vector<8x4x32xf32> to vector<8x4x8xf32>
    %79 = vector.shape_cast %77 : vector<8x4xf32> to vector<8x4x1xf32>
    %80 = vector.broadcast %79 : vector<8x4x1xf32> to vector<8x4x8xf32>
    %81 = arith.mulf %78, %80 : vector<8x4x8xf32>
    %cst_27 = arith.constant dense<0.000000e+00> : vector<8x8xf32>
    %82 = vector.multi_reduction <add>, %81, %cst_27 [1] : vector<8x4x8xf32> to vector<8x8xf32>
    %83 = arith.truncf %82 : vector<8x8xf32> to vector<8x8xbf16>
    %c24 = arith.constant 24 : index
    %c0_28 = arith.constant 0 : index
    %84 = vector.load %arg4[%c24, %c0_28] : memref<32x32xbf16, #tpu.memory_space<vmem>>, vector<8x32xbf16>
    %cst_29 = arith.constant dense<0.000000e+00> : vector<8x32xf32>
    %85 = tpu.matmul %83, %84, %cst_29 {dimension_numbers = #tpu.dot_dimension_numbers<[1], [0], [0], [1], [0, 0, 1, 1], [], []>} : vector<8x8xbf16>, vector<8x32xbf16>, vector<8x32xf32> -> vector<8x32xf32>
    %86 = arith.addf %66, %85 : vector<8x32xf32>
    %c0_30 = arith.constant 0 : index
    %c0_31 = arith.constant 0 : index
    %87 = vector.load %arg5[%c0_30, %c0_31] : memref<1x32xf32, #tpu.memory_space<vmem>>, vector<1x32xf32>
    %88 = vector.broadcast %87 : vector<1x32xf32> to vector<8x32xf32>
    %89 = arith.addf %86, %88 : vector<8x32xf32>
    %90 = arith.addf %1, %89 : vector<8x32xf32>
    %c0_32 = arith.constant 0 : index
    %c0_33 = arith.constant 0 : index
    %91 = vector.load %arg6[%c0_32, %c0_33] : memref<1x32xf32, #tpu.memory_space<vmem>>, vector<1x32xf32>
    %c0_34 = arith.constant 0 : index
    %c0_35 = arith.constant 0 : index
    %92 = vector.load %arg7[%c0_34, %c0_35] : memref<1x32xf32, #tpu.memory_space<vmem>>, vector<1x32xf32>
    %cst_36 = arith.constant dense<0.000000e+00> : vector<8xf32>
    %93 = vector.multi_reduction <add>, %90, %cst_36 [1] : vector<8x32xf32> to vector<8xf32>
    %94 = vector.shape_cast %93 : vector<8xf32> to vector<8x1xf32>
    %cst_37 = arith.constant 3.200000e+01 : f32
    %95 = vector.broadcast %cst_37 : f32 to vector<8x1xf32>
    %96 = arith.divf %94, %95 : vector<8x1xf32>
    %97 = vector.broadcast %96 : vector<8x1xf32> to vector<8x32xf32>
    %98 = arith.subf %90, %97 : vector<8x32xf32>
    %99 = arith.mulf %98, %98 : vector<8x32xf32>
    %cst_38 = arith.constant dense<0.000000e+00> : vector<8xf32>
    %100 = vector.multi_reduction <add>, %99, %cst_38 [1] : vector<8x32xf32> to vector<8xf32>
    %101 = vector.shape_cast %100 : vector<8xf32> to vector<8x1xf32>
    %cst_39 = arith.constant 3.200000e+01 : f32
    %102 = vector.broadcast %cst_39 : f32 to vector<8x1xf32>
    %103 = arith.divf %101, %102 : vector<8x1xf32>
    %104 = vector.broadcast %96 : vector<8x1xf32> to vector<8x32xf32>
    %105 = arith.subf %90, %104 : vector<8x32xf32>
    %cst_40 = arith.constant 9.99999974E-6 : f32
    %106 = vector.broadcast %cst_40 : f32 to vector<8x1xf32>
    %107 = arith.addf %103, %106 : vector<8x1xf32>
    %108 = math.rsqrt %107 : vector<8x1xf32>
    %109 = vector.broadcast %108 : vector<8x1xf32> to vector<8x32xf32>
    %110 = arith.mulf %105, %109 : vector<8x32xf32>
    %111 = vector.broadcast %91 : vector<1x32xf32> to vector<8x32xf32>
    %112 = arith.mulf %110, %111 : vector<8x32xf32>
    %113 = vector.broadcast %92 : vector<1x32xf32> to vector<8x32xf32>
    %114 = arith.addf %112, %113 : vector<8x32xf32>
    %115 = arith.truncf %114 : vector<8x32xf32> to vector<8x32xbf16>
    %c0_41 = arith.constant 0 : index
    %c0_42 = arith.constant 0 : index
    %116 = vector.load %arg8[%c0_41, %c0_42] : memref<32x64xbf16, #tpu.memory_space<vmem>>, vector<32x64xbf16>
    %cst_43 = arith.constant dense<0.000000e+00> : vector<8x64xf32>
    %117 = tpu.matmul %115, %116, %cst_43 {dimension_numbers = #tpu.dot_dimension_numbers<[1], [0], [0], [1], [0, 0, 1, 1], [], []>} : vector<8x32xbf16>, vector<32x64xbf16>, vector<8x64xf32> -> vector<8x64xf32>
    %c0_44 = arith.constant 0 : index
    %c0_45 = arith.constant 0 : index
    %118 = vector.load %arg9[%c0_44, %c0_45] : memref<1x64xf32, #tpu.memory_space<vmem>>, vector<1x64xf32>
    %119 = vector.broadcast %118 : vector<1x64xf32> to vector<8x64xf32>
    %120 = arith.addf %117, %119 : vector<8x64xf32>
    %cst_46 = arith.constant 0.000000e+00 : f32
    %121 = vector.broadcast %cst_46 : f32 to vector<8x64xf32>
    %122 = arith.maximumf %120, %121 : vector<8x64xf32>
    %123 = arith.truncf %122 : vector<8x64xf32> to vector<8x64xbf16>
    %c0_47 = arith.constant 0 : index
    %c0_48 = arith.constant 0 : index
    %124 = vector.load %arg10[%c0_47, %c0_48] : memref<64x32xbf16, #tpu.memory_space<vmem>>, vector<64x32xbf16>
    %cst_49 = arith.constant dense<0.000000e+00> : vector<8x32xf32>
    %125 = tpu.matmul %123, %124, %cst_49 {dimension_numbers = #tpu.dot_dimension_numbers<[1], [0], [0], [1], [0, 0, 1, 1], [], []>} : vector<8x64xbf16>, vector<64x32xbf16>, vector<8x32xf32> -> vector<8x32xf32>
    %c0_50 = arith.constant 0 : index
    %c0_51 = arith.constant 0 : index
    %126 = vector.load %arg11[%c0_50, %c0_51] : memref<1x32xf32, #tpu.memory_space<vmem>>, vector<1x32xf32>
    %127 = vector.broadcast %126 : vector<1x32xf32> to vector<8x32xf32>
    %128 = arith.addf %125, %127 : vector<8x32xf32>
    %129 = arith.addf %114, %128 : vector<8x32xf32>
    %c0_52 = arith.constant 0 : index
    %c0_53 = arith.constant 0 : index
    %130 = vector.load %arg12[%c0_52, %c0_53] : memref<1x32xf32, #tpu.memory_space<vmem>>, vector<1x32xf32>
    %c0_54 = arith.constant 0 : index
    %c0_55 = arith.constant 0 : index
    %131 = vector.load %arg13[%c0_54, %c0_55] : memref<1x32xf32, #tpu.memory_space<vmem>>, vector<1x32xf32>
    %cst_56 = arith.constant dense<0.000000e+00> : vector<8xf32>
    %132 = vector.multi_reduction <add>, %129, %cst_56 [1] : vector<8x32xf32> to vector<8xf32>
    %133 = vector.shape_cast %132 : vector<8xf32> to vector<8x1xf32>
    %cst_57 = arith.constant 3.200000e+01 : f32
    %134 = vector.broadcast %cst_57 : f32 to vector<8x1xf32>
    %135 = arith.divf %133, %134 : vector<8x1xf32>
    %136 = vector.broadcast %135 : vector<8x1xf32> to vector<8x32xf32>
    %137 = arith.subf %129, %136 : vector<8x32xf32>
    %138 = arith.mulf %137, %137 : vector<8x32xf32>
    %cst_58 = arith.constant dense<0.000000e+00> : vector<8xf32>
    %139 = vector.multi_reduction <add>, %138, %cst_58 [1] : vector<8x32xf32> to vector<8xf32>
    %140 = vector.shape_cast %139 : vector<8xf32> to vector<8x1xf32>
    %cst_59 = arith.constant 3.200000e+01 : f32
    %141 = vector.broadcast %cst_59 : f32 to vector<8x1xf32>
    %142 = arith.divf %140, %141 : vector<8x1xf32>
    %143 = vector.broadcast %135 : vector<8x1xf32> to vector<8x32xf32>
    %144 = arith.subf %129, %143 : vector<8x32xf32>
    %cst_60 = arith.constant 9.99999974E-6 : f32
    %145 = vector.broadcast %cst_60 : f32 to vector<8x1xf32>
    %146 = arith.addf %142, %145 : vector<8x1xf32>
    %147 = math.rsqrt %146 : vector<8x1xf32>
    %148 = vector.broadcast %147 : vector<8x1xf32> to vector<8x32xf32>
    %149 = arith.mulf %144, %148 : vector<8x32xf32>
    %150 = vector.broadcast %130 : vector<1x32xf32> to vector<8x32xf32>
    %151 = arith.mulf %149, %150 : vector<8x32xf32>
    %152 = vector.broadcast %131 : vector<1x32xf32> to vector<8x32xf32>
    %153 = arith.addf %151, %152 : vector<8x32xf32>
    %c0_61 = arith.constant 0 : index
    %c0_62 = arith.constant 0 : index
    %c0_63 = arith.constant 0 : index
    %154 = vector.load %arg14[%c0_61, %c0_62, %c0_63] : memref<1x8x32xf32, #tpu.memory_space<vmem>>, vector<1x8x32xf32>
    %155 = vector.shape_cast %154 : vector<1x8x32xf32> to vector<8x32xf32>
    %156 = vector.shape_cast %153 : vector<8x32xf32> to vector<1x8x32xf32>
    tpu.vector_store %arg14[%c0_61, %c0_62, %c0_63], %156 {strides = array<i32>} : memref<1x8x32xf32, #tpu.memory_space<vmem>>, vector<1x8x32xf32>,
    return
  }
  func.func @transform_0(%arg0: i32) -> (i32, i32, i32) {
    %c0_i32 = arith.constant 0 : i32
    %c0_i32_0 = arith.constant 0 : i32
    %c0_i32_1 = arith.constant 0 : i32
    return %arg0, %c0_i32, %c0_i32_0 : i32, i32, i32
  }
  func.func @transform_1(%arg0: i32) -> (i32, i32, i32, i32) {
    %c0_i32 = arith.constant 0 : i32
    %c0_i32_0 = arith.constant 0 : i32
    %c0_i32_1 = arith.constant 0 : i32
    %c0_i32_2 = arith.constant 0 : i32
    return %arg0, %c0_i32, %c0_i32_0, %c0_i32_1 : i32, i32, i32, i32
  }
  func.func @transform_2(%arg0: i32) -> (i32, i32, i32) {
    %c0_i32 = arith.constant 0 : i32
    %c0_i32_0 = arith.constant 0 : i32
    %c0_i32_1 = arith.constant 0 : i32
    return %arg0, %c0_i32, %c0_i32_0 : i32, i32, i32
  }
  func.func @transform_3(%arg0: i32) -> (i32, i32) {
    %c0_i32 = arith.constant 0 : i32
    %c0_i32_0 = arith.constant 0 : i32
    %c0_i32_1 = arith.constant 0 : i32
    return %c0_i32, %c0_i32_0 : i32, i32
  }
  func.func @transform_4(%arg0: i32) -> (i32, i32) {
    %c0_i32 = arith.constant 0 : i32
    %c0_i32_0 = arith.constant 0 : i32
    %c0_i32_1 = arith.constant 0 : i32
    return %c0_i32, %c0_i32_0 : i32, i32
  }
  func.func @transform_5(%arg0: i32) -> (i32, i32) {
    %c0_i32 = arith.constant 0 : i32
    %c0_i32_0 = arith.constant 0 : i32
    %c0_i32_1 = arith.constant 0 : i32
    return %c0_i32, %c0_i32_0 : i32, i32
  }
  func.func @transform_6(%arg0: i32) -> (i32, i32) {
    %c0_i32 = arith.constant 0 : i32
    %c0_i32_0 = arith.constant 0 : i32
    %c0_i32_1 = arith.constant 0 : i32
    return %c0_i32, %c0_i32_0 : i32, i32
  }
  func.func @transform_7(%arg0: i32) -> (i32, i32) {
    %c0_i32 = arith.constant 0 : i32
    %c0_i32_0 = arith.constant 0 : i32
    %c0_i32_1 = arith.constant 0 : i32
    return %c0_i32, %c0_i32_0 : i32, i32
  }
  func.func @transform_8(%arg0: i32) -> (i32, i32) {
    %c0_i32 = arith.constant 0 : i32
    %c0_i32_0 = arith.constant 0 : i32
    %c0_i32_1 = arith.constant 0 : i32
    return %c0_i32, %c0_i32_0 : i32, i32
  }
  func.func @transform_9(%arg0: i32) -> (i32, i32) {
    %c0_i32 = arith.constant 0 : i32
    %c0_i32_0 = arith.constant 0 : i32
    %c0_i32_1 = arith.constant 0 : i32
    return %c0_i32, %c0_i32_0 : i32, i32
  }
  func.func @transform_10(%arg0: i32) -> (i32, i32) {
    %c0_i32 = arith.constant 0 : i32
    %c0_i32_0 = arith.constant 0 : i32
    %c0_i32_1 = arith.constant 0 : i32
    return %c0_i32, %c0_i32_0 : i32, i32
  }
  func.func @transform_11(%arg0: i32) -> (i32, i32) {
    %c0_i32 = arith.constant 0 : i32
    %c0_i32_0 = arith.constant 0 : i32
    %c0_i32_1 = arith.constant 0 : i32
    return %c0_i32, %c0_i32_0 : i32, i32
  }
  func.func @transform_12(%arg0: i32) -> (i32, i32) {
    %c0_i32 = arith.constant 0 : i32
    %c0_i32_0 = arith.constant 0 : i32
    %c0_i32_1 = arith.constant 0 : i32
    return %c0_i32, %c0_i32_0 : i32, i32
  }
  func.func @transform_13(%arg0: i32) -> (i32, i32, i32) {
    %c0_i32 = arith.constant 0 : i32
    %c0_i32_0 = arith.constant 0 : i32
    %c0_i32_1 = arith.constant 0 : i32
    return %arg0, %c0_i32, %c0_i32_0 : i32, i32, i32
  }
}

</mosaic_0001>

<llo_original>
// kernel: decoder_layer_forward.2
$region0: #{decoder_layer_forward.2}
  #allocation0 [shape = 'u32[]', space=smem, size = 0x4, offset = 0x4, fixed_abs, tag = 'smem constant byte address 0x4 - core index']
  #allocation1 [shape = 'u32[144,128]{1,0:T(1,128)}', space=vmem, size = 0x12000, scoped, tag = 'internal scratch']
  %s0 = inlined_call_operand.vmem [shape: f32[2,8,32], index: 0, kind: input, shape index: {}]
  %s1 = inlined_call_operand.vmem [shape: f32[2,8,32], index: 1, kind: input, shape index: {}]
  %s2 = inlined_call_operand.vmem [shape: f32[2,80,32], index: 2, kind: input, shape index: {}]
  %s3 = inlined_call_operand.vmem [shape: f32[2,80,1], index: 3, kind: input, shape index: {}]
  %s4 = inlined_call_operand.vmem [shape: bf16[32,64], index: 4, kind: input, shape index: {}]
  %s5 = inlined_call_operand.vmem [shape: f32[1,64], index: 5, kind: input, shape index: {}]
  %s6 = inlined_call_operand.vmem [shape: bf16[32,32], index: 6, kind: input, shape index: {}]
  %s7 = inlined_call_operand.vmem [shape: f32[1,32], index: 7, kind: input, shape index: {}]
  %s8 = inlined_call_operand.vmem [shape: bf16[32,32], index: 8, kind: input, shape index: {}]
  %s9 = inlined_call_operand.vmem [shape: f32[1,32], index: 9, kind: input, shape index: {}]
  %s10 = inlined_call_operand.vmem [shape: f32[1,32], index: 10, kind: input, shape index: {}]
  %s11 = inlined_call_operand.vmem [shape: f32[1,32], index: 11, kind: input, shape index: {}]
  %s12 = inlined_call_operand.vmem [shape: bf16[32,48], index: 12, kind: input, shape index: {}]
  %s13 = inlined_call_operand.vmem [shape: f32[1,48], index: 13, kind: input, shape index: {}]
  %s14 = inlined_call_operand.vmem [shape: bf16[32,32], index: 14, kind: input, shape index: {}]
  %s15 = inlined_call_operand.vmem [shape: f32[1,32], index: 15, kind: input, shape index: {}]
  %s16 = inlined_call_operand.vmem [shape: f32[2,8,32], index: 16, kind: output, shape index: {0}]
  %s17 = inlined_call_operand.vmem [shape: f32[2,8,48], index: 17, kind: output, shape index: {1}]
  %s18 = inlined_call_operand.vmem [shape: f32[2,80,32], index: 18, kind: output, shape index: {2}]
  %19 = xla_tuple %s16, %s17, %s18
  %s20 = sld [smem:[#allocation0]]
  $region113: #{decoder_layer_forward.2} parent=0
    _
  %s22 = ssub.s32 1, %s20
  %s23 = scalar_select 0, %s22, %s20
  loop: start=0, step=1, limit=4
  $region2: #{decoder_layer_forward.2} parent=0 // loop_pre_header
    _
  $region3: #{decoder_layer_forward.2} parent=0 // loop_header
    %s25 = sphi 0, %s29
    %p26 = scmp.ge.s32.totalorder %s25, 4
    %s35 = sphi 0, %s37
    %s38 = sphi 0, %s35
    %s39 = sphi 0, %s38
    %s55 = sphi 0, %s39
    %s61 = sphi 0, %s63
    %s64 = sphi 0, %s61
    %s65 = sphi 0, %s64
    %s81 = sphi 0, %s65
    %s87 = sphi 0, %s89
    %s90 = sphi 0, %s87
    %s91 = sphi 0, %s90
    %s107 = sphi 0, %s91
    %s113 = sphi 0, %s115
    %s116 = sphi 0, %s113
    %s117 = sphi 0, %s116
    %s133 = sphi 0, %s117
    %s137 = sphi 0, %s137
    %s139 = sphi 0, %s137
    %s140 = sphi 0, %s139
    %s154 = sphi 0, %s140
    %s158 = sphi 0, %s158
    %s160 = sphi 0, %s158
    %s161 = sphi 0, %s160
    %s175 = sphi 0, %s161
    %s179 = sphi 0, %s179
    %s181 = sphi 0, %s179
    %s182 = sphi 0, %s181
    %s196 = sphi 0, %s182
    %s200 = sphi 0, %s200
    %s202 = sphi 0, %s200
    %s203 = sphi 0, %s202
    %s217 = sphi 0, %s203
    %s221 = sphi 0, %s221
    %s223 = sphi 0, %s221
    %s224 = sphi 0, %s223
    %s238 = sphi 0, %s224
    %s242 = sphi 0, %s242
    %s244 = sphi 0, %s242
    %s245 = sphi 0, %s244
    %s259 = sphi 0, %s245
    %s263 = sphi 0, %s263
    %s265 = sphi 0, %s263
    %s266 = sphi 0, %s265
    %s280 = sphi 0, %s266
    %s284 = sphi 0, %s284
    %s286 = sphi 0, %s284
    %s287 = sphi 0, %s286
    %s301 = sphi 0, %s287
    %s305 = sphi 0, %s305
    %s307 = sphi 0, %s305
    %s308 = sphi 0, %s307
    %s322 = sphi 0, %s308
    %s326 = sphi 0, %s326
    %s328 = sphi 0, %s326
    %s329 = sphi 0, %s328
    %s343 = sphi 0, %s329
    %s347 = sphi 0, %s347
    %s349 = sphi 0, %s347
    %s350 = sphi 0, %s349
    %s364 = sphi 0, %s350
    %s368 = sphi 0, %s368
    %s370 = sphi 0, %s368
    %s371 = sphi 0, %s370
    %s385 = sphi 0, %s371
    %s391 = sphi 0, %s393
    %s394 = sphi 0, %s391
    %s395 = sphi 0, %s394
    %s411 = sphi 0, %s395
    %s417 = sphi 0, %s419
    %s420 = sphi 0, %s417
    %s421 = sphi 0, %s420
    %s437 = sphi 0, %s421
    %s443 = sphi 0, %s445
    %s446 = sphi 0, %s443
    %s447 = sphi 0, %s446
    %s463 = sphi 0, %s447
  $region4: #{decoder_layer_forward.2} parent=0 // loop_header_branch
    %28 = sbr.rel (%p26) target = $region8
  $region5: #{decoder_layer_forward.2} parent=0 // loop_body
    %s30 = ssub.s32 %s25, 1
    %s31 = ssub.s32 %s25, 2
    %s32 = sadd.s32 %s25, 1
    %s33 = ssub.s32 %s25, %s32
    %p34 = scmp.eq.s32.totalorder %s33, 0
    %s36 = sadd.s32 %s35, 1
    %s37 = scalar_select %p34, %s35, %s36
    %p40 = pneg %p34
    %p41 = scmp.eq.s32.totalorder %s25, 1
    %p42 = por %p40, %p41
    %p43 = scmp.ne.s32.totalorder %s35, %s38
    %p44 = scmp.eq.s32.totalorder %s25, 0
    %p45 = por %p43, %p44
    %p46 = scmp.ne.s32.totalorder %s35, %s38
    %p47 = scmp.eq.s32.totalorder %s30, 1
    %p48 = por %p46, %p47
    %p49 = scmp.ne.s32.totalorder %s38, %s39
    %p50 = scmp.eq.s32.totalorder %s30, 0
    %p51 = por %p49, %p50
    %p52 = scmp.ne.s32.totalorder %s38, %s39
    %p53 = scmp.eq.s32.totalorder %s31, 1
    %p54 = por %p52, %p53
    %p56 = scmp.ne.s32.totalorder %s39, %s55
    %p57 = scmp.eq.s32.totalorder %s31, 0
    %p58 = por %p56, %p57
    %s59 = ssub.s32 %s25, %s32
    %p60 = scmp.eq.s32.totalorder %s59, 0
    %s62 = sadd.s32 %s61, 1
    %s63 = scalar_select %p60, %s61, %s62
    %p66 = pneg %p60
    %p67 = scmp.eq.s32.totalorder %s25, 1
    %p68 = por %p66, %p67
    %p69 = scmp.ne.s32.totalorder %s61, %s64
    %p70 = scmp.eq.s32.totalorder %s25, 0
    %p71 = por %p69, %p70
    %p72 = scmp.ne.s32.totalorder %s61, %s64
    %p73 = scmp.eq.s32.totalorder %s30, 1
    %p74 = por %p72, %p73
    %p75 = scmp.ne.s32.totalorder %s64, %s65
    %p76 = scmp.eq.s32.totalorder %s30, 0
    %p77 = por %p75, %p76
    %p78 = scmp.ne.s32.totalorder %s64, %s65
    %p79 = scmp.eq.s32.totalorder %s31, 1
    %p80 = por %p78, %p79
    %p82 = scmp.ne.s32.totalorder %s65, %s81
    %p83 = scmp.eq.s32.totalorder %s31, 0
    %p84 = por %p82, %p83
    %s85 = ssub.s32 %s25, %s32
    %p86 = scmp.eq.s32.totalorder %s85, 0
    %s88 = sadd.s32 %s87, 1
    %s89 = scalar_select %p86, %s87, %s88
    %p92 = pneg %p86
    %p93 = scmp.eq.s32.totalorder %s25, 1
    %p94 = por %p92, %p93
    %p95 = scmp.ne.s32.totalorder %s87, %s90
    %p96 = scmp.eq.s32.totalorder %s25, 0
    %p97 = por %p95, %p96
    %p98 = scmp.ne.s32.totalorder %s87, %s90
    %p99 = scmp.eq.s32.totalorder %s30, 1
    %p100 = por %p98, %p99
    %p101 = scmp.ne.s32.totalorder %s90, %s91
    %p102 = scmp.eq.s32.totalorder %s30, 0
    %p103 = por %p101, %p102
    %p104 = scmp.ne.s32.totalorder %s90, %s91
    %p105 = scmp.eq.s32.totalorder %s31, 1
    %p106 = por %p104, %p105
    %p108 = scmp.ne.s32.totalorder %s91, %s107
    %p109 = scmp.eq.s32.totalorder %s31, 0
    %p110 = por %p108, %p109
    %s111 = ssub.s32 %s25, %s32
    %p112 = scmp.eq.s32.totalorder %s111, 0
    %s114 = sadd.s32 %s113, 1
    %s115 = scalar_select %p112, %s113, %s114
    %p118 = pneg %p112
    %p119 = scmp.eq.s32.totalorder %s25, 1
    %p120 = por %p118, %p119
    %p121 = scmp.ne.s32.totalorder %s113, %s116
    %p122 = scmp.eq.s32.totalorder %s25, 0
    %p123 = por %p121, %p122
    %p124 = scmp.ne.s32.totalorder %s113, %s116
    %p125 = scmp.eq.s32.totalorder %s30, 1
    %p126 = por %p124, %p125
    %p127 = scmp.ne.s32.totalorder %s116, %s117
    %p128 = scmp.eq.s32.totalorder %s30, 0
    %p129 = por %p127, %p128
    %p130 = scmp.ne.s32.totalorder %s116, %s117
    %p131 = scmp.eq.s32.totalorder %s31, 1
    %p132 = por %p130, %p131
    %p134 = scmp.ne.s32.totalorder %s117, %s133
    %p135 = scmp.eq.s32.totalorder %s31, 0
    %p136 = por %p134, %p135
    %s138 = sadd.s32 %s137, 1
    %p141 = scmp.eq.s32.totalorder %s25, 1
    %p142 = scmp.ne.s32.totalorder %s137, %s139
    %p143 = scmp.eq.s32.totalorder %s25, 0
    %p144 = por %p142, %p143
    %p145 = scmp.ne.s32.totalorder %s137, %s139
    %p146 = scmp.eq.s32.totalorder %s30, 1
    %p147 = por %p145, %p146
    %p148 = scmp.ne.s32.totalorder %s139, %s140
    %p149 = scmp.eq.s32.totalorder %s30, 0
    %p150 = por %p148, %p149
    %p151 = scmp.ne.s32.totalorder %s139, %s140
    %p152 = scmp.eq.s32.totalorder %s31, 1
    %p153 = por %p151, %p152
    %p155 = scmp.ne.s32.totalorder %s140, %s154
    %p156 = scmp.eq.s32.totalorder %s31, 0
    %p157 = por %p155, %p156
    %s159 = sadd.s32 %s158, 1
    %p162 = scmp.eq.s32.totalorder %s25, 1
    %p163 = scmp.ne.s32.totalorder %s158, %s160
    %p164 = scmp.eq.s32.totalorder %s25, 0
    %p165 = por %p163, %p164
    %p166 = scmp.ne.s32.totalorder %s158, %s160
    %p167 = scmp.eq.s32.totalorder %s30, 1
    %p168 = por %p166, %p167
    %p169 = scmp.ne.s32.totalorder %s160, %s161
    %p170 = scmp.eq.s32.totalorder %s30, 0
    %p171 = por %p169, %p170
    %p172 = scmp.ne.s32.totalorder %s160, %s161
    %p173 = scmp.eq.s32.totalorder %s31, 1
    %p174 = por %p172, %p173
    %p176 = scmp.ne.s32.totalorder %s161, %s175
    %p177 = scmp.eq.s32.totalorder %s31, 0
    %p178 = por %p176, %p177
    %s180 = sadd.s32 %s179, 1
    %p183 = scmp.eq.s32.totalorder %s25, 1
    %p184 = scmp.ne.s32.totalorder %s179, %s181
    %p185 = scmp.eq.s32.totalorder %s25, 0
    %p186 = por %p184, %p185
    %p187 = scmp.ne.s32.totalorder %s179, %s181
    %p188 = scmp.eq.s32.totalorder %s30, 1
    %p189 = por %p187, %p188
    %p190 = scmp.ne.s32.totalorder %s181, %s182
    %p191 = scmp.eq.s32.totalorder %s30, 0
    %p192 = por %p190, %p191
    %p193 = scmp.ne.s32.totalorder %s181, %s182
    %p194 = scmp.eq.s32.totalorder %s31, 1
    %p195 = por %p193, %p194
    %p197 = scmp.ne.s32.totalorder %s182, %s196
    %p198 = scmp.eq.s32.totalorder %s31, 0
    %p199 = por %p197, %p198
    %s201 = sadd.s32 %s200, 1
    %p204 = scmp.eq.s32.totalorder %s25, 1
    %p205 = scmp.ne.s32.totalorder %s200, %s202
    %p206 = scmp.eq.s32.totalorder %s25, 0
    %p207 = por %p205, %p206
    %p208 = scmp.ne.s32.totalorder %s200, %s202
    %p209 = scmp.eq.s32.totalorder %s30, 1
    %p210 = por %p208, %p209
    %p211 = scmp.ne.s32.totalorder %s202, %s203
    %p212 = scmp.eq.s32.totalorder %s30, 0
    %p213 = por %p211, %p212
    %p214 = scmp.ne.s32.totalorder %s202, %s203
    %p215 = scmp.eq.s32.totalorder %s31, 1
    %p216 = por %p214, %p215
    %p218 = scmp.ne.s32.totalorder %s203, %s217
    %p219 = scmp.eq.s32.totalorder %s31, 0
    %p220 = por %p218, %p219
    %s222 = sadd.s32 %s221, 1
    %p225 = scmp.eq.s32.totalorder %s25, 1
    %p226 = scmp.ne.s32.totalorder %s221, %s223
    %p227 = scmp.eq.s32.totalorder %s25, 0
    %p228 = por %p226, %p227
    %p229 = scmp.ne.s32.totalorder %s221, %s223
    %p230 = scmp.eq.s32.totalorder %s30, 1
    %p231 = por %p229, %p230
    %p232 = scmp.ne.s32.totalorder %s223, %s224
    %p233 = scmp.eq.s32.totalorder %s30, 0
    %p234 = por %p232, %p233
    %p235 = scmp.ne.s32.totalorder %s223, %s224
    %p236 = scmp.eq.s32.totalorder %s31, 1
    %p237 = por %p235, %p236
    %p239 = scmp.ne.s32.totalorder %s224, %s238
    %p240 = scmp.eq.s32.totalorder %s31, 0
    %p241 = por %p239, %p240
    %s243 = sadd.s32 %s242, 1
    %p246 = scmp.eq.s32.totalorder %s25, 1
    %p247 = scmp.ne.s32.totalorder %s242, %s244
    %p248 = scmp.eq.s32.totalorder %s25, 0
    %p249 = por %p247, %p248
    %p250 = scmp.ne.s32.totalorder %s242, %s244
    %p251 = scmp.eq.s32.totalorder %s30, 1
    %p252 = por %p250, %p251
    %p253 = scmp.ne.s32.totalorder %s244, %s245
    %p254 = scmp.eq.s32.totalorder %s30, 0
    %p255 = por %p253, %p254
    %p256 = scmp.ne.s32.totalorder %s244, %s245
    %p257 = scmp.eq.s32.totalorder %s31, 1
    %p258 = por %p256, %p257
    %p260 = scmp.ne.s32.totalorder %s245, %s259
    %p261 = scmp.eq.s32.totalorder %s31, 0
    %p262 = por %p260, %p261
    %s264 = sadd.s32 %s263, 1
    %p267 = scmp.eq.s32.totalorder %s25, 1
    %p268 = scmp.ne.s32.totalorder %s263, %s265
    %p269 = scmp.eq.s32.totalorder %s25, 0
    %p270 = por %p268, %p269
    %p271 = scmp.ne.s32.totalorder %s263, %s265
    %p272 = scmp.eq.s32.totalorder %s30, 1
    %p273 = por %p271, %p272
    %p274 = scmp.ne.s32.totalorder %s265, %s266
    %p275 = scmp.eq.s32.totalorder %s30, 0
    %p276 = por %p274, %p275
    %p277 = scmp.ne.s32.totalorder %s265, %s266
    %p278 = scmp.eq.s32.totalorder %s31, 1
    %p279 = por %p277, %p278
    %p281 = scmp.ne.s32.totalorder %s266, %s280
    %p282 = scmp.eq.s32.totalorder %s31, 0
    %p283 = por %p281, %p282
    %s285 = sadd.s32 %s284, 1
    %p288 = scmp.eq.s32.totalorder %s25, 1
    %p289 = scmp.ne.s32.totalorder %s284, %s286
    %p290 = scmp.eq.s32.totalorder %s25, 0
    %p291 = por %p289, %p290
    %p292 = scmp.ne.s32.totalorder %s284, %s286
    %p293 = scmp.eq.s32.totalorder %s30, 1
    %p294 = por %p292, %p293
    %p295 = scmp.ne.s32.totalorder %s286, %s287
    %p296 = scmp.eq.s32.totalorder %s30, 0
    %p297 = por %p295, %p296
    %p298 = scmp.ne.s32.totalorder %s286, %s287
    %p299 = scmp.eq.s32.totalorder %s31, 1
    %p300 = por %p298, %p299
    %p302 = scmp.ne.s32.totalorder %s287, %s301
    %p303 = scmp.eq.s32.totalorder %s31, 0
    %p304 = por %p302, %p303
    %s306 = sadd.s32 %s305, 1
    %p309 = scmp.eq.s32.totalorder %s25, 1
    %p310 = scmp.ne.s32.totalorder %s305, %s307
    %p311 = scmp.eq.s32.totalorder %s25, 0
    %p312 = por %p310, %p311
    %p313 = scmp.ne.s32.totalorder %s305, %s307
    %p314 = scmp.eq.s32.totalorder %s30, 1
    %p315 = por %p313, %p314
    %p316 = scmp.ne.s32.totalorder %s307, %s308
    %p317 = scmp.eq.s32.totalorder %s30, 0
    %p318 = por %p316, %p317
    %p319 = scmp.ne.s32.totalorder %s307, %s308
    %p320 = scmp.eq.s32.totalorder %s31, 1
    %p321 = por %p319, %p320
    %p323 = scmp.ne.s32.totalorder %s308, %s322
    %p324 = scmp.eq.s32.totalorder %s31, 0
    %p325 = por %p323, %p324
    %s327 = sadd.s32 %s326, 1
    %p330 = scmp.eq.s32.totalorder %s25, 1
    %p331 = scmp.ne.s32.totalorder %s326, %s328
    %p332 = scmp.eq.s32.totalorder %s25, 0
    %p333 = por %p331, %p332
    %p334 = scmp.ne.s32.totalorder %s326, %s328
    %p335 = scmp.eq.s32.totalorder %s30, 1
    %p336 = por %p334, %p335
    %p337 = scmp.ne.s32.totalorder %s328, %s329
    %p338 = scmp.eq.s32.totalorder %s30, 0
    %p339 = por %p337, %p338
    %p340 = scmp.ne.s32.totalorder %s328, %s329
    %p341 = scmp.eq.s32.totalorder %s31, 1
    %p342 = por %p340, %p341
    %p344 = scmp.ne.s32.totalorder %s329, %s343
    %p345 = scmp.eq.s32.totalorder %s31, 0
    %p346 = por %p344, %p345
    %s348 = sadd.s32 %s347, 1
    %p351 = scmp.eq.s32.totalorder %s25, 1
    %p352 = scmp.ne.s32.totalorder %s347, %s349
    %p353 = scmp.eq.s32.totalorder %s25, 0
    %p354 = por %p352, %p353
    %p355 = scmp.ne.s32.totalorder %s347, %s349
    %p356 = scmp.eq.s32.totalorder %s30, 1
    %p357 = por %p355, %p356
    %p358 = scmp.ne.s32.totalorder %s349, %s350
    %p359 = scmp.eq.s32.totalorder %s30, 0
    %p360 = por %p358, %p359
    %p361 = scmp.ne.s32.totalorder %s349, %s350
    %p362 = scmp.eq.s32.totalorder %s31, 1
    %p363 = por %p361, %p362
    %p365 = scmp.ne.s32.totalorder %s350, %s364
    %p366 = scmp.eq.s32.totalorder %s31, 0
    %p367 = por %p365, %p366
    %s369 = sadd.s32 %s368, 1
    %p372 = scmp.eq.s32.totalorder %s25, 1
    %p373 = scmp.ne.s32.totalorder %s368, %s370
    %p374 = scmp.eq.s32.totalorder %s25, 0
    %p375 = por %p373, %p374
    %p376 = scmp.ne.s32.totalorder %s368, %s370
    %p377 = scmp.eq.s32.totalorder %s30, 1
    %p378 = por %p376, %p377
    %p379 = scmp.ne.s32.totalorder %s370, %s371
    %p380 = scmp.eq.s32.totalorder %s30, 0
    %p381 = por %p379, %p380
    %p382 = scmp.ne.s32.totalorder %s370, %s371
    %p383 = scmp.eq.s32.totalorder %s31, 1
    %p384 = por %p382, %p383
    %p386 = scmp.ne.s32.totalorder %s371, %s385
    %p387 = scmp.eq.s32.totalorder %s31, 0
    %p388 = por %p386, %p387
    %s389 = ssub.s32 %s25, %s32
    %p390 = scmp.eq.s32.totalorder %s389, 0
    %s392 = sadd.s32 %s391, 1
    %s393 = scalar_select %p390, %s391, %s392
    %p396 = pneg %p390
    %p397 = scmp.eq.s32.totalorder %s25, 1
    %p398 = por %p396, %p397
    %p399 = scmp.ne.s32.totalorder %s391, %s394
    %p400 = scmp.eq.s32.totalorder %s25, 0
    %p401 = por %p399, %p400
    %p402 = scmp.ne.s32.totalorder %s391, %s394
    %p403 = scmp.eq.s32.totalorder %s30, 1
    %p404 = por %p402, %p403
    %p405 = scmp.ne.s32.totalorder %s394, %s395
    %p406 = scmp.eq.s32.totalorder %s30, 0
    %p407 = por %p405, %p406
    %p408 = scmp.ne.s32.totalorder %s394, %s395
    %p409 = scmp.eq.s32.totalorder %s31, 1
    %p410 = por %p408, %p409
    %p412 = scmp.ne.s32.totalorder %s395, %s411
    %p413 = scmp.eq.s32.totalorder %s31, 0
    %p414 = por %p412, %p413
    %s415 = ssub.s32 %s25, %s32
    %p416 = scmp.eq.s32.totalorder %s415, 0
    %s418 = sadd.s32 %s417, 1
    %s419 = scalar_select %p416, %s417, %s418
    %p422 = pneg %p416
    %p423 = scmp.eq.s32.totalorder %s25, 1
    %p424 = por %p422, %p423
    %p425 = scmp.ne.s32.totalorder %s417, %s420
    %p426 = scmp.eq.s32.totalorder %s25, 0
    %p427 = por %p425, %p426
    %p428 = scmp.ne.s32.totalorder %s417, %s420
    %p429 = scmp.eq.s32.totalorder %s30, 1
    %p430 = por %p428, %p429
    %p431 = scmp.ne.s32.totalorder %s420, %s421
    %p432 = scmp.eq.s32.totalorder %s30, 0
    %p433 = por %p431, %p432
    %p434 = scmp.ne.s32.totalorder %s420, %s421
    %p435 = scmp.eq.s32.totalorder %s31, 1
    %p436 = por %p434, %p435
    %p438 = scmp.ne.s32.totalorder %s421, %s437
    %p439 = scmp.eq.s32.totalorder %s31, 0
    %p440 = por %p438, %p439
    %s441 = ssub.s32 %s25, %s32
    %p442 = scmp.eq.s32.totalorder %s441, 0
    %s444 = sadd.s32 %s443, 1
    %s445 = scalar_select %p442, %s443, %s444
    %p448 = pneg %p442
    %p449 = scmp.eq.s32.totalorder %s25, 1
    %p450 = por %p448, %p449
    %p451 = scmp.ne.s32.totalorder %s443, %s446
    %p452 = scmp.eq.s32.totalorder %s25, 0
    %p453 = por %p451, %p452
    %p454 = scmp.ne.s32.totalorder %s443, %s446
    %p455 = scmp.eq.s32.totalorder %s30, 1
    %p456 = por %p454, %p455
    %p457 = scmp.ne.s32.totalorder %s446, %s447
    %p458 = scmp.eq.s32.totalorder %s30, 0
    %p459 = por %p457, %p458
    %p460 = scmp.ne.s32.totalorder %s446, %s447
    %p461 = scmp.eq.s32.totalorder %s31, 1
    %p462 = por %p460, %p461
    %p464 = scmp.ne.s32.totalorder %s447, %s463
    %p465 = scmp.eq.s32.totalorder %s31, 0
    %p466 = por %p464, %p465
    %p467 = scmp.le.s32.totalorder 1, %s25
    %p468 = scmp.lt.s32.totalorder %s25, 3
    %p469 = pnand %p467, %p468
    %p470 = pneg %p469
    // Predicated region
    $region9: #{decoder_layer_forward.2} parent=5 // pred_check
      _
    $region10: #{decoder_layer_forward.2} parent=5 // pred_check_branch
      %472 = sbr.rel (%p469) target = $region12
    $region11: #{decoder_layer_forward.2} parent=5 // pred_region
      %s473 = ssub.s32 %s25, 1
      // Predicated region
      $region13: #{decoder_layer_forward.2} parent=11 // pred_check
        %p474 = pneg %p150
      $region14: #{decoder_layer_forward.2} parent=11 // pred_check_branch
        %476 = sbr.rel (%p474) target = $region16
      $region15: #{decoder_layer_forward.2} parent=11 // pred_region
        _
      $region16: #{decoder_layer_forward.2} parent=11 // pred_fallthru
        _
      // Predicated region
      $region17: #{decoder_layer_forward.2} parent=11 // pred_check
        %p477 = pneg %p171
      $region18: #{decoder_layer_forward.2} parent=11 // pred_check_branch
        %479 = sbr.rel (%p477) target = $region20
      $region19: #{decoder_layer_forward.2} parent=11 // pred_region
        _
      $region20: #{decoder_layer_forward.2} parent=11 // pred_fallthru
        _
      // Predicated region
      $region21: #{decoder_layer_forward.2} parent=11 // pred_check
        %p480 = pneg %p192
      $region22: #{decoder_layer_forward.2} parent=11 // pred_check_branch
        %482 = sbr.rel (%p480) target = $region24
      $region23: #{decoder_layer_forward.2} parent=11 // pred_region
        _
      $region24: #{decoder_layer_forward.2} parent=11 // pred_fallthru
        _
      // Predicated region
      $region25: #{decoder_layer_forward.2} parent=11 // pred_check
        %p483 = pneg %p213
      $region26: #{decoder_layer_forward.2} parent=11 // pred_check_branch
        %485 = sbr.rel (%p483) target = $region28
      $region27: #{decoder_layer_forward.2} parent=11 // pred_region
        _
      $region28: #{decoder_layer_forward.2} parent=11 // pred_fallthru
        _
      // Predicated region
      $region29: #{decoder_layer_forward.2} parent=11 // pred_check
        %p486 = pneg %p234
      $region30: #{decoder_layer_forward.2} parent=11 // pred_check_branch
        %488 = sbr.rel (%p486) target = $region32
      $region31: #{decoder_layer_forward.2} parent=11 // pred_region
        _
      $region32: #{decoder_layer_forward.2} parent=11 // pred_fallthru
        _
      // Predicated region
      $region33: #{decoder_layer_forward.2} parent=11 // pred_check
        %p489 = pneg %p255
      $region34: #{decoder_layer_forward.2} parent=11 // pred_check_branch
        %491 = sbr.rel (%p489) target = $region36
      $region35: #{decoder_layer_forward.2} parent=11 // pred_region
        _
      $region36: #{decoder_layer_forward.2} parent=11 // pred_fallthru
        _
      // Predicated region
      $region37: #{decoder_layer_forward.2} parent=11 // pred_check
        %p492 = pneg %p276
      $region38: #{decoder_layer_forward.2} parent=11 // pred_check_branch
        %494 = sbr.rel (%p492) target = $region40
      $region39: #{decoder_layer_forward.2} parent=11 // pred_region
        _
      $region40: #{decoder_layer_forward.2} parent=11 // pred_fallthru
        _
      // Predicated region
      $region41: #{decoder_layer_forward.2} parent=11 // pred_check
        %p495 = pneg %p297
      $region42: #{decoder_layer_forward.2} parent=11 // pred_check_branch
        %497 = sbr.rel (%p495) target = $region44
      $region43: #{decoder_layer_forward.2} parent=11 // pred_region
        _
      $region44: #{decoder_layer_forward.2} parent=11 // pred_fallthru
        _
      // Predicated region
      $region45: #{decoder_layer_forward.2} parent=11 // pred_check
        %p498 = pneg %p318
      $region46: #{decoder_layer_forward.2} parent=11 // pred_check_branch
        %500 = sbr.rel (%p498) target = $region48
      $region47: #{decoder_layer_forward.2} parent=11 // pred_region
        _
      $region48: #{decoder_layer_forward.2} parent=11 // pred_fallthru
        _
      // Predicated region
      $region49: #{decoder_layer_forward.2} parent=11 // pred_check
        %p501 = pneg %p339
      $region50: #{decoder_layer_forward.2} parent=11 // pred_check_branch
        %503 = sbr.rel (%p501) target = $region52
      $region51: #{decoder_layer_forward.2} parent=11 // pred_region
        _
      $region52: #{decoder_layer_forward.2} parent=11 // pred_fallthru
        _
      // Predicated region
      $region53: #{decoder_layer_forward.2} parent=11 // pred_check
        %p504 = pneg %p360
      $region54: #{decoder_layer_forward.2} parent=11 // pred_check_branch
        %506 = sbr.rel (%p504) target = $region56
      $region55: #{decoder_layer_forward.2} parent=11 // pred_region
        _
      $region56: #{decoder_layer_forward.2} parent=11 // pred_fallthru
        _
      // Predicated region
      $region57: #{decoder_layer_forward.2} parent=11 // pred_check
        %p507 = pneg %p381
      $region58: #{decoder_layer_forward.2} parent=11 // pred_check_branch
        %509 = sbr.rel (%p507) target = $region60
      $region59: #{decoder_layer_forward.2} parent=11 // pred_region
        _
      $region60: #{decoder_layer_forward.2} parent=11 // pred_fallthru
        _
    $region12: #{decoder_layer_forward.2} parent=5 // pred_fallthru
      _
    %p510 = scmp.lt.s32.totalorder %s25, 2
    // Predicated region
    $region61: #{decoder_layer_forward.2} parent=5 // pred_check
      %p511 = pneg %p510
    $region62: #{decoder_layer_forward.2} parent=5 // pred_check_branch
      %513 = sbr.rel (%p511) target = $region64
    $region63: #{decoder_layer_forward.2} parent=5 // pred_region
      // Predicated region
      $region65: #{decoder_layer_forward.2} parent=63 // pred_check
        %p514 = pneg %p45
      $region66: #{decoder_layer_forward.2} parent=63 // pred_check_branch
        %516 = sbr.rel (%p514) target = $region68
      $region67: #{decoder_layer_forward.2} parent=63 // pred_region
        %p517 = scmp.lt.s32.totalorder %s25, 1
        %s518 = scalar_select %p517, %s25, 1
        %s519 = smul.addr %s518, 8
        %s520 = scalar_lea.vmem %s0, %s519
      $region68: #{decoder_layer_forward.2} parent=63 // pred_fallthru
        _
      // Predicated region
      $region69: #{decoder_layer_forward.2} parent=63 // pred_check
        %p521 = pneg %p71
      $region70: #{decoder_layer_forward.2} parent=63 // pred_check_branch
        %523 = sbr.rel (%p521) target = $region72
      $region71: #{decoder_layer_forward.2} parent=63 // pred_region
        %p524 = scmp.lt.s32.totalorder %s25, 1
        %s525 = scalar_select %p524, %s25, 1
        %s526 = smul.addr %s525, 8
        %s527 = scalar_lea.vmem %s1, %s526
      $region72: #{decoder_layer_forward.2} parent=63 // pred_fallthru
        _
      // Predicated region
      $region73: #{decoder_layer_forward.2} parent=63 // pred_check
        %p528 = pneg %p97
      $region74: #{decoder_layer_forward.2} parent=63 // pred_check_branch
        %530 = sbr.rel (%p528) target = $region76
      $region75: #{decoder_layer_forward.2} parent=63 // pred_region
        %p531 = scmp.lt.s32.totalorder %s25, 1
        %s532 = scalar_select %p531, %s25, 1
        %s533 = smul.addr %s532, 10
        %s534 = smul.addr %s533, 8
        %s535 = scalar_lea.vmem %s2, %s534
      $region76: #{decoder_layer_forward.2} parent=63 // pred_fallthru
        _
      // Predicated region
      $region77: #{decoder_layer_forward.2} parent=63 // pred_check
        %p536 = pneg %p123
      $region78: #{decoder_layer_forward.2} parent=63 // pred_check_branch
        %538 = sbr.rel (%p536) target = $region80
      $region79: #{decoder_layer_forward.2} parent=63 // pred_region
        %p539 = scmp.lt.s32.totalorder %s25, 1
        %s540 = scalar_select %p539, %s25, 1
        %s541 = smul.addr %s540, 10
        %s542 = smul.addr %s541, 8
        %s543 = scalar_lea.vmem %s3, %s542
      $region80: #{decoder_layer_forward.2} parent=63 // pred_fallthru
        _
    $region64: #{decoder_layer_forward.2} parent=5 // pred_fallthru
      _
    %p544 = scmp.le.s32.totalorder 1, %s25
    %p545 = scmp.lt.s32.totalorder %s25, 3
    %p546 = pnand %p544, %p545
    %p547 = pneg %p546
    // Predicated region
    $region81: #{decoder_layer_forward.2} parent=5 // pred_check
      _
    $region82: #{decoder_layer_forward.2} parent=5 // pred_check_branch
      %549 = sbr.rel (%p546) target = $region84
    $region83: #{decoder_layer_forward.2} parent=5 // pred_region
      %s550 = ssub.s32 %s25, 1
      %p551 = scmp.lt.s32.totalorder %s30, 1
      %s552 = scalar_select %p551, %s30, 1
      %s553 = smul.addr %s552, 8
      %s554 = scalar_lea.vmem %s0, %s553
      %p555 = pneg %p51
      %p556 = pneg %p48
      %p557 = scmp.lt.s32.totalorder %s30, 1
      %s558 = scalar_select %p557, %s30, 1
      %s559 = smul.addr %s558, 8
      %s560 = scalar_lea.vmem %s1, %s559
      %p561 = pneg %p77
      %p562 = pneg %p74
      %p563 = scmp.lt.s32.totalorder %s30, 1
      %s564 = scalar_select %p563, %s30, 1
      %s565 = smul.addr %s564, 10
      %s566 = smul.addr %s565, 8
      %s567 = scalar_lea.vmem %s2, %s566
      %p568 = pneg %p103
      %p569 = pneg %p100
      %p570 = scmp.lt.s32.totalorder %s30, 1
      %s571 = scalar_select %p570, %s30, 1
      %s572 = smul.addr %s571, 10
      %s573 = smul.addr %s572, 8
      %s574 = scalar_lea.vmem %s3, %s573
      %p575 = pneg %p129
      %p576 = pneg %p126
      %p577 = pneg %p150
      %p578 = pneg %p147
      %p579 = pneg %p171
      %p580 = pneg %p168
      %p581 = pneg %p192
      %p582 = pneg %p189
      %p583 = pneg %p213
      %p584 = pneg %p210
      %p585 = pneg %p234
      %p586 = pneg %p231
      %p587 = pneg %p255
      %p588 = pneg %p252
      %p589 = pneg %p276
      %p590 = pneg %p273
      %p591 = pneg %p297
      %p592 = pneg %p294
      %p593 = pneg %p318
      %p594 = pneg %p315
      %p595 = pneg %p339
      %p596 = pneg %p336
      %p597 = pneg %p360
      %p598 = pneg %p357
      %p599 = pneg %p381
      %p600 = pneg %p378
      %p601 = pneg %p407
      %p602 = pneg %p404
      %p603 = scmp.lt.s32.totalorder %s30, 1
      %s604 = scalar_select %p603, %s30, 1
      %s605 = smul.addr %s604, 8
      %s606 = scalar_lea.vmem %s16, %s605
      %p607 = pneg %p433
      %p608 = pneg %p430
      %p609 = scmp.lt.s32.totalorder %s30, 1
      %s610 = scalar_select %p609, %s30, 1
      %s611 = smul.addr %s610, 8
      %s612 = scalar_lea.vmem %s17, %s611
      %p613 = pneg %p459
      %p614 = pneg %p456
      %p615 = scmp.lt.s32.totalorder %s30, 1
      %s616 = scalar_select %p615, %s30, 1
      %s617 = smul.addr %s616, 10
      %s618 = smul.addr %s617, 8
      %s619 = scalar_lea.vmem %s18, %s618
      %p620 = scmp.lt.s32.totalorder %s30, 1
      %s621 = scalar_select %p620, %s30, 1
      %s622 = smul.addr %s621, 8
      %s623 = scalar_lea.vmem %s0, %s622
      %p624 = scmp.lt.s32.totalorder %s30, 1
      %s625 = scalar_select %p624, %s30, 1
      %s626 = smul.addr %s625, 8
      %s627 = scalar_lea.vmem %s1, %s626
      %p628 = scmp.lt.s32.totalorder %s30, 1
      %s629 = scalar_select %p628, %s30, 1
      %s630 = smul.addr %s629, 10
      %s631 = smul.addr %s630, 8
      %s632 = scalar_lea.vmem %s2, %s631
      %p633 = scmp.lt.s32.totalorder %s30, 1
      %s634 = scalar_select %p633, %s30, 1
      %s635 = smul.addr %s634, 10
      %s636 = smul.addr %s635, 8
      %s637 = scalar_lea.vmem %s3, %s636
      %p638 = scmp.lt.s32.totalorder %s30, 1
      %s639 = scalar_select %p638, %s30, 1
      %s640 = smul.addr %s639, 8
      %s641 = scalar_lea.vmem %s16, %s640
      %p642 = scmp.lt.s32.totalorder %s30, 1
      %s643 = scalar_select %p642, %s30, 1
      %s644 = smul.addr %s643, 8
      %s645 = scalar_lea.vmem %s17, %s644
      %p646 = scmp.lt.s32.totalorder %s30, 1
      %s647 = scalar_select %p646, %s30, 1
      %s648 = smul.addr %s647, 10
      %s649 = smul.addr %s648, 8
      %s650 = scalar_lea.vmem %s18, %s649
      %v652 = vld [vmem:[%s623] sm:$0xff]
      %v653 = vld [vmem:[%s627] sm:$0xff]
      %v654 = vadd.f32 %v652, %v653
      %v655 = vpack.c.bf16 %v654, %v654
      %v656 = vld [vmem:[%s4] sm:$0xf]
      %v657 = vld [vmem:[%s4 + $0x4] sm:$0xf]
      %v658 = vld [vmem:[%s4 + $0x8] sm:$0xf]
      %v659 = vld [vmem:[%s4 + $0xc] sm:$0xf]
      %v660 = vld [vmem:[%s5] sm:$0x1]
      %v662 = vlaneseq
      %v663 = vshrl.u32 %v662, 7
      %v664 = vsub.s32 0, %v663
      %v665 = vrot.slane %v660, %v664
      %v671 = vunpack.c.l.b16 %v656
      %v672 = vunpack.c.l.b16 %v657
      %v673 = vunpack.c.l.b16 %v658
      %v674 = vunpack.c.l.b16 %v659
      %v675 = vpack.c.b16 %v672, %v671
      %v676 = vpack.c.b16 %v674, %v673
      %vm679 = vcmask 261120
      %v681 = vsel %vm679, %v655, 0
      %683 = vmatprep.subr.bf16.mxu0 0
      %684 = vmatpush1.bf16.msra.mxu0 0
      %685 = vmatprep.subr.bf16.mxu0 0
      %686 = vmatpush1.bf16.msra.mxu0 0
      %687 = vmatprep.subr.bf16.mxu0 0
      %688 = vmatpush1.bf16.msra.mxu0 0
      %689 = vmatprep.subr.bf16.mxu0 0
      %690 = vmatpush1.bf16.msra.mxu0 0
      %691 = vmatprep.subr.bf16.mxu0 0
      %692 = vmatpush1.bf16.msra.mxu0 0
      %693 = vmatprep.subr.bf16.mxu0 0
      %694 = vmatpush1.bf16.msra.mxu0 0
      %695 = vmatprep.subr.bf16.mxu0 0
      %696 = vmatpush1.bf16.msra.mxu0 %v676
      %697 = vmatprep.subr.bf16.mxu0 0
      %698 = vmatpush1.bf16.msra.mxu0 %v675
      %699 = vmatprep.subr.bf16.mxu0 0
      %700 = vmatpush2.bf16.msra.mxu0 0
      %701 = vmatprep.subr.bf16.mxu0 0
      %702 = vmatpush2.bf16.msra.mxu0 0
      %703 = vmatprep.subr.bf16.mxu0 0
      %704 = vmatpush2.bf16.msra.mxu0 0
      %705 = vmatprep.subr.bf16.mxu0 0
      %706 = vmatpush2.bf16.msra.mxu0 0
      %707 = vmatprep.subr.bf16.mxu0 0
      %708 = vmatpush2.bf16.msra.mxu0 0
      %709 = vmatprep.subr.bf16.mxu0 0
      %710 = vmatpush2.bf16.msra.mxu0 0
      %711 = vmatprep.subr.bf16.mxu0 0
      %712 = vmatpush2.bf16.msra.mxu0 0
      %713 = vmatprep.subr.bf16.mxu0 0
      %714 = vmatpush2.bf16.msra.mxu0 0
      %715 = vmatprep.mubr.bf16.mxu0 0
      %716 = vmatmul.mubr.bf16.gmra.mxu0 %v681
      %v717 = vpop.f32.mrf.mxu0
      %v718 = vadd.f32 %v665, %v717
      %v719 = vpop.f32.mrf.mxu0
      %v720 = vpop.f32.mrf.mxu0
      %v721 = vpop.f32.mrf.mxu0
      %722 = vdwg.mxu0
      %v723 = vpack.c.bf16 %v718, %v718
      %v724 = vpack.c.bf16 %v652, %v652
      %v725 = vld [vmem:[%s6] sm:$0xf]
      %v726 = vld [vmem:[%s6 + $0x4] sm:$0xf]
      %v727 = vld [vmem:[%s6 + $0x8] sm:$0xf]
      %v728 = vld [vmem:[%s6 + $0xc] sm:$0xf]
      %v729 = vld [vmem:[%s7] sm:$0x1]
      %v731 = vlaneseq
      %v732 = vshrl.u32 %v731, 7
      %v733 = vsub.s32 0, %v732
      %v734 = vrot.slane %v729, %v733
      %v740 = vunpack.c.l.b16 %v725
      %v741 = vunpack.c.l.b16 %v726
      %v742 = vunpack.c.l.b16 %v727
      %v743 = vunpack.c.l.b16 %v728
      %v744 = vpack.c.b16 %v741, %v740
      %v745 = vpack.c.b16 %v743, %v742
      %v749 = vsel %vm679, %v724, 0
      %751 = vmatprep.subr.bf16.mxu0 0
      %752 = vmatpush1.bf16.msra.mxu0 0
      %753 = vmatprep.subr.bf16.mxu0 0
      %754 = vmatpush1.bf16.msra.mxu0 0
      %755 = vmatprep.subr.bf16.mxu0 0
      %756 = vmatpush1.bf16.msra.mxu0 0
      %757 = vmatprep.subr.bf16.mxu0 0
      %758 = vmatpush1.bf16.msra.mxu0 0
      %759 = vmatprep.subr.bf16.mxu0 0
      %760 = vmatpush1.bf16.msra.mxu0 0
      %761 = vmatprep.subr.bf16.mxu0 0
      %762 = vmatpush1.bf16.msra.mxu0 0
      %763 = vmatprep.subr.bf16.mxu0 0
      %764 = vmatpush1.bf16.msra.mxu0 %v745
      %765 = vmatprep.subr.bf16.mxu0 0
      %766 = vmatpush1.bf16.msra.mxu0 %v744
      %767 = vmatprep.subr.bf16.mxu0 0
      %768 = vmatpush2.bf16.msra.mxu0 0
      %769 = vmatprep.subr.bf16.mxu0 0
      %770 = vmatpush2.bf16.msra.mxu0 0
      %771 = vmatprep.subr.bf16.mxu0 0
      %772 = vmatpush2.bf16.msra.mxu0 0
      %773 = vmatprep.subr.bf16.mxu0 0
      %774 = vmatpush2.bf16.msra.mxu0 0
      %775 = vmatprep.subr.bf16.mxu0 0
      %776 = vmatpush2.bf16.msra.mxu0 0
      %777 = vmatprep.subr.bf16.mxu0 0
      %778 = vmatpush2.bf16.msra.mxu0 0
      %779 = vmatprep.subr.bf16.mxu0 0
      %780 = vmatpush2.bf16.msra.mxu0 0
      %781 = vmatprep.subr.bf16.mxu0 0
      %782 = vmatpush2.bf16.msra.mxu0 0
      %783 = vmatprep.mubr.bf16.mxu0 0
      %784 = vmatmul.mubr.bf16.gmra.mxu0 %v749
      %v785 = vpop.f32.mrf.mxu0
      %v786 = vadd.f32 %v734, %v785
      %v787 = vpop.f32.mrf.mxu0
      %v788 = vpop.f32.mrf.mxu0
      %v789 = vpop.f32.mrf.mxu0
      %790 = vdwg.mxu0
      %v791 = vpack.c.bf16 %v786, %v786
      %793 = vrot.lane.b32.xlu0 %v723, 96
      %v794 = vpop.permute.xlu0 %793
      %vm795 = vcmask 64512
      %v797 = vsel %vm795, %v723, 0
      %v800 = vsel %vm795, %v794, 0
      %802 = vmatprep.subr.bf16.mxu0 0
      %803 = vmatpush1.bf16.xpose.msra.mxu0 0
      %804 = vmatprep.subr.bf16.mxu0 0
      %805 = vmatpush1.bf16.xpose.msra.mxu0 0
      %806 = vmatprep.subr.bf16.mxu0 0
      %807 = vmatpush1.bf16.xpose.msra.mxu0 0
      %808 = vmatprep.subr.bf16.mxu0 0
      %809 = vmatpush1.bf16.xpose.msra.mxu0 0
      %810 = vmatprep.subr.bf16.mxu0 0
      %811 = vmatpush1.bf16.xpose.msra.mxu0 0
      %812 = vmatprep.subr.bf16.mxu0 0
      %813 = vmatpush1.bf16.xpose.msra.mxu0 0
      %814 = vmatprep.subr.bf16.mxu0 0
      %815 = vmatpush1.bf16.xpose.msra.mxu0 0
      %816 = vmatprep.subr.bf16.mxu0 0
      %817 = vmatpush1.bf16.xpose.msra.mxu0 %v800
      %818 = vmatprep.subr.bf16.mxu0 0
      %819 = vmatpush2.bf16.xpose.msra.mxu0 0
      %820 = vmatprep.subr.bf16.mxu0 0
      %821 = vmatpush2.bf16.xpose.msra.mxu0 0
      %822 = vmatprep.subr.bf16.mxu0 0
      %823 = vmatpush2.bf16.xpose.msra.mxu0 0
      %824 = vmatprep.subr.bf16.mxu0 0
      %825 = vmatpush2.bf16.xpose.msra.mxu0 0
      %826 = vmatprep.subr.bf16.mxu0 0
      %827 = vmatpush2.bf16.xpose.msra.mxu0 0
      %828 = vmatprep.subr.bf16.mxu0 0
      %829 = vmatpush2.bf16.xpose.msra.mxu0 0
      %830 = vmatprep.subr.bf16.mxu0 0
      %831 = vmatpush2.bf16.xpose.msra.mxu0 0
      %832 = vmatprep.subr.bf16.mxu0 0
      %833 = vmatpush2.bf16.xpose.msra.mxu0 0
      %834 = vmatprep.mubr.bf16.mxu0 0
      %835 = vmatmul.mubr.bf16.gmra.mxu0 %v797
      %v836 = vpop.f32.mrf.mxu0
      %v837 = vadd.f32 0.0, %v836
      %v838 = vpop.f32.mrf.mxu0
      %v839 = vpop.f32.mrf.mxu0
      %v840 = vpop.f32.mrf.mxu0
      %841 = vdwg.mxu0
      %v842 = vmul.f32 %v837, 0.35355338
      %v843 = vsel %vm795, %v842, -inf
      %844 = vmax.xlane.f32.xlu0 %v843
      %v845 = vpop.xlane.xlu0 %844
      %v846 = vsub.f32 %v842, %v845
      %v847 = vmul.f32 %v846, 1.442695
      %v848 = vpow.pop %v847
      %v849 = vsel %vm795, %v848, 0.0
      %850 = vadd.xlane.f32.xlu0 %v849
      %v851 = vpop.xlane.xlu0 %850
      %v852 = vrcp.pop %v851
      %v853 = vmul.f32 %v848, %v852
      %v854 = vpack.c.bf16 %v853, %v853
      %v856 = vsel %vm795, %v854, 0
      %vm858 = vcmask 1043456
      %v860 = vsel %vm858, %v791, 0
      %862 = vmatprep.subr.bf16.mxu0 0
      %863 = vmatpush1.bf16.msra.mxu0 0
      %864 = vmatprep.subr.bf16.mxu0 0
      %865 = vmatpush1.bf16.msra.mxu0 0
      %866 = vmatprep.subr.bf16.mxu0 0
      %867 = vmatpush1.bf16.msra.mxu0 0
      %868 = vmatprep.subr.bf16.mxu0 0
      %869 = vmatpush1.bf16.msra.mxu0 0
      %870 = vmatprep.subr.bf16.mxu0 0
      %871 = vmatpush1.bf16.msra.mxu0 0
      %872 = vmatprep.subr.bf16.mxu0 0
      %873 = vmatpush1.bf16.msra.mxu0 0
      %874 = vmatprep.subr.bf16.mxu0 0
      %875 = vmatpush1.bf16.msra.mxu0 0
      %876 = vmatprep.subr.bf16.mxu0 0
      %877 = vmatpush1.bf16.msra.mxu0 %v860
      %878 = vmatprep.subr.bf16.mxu0 0
      %879 = vmatpush2.bf16.msra.mxu0 0
      %880 = vmatprep.subr.bf16.mxu0 0
      %881 = vmatpush2.bf16.msra.mxu0 0
      %882 = vmatprep.subr.bf16.mxu0 0
      %883 = vmatpush2.bf16.msra.mxu0 0
      %884 = vmatprep.subr.bf16.mxu0 0
      %885 = vmatpush2.bf16.msra.mxu0 0
      %886 = vmatprep.subr.bf16.mxu0 0
      %887 = vmatpush2.bf16.msra.mxu0 0
      %888 = vmatprep.subr.bf16.mxu0 0
      %889 = vmatpush2.bf16.msra.mxu0 0
      %890 = vmatprep.subr.bf16.mxu0 0
      %891 = vmatpush2.bf16.msra.mxu0 0
      %892 = vmatprep.subr.bf16.mxu0 0
      %893 = vmatpush2.bf16.msra.mxu0 0
      %894 = vmatprep.mubr.bf16.mxu0 0
      %895 = vmatmul.mubr.bf16.gmra.mxu0 %v856
      %v896 = vpop.f32.mrf.mxu0
      %v897 = vadd.f32 0.0, %v896
      %v898 = vpop.f32.mrf.mxu0
      %v899 = vpop.f32.mrf.mxu0
      %v900 = vpop.f32.mrf.mxu0
      %901 = vdwg.mxu0
      %v902 = vpack.c.bf16 %v897, %v897
      %v903 = vld [vmem:[%s8] sm:$0xf]
      %904 = vrot.lane.b32.xlu0 %v723, 120
      %v905 = vpop.permute.xlu0 %904
      %906 = vrot.lane.b32.xlu0 %v723, 88
      %v907 = vpop.permute.xlu0 %906
      %v909 = vsel %vm795, %v905, 0
      %v912 = vsel %vm795, %v907, 0
      %914 = vmatprep.subr.bf16.mxu0 0
      %915 = vmatpush1.bf16.xpose.msra.mxu0 0
      %916 = vmatprep.subr.bf16.mxu0 0
      %917 = vmatpush1.bf16.xpose.msra.mxu0 0
      %918 = vmatprep.subr.bf16.mxu0 0
      %919 = vmatpush1.bf16.xpose.msra.mxu0 0
      %920 = vmatprep.subr.bf16.mxu0 0
      %921 = vmatpush1.bf16.xpose.msra.mxu0 0
      %922 = vmatprep.subr.bf16.mxu0 0
      %923 = vmatpush1.bf16.xpose.msra.mxu0 0
      %924 = vmatprep.subr.bf16.mxu0 0
      %925 = vmatpush1.bf16.xpose.msra.mxu0 0
      %926 = vmatprep.subr.bf16.mxu0 0
      %927 = vmatpush1.bf16.xpose.msra.mxu0 0
      %928 = vmatprep.subr.bf16.mxu0 0
      %929 = vmatpush1.bf16.xpose.msra.mxu0 %v912
      %930 = vmatprep.subr.bf16.mxu0 0
      %931 = vmatpush2.bf16.xpose.msra.mxu0 0
      %932 = vmatprep.subr.bf16.mxu0 0
      %933 = vmatpush2.bf16.xpose.msra.mxu0 0
      %934 = vmatprep.subr.bf16.mxu0 0
      %935 = vmatpush2.bf16.xpose.msra.mxu0 0
      %936 = vmatprep.subr.bf16.mxu0 0
      %937 = vmatpush2.bf16.xpose.msra.mxu0 0
      %938 = vmatprep.subr.bf16.mxu0 0
      %939 = vmatpush2.bf16.xpose.msra.mxu0 0
      %940 = vmatprep.subr.bf16.mxu0 0
      %941 = vmatpush2.bf16.xpose.msra.mxu0 0
      %942 = vmatprep.subr.bf16.mxu0 0
      %943 = vmatpush2.bf16.xpose.msra.mxu0 0
      %944 = vmatprep.subr.bf16.mxu0 0
      %945 = vmatpush2.bf16.xpose.msra.mxu0 0
      %946 = vmatprep.mubr.bf16.mxu0 0
      %947 = vmatmul.mubr.bf16.gmra.mxu0 %v909
      %v948 = vpop.f32.mrf.mxu0
      %v949 = vadd.f32 0.0, %v948
      %v950 = vpop.f32.mrf.mxu0
      %v951 = vpop.f32.mrf.mxu0
      %v952 = vpop.f32.mrf.mxu0
      %953 = vdwg.mxu0
      %v954 = vmul.f32 %v949, 0.35355338
      %v955 = vsel %vm795, %v954, -inf
      %956 = vmax.xlane.f32.xlu0 %v955
      %v957 = vpop.xlane.xlu0 %956
      %v958 = vsub.f32 %v954, %v957
      %v959 = vmul.f32 %v958, 1.442695
      %v960 = vpow.pop %v959
      %v961 = vsel %vm795, %v960, 0.0
      %962 = vadd.xlane.f32.xlu0 %v961
      %v963 = vpop.xlane.xlu0 %962
      %v964 = vrcp.pop %v963
      %v965 = vmul.f32 %v960, %v964
      %v966 = vpack.c.bf16 %v965, %v965
      %968 = vrot.lane.b32.xlu0 %v791, 120
      %v969 = vpop.permute.xlu0 %968
      %v971 = vsel %vm795, %v966, 0
      %v974 = vsel %vm858, %v969, 0
      %976 = vmatprep.subr.bf16.mxu0 0
      %977 = vmatpush1.bf16.msra.mxu0 0
      %978 = vmatprep.subr.bf16.mxu0 0
      %979 = vmatpush1.bf16.msra.mxu0 0
      %980 = vmatprep.subr.bf16.mxu0 0
      %981 = vmatpush1.bf16.msra.mxu0 0
      %982 = vmatprep.subr.bf16.mxu0 0
      %983 = vmatpush1.bf16.msra.mxu0 0
      %984 = vmatprep.subr.bf16.mxu0 0
      %985 = vmatpush1.bf16.msra.mxu0 0
      %986 = vmatprep.subr.bf16.mxu0 0
      %987 = vmatpush1.bf16.msra.mxu0 0
      %988 = vmatprep.subr.bf16.mxu0 0
      %989 = vmatpush1.bf16.msra.mxu0 0
      %990 = vmatprep.subr.bf16.mxu0 0
      %991 = vmatpush1.bf16.msra.mxu0 %v974
      %992 = vmatprep.subr.bf16.mxu0 0
      %993 = vmatpush2.bf16.msra.mxu0 0
      %994 = vmatprep.subr.bf16.mxu0 0
      %995 = vmatpush2.bf16.msra.mxu0 0
      %996 = vmatprep.subr.bf16.mxu0 0
      %997 = vmatpush2.bf16.msra.mxu0 0
      %998 = vmatprep.subr.bf16.mxu0 0
      %999 = vmatpush2.bf16.msra.mxu0 0
      %1000 = vmatprep.subr.bf16.mxu0 0
      %1001 = vmatpush2.bf16.msra.mxu0 0
      %1002 = vmatprep.subr.bf16.mxu0 0
      %1003 = vmatpush2.bf16.msra.mxu0 0
      %1004 = vmatprep.subr.bf16.mxu0 0
      %1005 = vmatpush2.bf16.msra.mxu0 0
      %1006 = vmatprep.subr.bf16.mxu0 0
      %1007 = vmatpush2.bf16.msra.mxu0 0
      %1008 = vmatprep.mubr.bf16.mxu0 0
      %1009 = vmatmul.mubr.bf16.gmra.mxu0 %v971
      %v1010 = vpop.f32.mrf.mxu0
      %v1011 = vadd.f32 0.0, %v1010
      %v1012 = vpop.f32.mrf.mxu0
      %v1013 = vpop.f32.mrf.mxu0
      %v1014 = vpop.f32.mrf.mxu0
      %1015 = vdwg.mxu0
      %v1016 = vpack.c.bf16 %v1011, %v1011
      %v1017 = vld [vmem:[%s8 + $0x4] sm:$0xf]
      %v1019 = vsel %vm795, %v1016, 0
      %v1022 = vsel %vm858, %v1017, 0
      %1024 = vmatprep.subr.bf16.mxu0 0
      %1025 = vmatpush1.bf16.msra.mxu0 0
      %1026 = vmatprep.subr.bf16.mxu0 0
      %1027 = vmatpush1.bf16.msra.mxu0 0
      %1028 = vmatprep.subr.bf16.mxu0 0
      %1029 = vmatpush1.bf16.msra.mxu0 0
      %1030 = vmatprep.subr.bf16.mxu0 0
      %1031 = vmatpush1.bf16.msra.mxu0 0
      %1032 = vmatprep.subr.bf16.mxu0 0
      %1033 = vmatpush1.bf16.msra.mxu0 0
      %1034 = vmatprep.subr.bf16.mxu0 0
      %1035 = vmatpush1.bf16.msra.mxu0 0
      %1036 = vmatprep.subr.bf16.mxu0 0
      %1037 = vmatpush1.bf16.msra.mxu0 0
      %1038 = vmatprep.subr.bf16.mxu0 0
      %1039 = vmatpush1.bf16.msra.mxu0 %v1022
      %1040 = vmatprep.subr.bf16.mxu0 0
      %1041 = vmatpush2.bf16.msra.mxu0 0
      %1042 = vmatprep.subr.bf16.mxu0 0
      %1043 = vmatpush2.bf16.msra.mxu0 0
      %1044 = vmatprep.subr.bf16.mxu0 0
      %1045 = vmatpush2.bf16.msra.mxu0 0
      %1046 = vmatprep.subr.bf16.mxu0 0
      %1047 = vmatpush2.bf16.msra.mxu0 0
      %1048 = vmatprep.subr.bf16.mxu0 0
      %1049 = vmatpush2.bf16.msra.mxu0 0
      %1050 = vmatprep.subr.bf16.mxu0 0
      %1051 = vmatpush2.bf16.msra.mxu0 0
      %1052 = vmatprep.subr.bf16.mxu0 0
      %1053 = vmatpush2.bf16.msra.mxu0 0
      %1054 = vmatprep.subr.bf16.mxu0 0
      %1055 = vmatpush2.bf16.msra.mxu0 0
      %1056 = vmatprep.mubr.bf16.mxu0 0
      %1057 = vmatmul.mubr.bf16.gmra.mxu0 %v1019
      %v1058 = vpop.f32.mrf.mxu0
      %v1059 = vadd.f32 0.0, %v1058
      %v1060 = vpop.f32.mrf.mxu0
      %v1061 = vpop.f32.mrf.mxu0
      %v1062 = vpop.f32.mrf.mxu0
      %1063 = vdwg.mxu0
      %v1065 = vsel %vm795, %v902, 0
      %v1068 = vsel %vm858, %v903, 0
      %1070 = vmatprep.subr.bf16.mxu0 0
      %1071 = vmatpush1.bf16.msra.mxu0 0
      %1072 = vmatprep.subr.bf16.mxu0 0
      %1073 = vmatpush1.bf16.msra.mxu0 0
      %1074 = vmatprep.subr.bf16.mxu0 0
      %1075 = vmatpush1.bf16.msra.mxu0 0
      %1076 = vmatprep.subr.bf16.mxu0 0
      %1077 = vmatpush1.bf16.msra.mxu0 0
      %1078 = vmatprep.subr.bf16.mxu0 0
      %1079 = vmatpush1.bf16.msra.mxu0 0
      %1080 = vmatprep.subr.bf16.mxu0 0
      %1081 = vmatpush1.bf16.msra.mxu0 0
      %1082 = vmatprep.subr.bf16.mxu0 0
      %1083 = vmatpush1.bf16.msra.mxu0 0
      %1084 = vmatprep.subr.bf16.mxu0 0
      %1085 = vmatpush1.bf16.msra.mxu0 %v1068
      %1086 = vmatprep.subr.bf16.mxu0 0
      %1087 = vmatpush2.bf16.msra.mxu0 0
      %1088 = vmatprep.subr.bf16.mxu0 0
      %1089 = vmatpush2.bf16.msra.mxu0 0
      %1090 = vmatprep.subr.bf16.mxu0 0
      %1091 = vmatpush2.bf16.msra.mxu0 0
      %1092 = vmatprep.subr.bf16.mxu0 0
      %1093 = vmatpush2.bf16.msra.mxu0 0
      %1094 = vmatprep.subr.bf16.mxu0 0
      %1095 = vmatpush2.bf16.msra.mxu0 0
      %1096 = vmatprep.subr.bf16.mxu0 0
      %1097 = vmatpush2.bf16.msra.mxu0 0
      %1098 = vmatprep.subr.bf16.mxu0 0
      %1099 = vmatpush2.bf16.msra.mxu0 0
      %1100 = vmatprep.subr.bf16.mxu0 0
      %1101 = vmatpush2.bf16.msra.mxu0 0
      %1102 = vmatprep.mubr.bf16.mxu0 0
      %1103 = vmatmul.mubr.bf16.gmra.mxu0 %v1065
      %v1104 = vpop.f32.mrf.mxu0
      %v1105 = vadd.f32 %v1059, %v1104
      %v1106 = vpop.f32.mrf.mxu0
      %v1107 = vpop.f32.mrf.mxu0
      %v1108 = vpop.f32.mrf.mxu0
      %1109 = vdwg.mxu0
      %1110 = vrot.lane.b32.xlu0 %v723, 112
      %v1111 = vpop.permute.xlu0 %1110
      %1112 = vrot.lane.b32.xlu0 %v723, 80
      %v1113 = vpop.permute.xlu0 %1112
      %v1115 = vsel %vm795, %v1111, 0
      %v1118 = vsel %vm795, %v1113, 0
      %1120 = vmatprep.subr.bf16.mxu0 0
      %1121 = vmatpush1.bf16.xpose.msra.mxu0 0
      %1122 = vmatprep.subr.bf16.mxu0 0
      %1123 = vmatpush1.bf16.xpose.msra.mxu0 0
      %1124 = vmatprep.subr.bf16.mxu0 0
      %1125 = vmatpush1.bf16.xpose.msra.mxu0 0
      %1126 = vmatprep.subr.bf16.mxu0 0
      %1127 = vmatpush1.bf16.xpose.msra.mxu0 0
      %1128 = vmatprep.subr.bf16.mxu0 0
      %1129 = vmatpush1.bf16.xpose.msra.mxu0 0
      %1130 = vmatprep.subr.bf16.mxu0 0
      %1131 = vmatpush1.bf16.xpose.msra.mxu0 0
      %1132 = vmatprep.subr.bf16.mxu0 0
      %1133 = vmatpush1.bf16.xpose.msra.mxu0 0
      %1134 = vmatprep.subr.bf16.mxu0 0
      %1135 = vmatpush1.bf16.xpose.msra.mxu0 %v1118
      %1136 = vmatprep.subr.bf16.mxu0 0
      %1137 = vmatpush2.bf16.xpose.msra.mxu0 0
      %1138 = vmatprep.subr.bf16.mxu0 0
      %1139 = vmatpush2.bf16.xpose.msra.mxu0 0
      %1140 = vmatprep.subr.bf16.mxu0 0
      %1141 = vmatpush2.bf16.xpose.msra.mxu0 0
      %1142 = vmatprep.subr.bf16.mxu0 0
      %1143 = vmatpush2.bf16.xpose.msra.mxu0 0
      %1144 = vmatprep.subr.bf16.mxu0 0
      %1145 = vmatpush2.bf16.xpose.msra.mxu0 0
      %1146 = vmatprep.subr.bf16.mxu0 0
      %1147 = vmatpush2.bf16.xpose.msra.mxu0 0
      %1148 = vmatprep.subr.bf16.mxu0 0
      %1149 = vmatpush2.bf16.xpose.msra.mxu0 0
      %1150 = vmatprep.subr.bf16.mxu0 0
      %1151 = vmatpush2.bf16.xpose.msra.mxu0 0
      %1152 = vmatprep.mubr.bf16.mxu0 0
      %1153 = vmatmul.mubr.bf16.gmra.mxu0 %v1115
      %v1154 = vpop.f32.mrf.mxu0
      %v1155 = vadd.f32 0.0, %v1154
      %v1156 = vpop.f32.mrf.mxu0
      %v1157 = vpop.f32.mrf.mxu0
      %v1158 = vpop.f32.mrf.mxu0
      %1159 = vdwg.mxu0
      %v1160 = vmul.f32 %v1155, 0.35355338
      %v1161 = vsel %vm795, %v1160, -inf
      %1162 = vmax.xlane.f32.xlu0 %v1161
      %v1163 = vpop.xlane.xlu0 %1162
      %v1164 = vsub.f32 %v1160, %v1163
      %v1165 = vmul.f32 %v1164, 1.442695
      %v1166 = vpow.pop %v1165
      %v1167 = vsel %vm795, %v1166, 0.0
      %1168 = vadd.xlane.f32.xlu0 %v1167
      %v1169 = vpop.xlane.xlu0 %1168
      %v1170 = vrcp.pop %v1169
      %v1171 = vmul.f32 %v1166, %v1170
      %v1172 = vpack.c.bf16 %v1171, %v1171
      %1173 = vrot.lane.b32.xlu0 %v791, 112
      %v1174 = vpop.permute.xlu0 %1173
      %v1176 = vsel %vm795, %v1172, 0
      %v1179 = vsel %vm858, %v1174, 0
      %1181 = vmatprep.subr.bf16.mxu0 0
      %1182 = vmatpush1.bf16.msra.mxu0 0
      %1183 = vmatprep.subr.bf16.mxu0 0
      %1184 = vmatpush1.bf16.msra.mxu0 0
      %1185 = vmatprep.subr.bf16.mxu0 0
      %1186 = vmatpush1.bf16.msra.mxu0 0
      %1187 = vmatprep.subr.bf16.mxu0 0
      %1188 = vmatpush1.bf16.msra.mxu0 0
      %1189 = vmatprep.subr.bf16.mxu0 0
      %1190 = vmatpush1.bf16.msra.mxu0 0
      %1191 = vmatprep.subr.bf16.mxu0 0
      %1192 = vmatpush1.bf16.msra.mxu0 0
      %1193 = vmatprep.subr.bf16.mxu0 0
      %1194 = vmatpush1.bf16.msra.mxu0 0
      %1195 = vmatprep.subr.bf16.mxu0 0
      %1196 = vmatpush1.bf16.msra.mxu0 %v1179
      %1197 = vmatprep.subr.bf16.mxu0 0
      %1198 = vmatpush2.bf16.msra.mxu0 0
      %1199 = vmatprep.subr.bf16.mxu0 0
      %1200 = vmatpush2.bf16.msra.mxu0 0
      %1201 = vmatprep.subr.bf16.mxu0 0
      %1202 = vmatpush2.bf16.msra.mxu0 0
      %1203 = vmatprep.subr.bf16.mxu0 0
      %1204 = vmatpush2.bf16.msra.mxu0 0
      %1205 = vmatprep.subr.bf16.mxu0 0
      %1206 = vmatpush2.bf16.msra.mxu0 0
      %1207 = vmatprep.subr.bf16.mxu0 0
      %1208 = vmatpush2.bf16.msra.mxu0 0
      %1209 = vmatprep.subr.bf16.mxu0 0
      %1210 = vmatpush2.bf16.msra.mxu0 0
      %1211 = vmatprep.subr.bf16.mxu0 0
      %1212 = vmatpush2.bf16.msra.mxu0 0
      %1213 = vmatprep.mubr.bf16.mxu0 0
      %1214 = vmatmul.mubr.bf16.gmra.mxu0 %v1176
      %v1215 = vpop.f32.mrf.mxu0
      %v1216 = vadd.f32 0.0, %v1215
      %v1217 = vpop.f32.mrf.mxu0
      %v1218 = vpop.f32.mrf.mxu0
      %v1219 = vpop.f32.mrf.mxu0
      %1220 = vdwg.mxu0
      %v1221 = vpack.c.bf16 %v1216, %v1216
      %v1222 = vld [vmem:[%s8 + $0x8] sm:$0xf]
      %v1224 = vsel %vm795, %v1221, 0
      %v1227 = vsel %vm858, %v1222, 0
      %1229 = vmatprep.subr.bf16.mxu0 0
      %1230 = vmatpush1.bf16.msra.mxu0 0
      %1231 = vmatprep.subr.bf16.mxu0 0
      %1232 = vmatpush1.bf16.msra.mxu0 0
      %1233 = vmatprep.subr.bf16.mxu0 0
      %1234 = vmatpush1.bf16.msra.mxu0 0
      %1235 = vmatprep.subr.bf16.mxu0 0
      %1236 = vmatpush1.bf16.msra.mxu0 0
      %1237 = vmatprep.subr.bf16.mxu0 0
      %1238 = vmatpush1.bf16.msra.mxu0 0
      %1239 = vmatprep.subr.bf16.mxu0 0
      %1240 = vmatpush1.bf16.msra.mxu0 0
      %1241 = vmatprep.subr.bf16.mxu0 0
      %1242 = vmatpush1.bf16.msra.mxu0 0
      %1243 = vmatprep.subr.bf16.mxu0 0
      %1244 = vmatpush1.bf16.msra.mxu0 %v1227
      %1245 = vmatprep.subr.bf16.mxu0 0
      %1246 = vmatpush2.bf16.msra.mxu0 0
      %1247 = vmatprep.subr.bf16.mxu0 0
      %1248 = vmatpush2.bf16.msra.mxu0 0
      %1249 = vmatprep.subr.bf16.mxu0 0
      %1250 = vmatpush2.bf16.msra.mxu0 0
      %1251 = vmatprep.subr.bf16.mxu0 0
      %1252 = vmatpush2.bf16.msra.mxu0 0
      %1253 = vmatprep.subr.bf16.mxu0 0
      %1254 = vmatpush2.bf16.msra.mxu0 0
      %1255 = vmatprep.subr.bf16.mxu0 0
      %1256 = vmatpush2.bf16.msra.mxu0 0
      %1257 = vmatprep.subr.bf16.mxu0 0
      %1258 = vmatpush2.bf16.msra.mxu0 0
      %1259 = vmatprep.subr.bf16.mxu0 0
      %1260 = vmatpush2.bf16.msra.mxu0 0
      %1261 = vmatprep.mubr.bf16.mxu0 0
      %1262 = vmatmul.mubr.bf16.gmra.mxu0 %v1224
      %v1263 = vpop.f32.mrf.mxu0
      %v1264 = vadd.f32 0.0, %v1263
      %v1265 = vpop.f32.mrf.mxu0
      %v1266 = vpop.f32.mrf.mxu0
      %v1267 = vpop.f32.mrf.mxu0
      %1268 = vdwg.mxu0
      %v1269 = vadd.f32 %v1105, %v1264
      %1270 = vrot.lane.b32.xlu0 %v723, 104
      %v1271 = vpop.permute.xlu0 %1270
      %1272 = vrot.lane.b32.xlu0 %v723, 72
      %v1273 = vpop.permute.xlu0 %1272
      %v1275 = vsel %vm795, %v1271, 0
      %v1278 = vsel %vm795, %v1273, 0
      %1280 = vmatprep.subr.bf16.mxu0 0
      %1281 = vmatpush1.bf16.xpose.msra.mxu0 0
      %1282 = vmatprep.subr.bf16.mxu0 0
      %1283 = vmatpush1.bf16.xpose.msra.mxu0 0
      %1284 = vmatprep.subr.bf16.mxu0 0
      %1285 = vmatpush1.bf16.xpose.msra.mxu0 0
      %1286 = vmatprep.subr.bf16.mxu0 0
      %1287 = vmatpush1.bf16.xpose.msra.mxu0 0
      %1288 = vmatprep.subr.bf16.mxu0 0
      %1289 = vmatpush1.bf16.xpose.msra.mxu0 0
      %1290 = vmatprep.subr.bf16.mxu0 0
      %1291 = vmatpush1.bf16.xpose.msra.mxu0 0
      %1292 = vmatprep.subr.bf16.mxu0 0
      %1293 = vmatpush1.bf16.xpose.msra.mxu0 0
      %1294 = vmatprep.subr.bf16.mxu0 0
      %1295 = vmatpush1.bf16.xpose.msra.mxu0 %v1278
      %1296 = vmatprep.subr.bf16.mxu0 0
      %1297 = vmatpush2.bf16.xpose.msra.mxu0 0
      %1298 = vmatprep.subr.bf16.mxu0 0
      %1299 = vmatpush2.bf16.xpose.msra.mxu0 0
      %1300 = vmatprep.subr.bf16.mxu0 0
      %1301 = vmatpush2.bf16.xpose.msra.mxu0 0
      %1302 = vmatprep.subr.bf16.mxu0 0
      %1303 = vmatpush2.bf16.xpose.msra.mxu0 0
      %1304 = vmatprep.subr.bf16.mxu0 0
      %1305 = vmatpush2.bf16.xpose.msra.mxu0 0
      %1306 = vmatprep.subr.bf16.mxu0 0
      %1307 = vmatpush2.bf16.xpose.msra.mxu0 0
      %1308 = vmatprep.subr.bf16.mxu0 0
      %1309 = vmatpush2.bf16.xpose.msra.mxu0 0
      %1310 = vmatprep.subr.bf16.mxu0 0
      %1311 = vmatpush2.bf16.xpose.msra.mxu0 0
      %1312 = vmatprep.mubr.bf16.mxu0 0
      %1313 = vmatmul.mubr.bf16.gmra.mxu0 %v1275
      %v1314 = vpop.f32.mrf.mxu0
      %v1315 = vadd.f32 0.0, %v1314
      %v1316 = vpop.f32.mrf.mxu0
      %v1317 = vpop.f32.mrf.mxu0
      %v1318 = vpop.f32.mrf.mxu0
      %1319 = vdwg.mxu0
      %v1320 = vmul.f32 %v1315, 0.35355338
      %v1321 = vsel %vm795, %v1320, -inf
      %1322 = vmax.xlane.f32.xlu0 %v1321
      %v1323 = vpop.xlane.xlu0 %1322
      %v1324 = vsub.f32 %v1320, %v1323
      %v1325 = vmul.f32 %v1324, 1.442695
      %v1326 = vpow.pop %v1325
      %v1327 = vsel %vm795, %v1326, 0.0
      %1328 = vadd.xlane.f32.xlu0 %v1327
      %v1329 = vpop.xlane.xlu0 %1328
      %v1330 = vrcp.pop %v1329
      %v1331 = vmul.f32 %v1326, %v1330
      %v1332 = vpack.c.bf16 %v1331, %v1331
      %1333 = vrot.lane.b32.xlu0 %v791, 104
      %v1334 = vpop.permute.xlu0 %1333
      %v1336 = vsel %vm795, %v1332, 0
      %v1339 = vsel %vm858, %v1334, 0
      %1341 = vmatprep.subr.bf16.mxu0 0
      %1342 = vmatpush1.bf16.msra.mxu0 0
      %1343 = vmatprep.subr.bf16.mxu0 0
      %1344 = vmatpush1.bf16.msra.mxu0 0
      %1345 = vmatprep.subr.bf16.mxu0 0
      %1346 = vmatpush1.bf16.msra.mxu0 0
      %1347 = vmatprep.subr.bf16.mxu0 0
      %1348 = vmatpush1.bf16.msra.mxu0 0
      %1349 = vmatprep.subr.bf16.mxu0 0
      %1350 = vmatpush1.bf16.msra.mxu0 0
      %1351 = vmatprep.subr.bf16.mxu0 0
      %1352 = vmatpush1.bf16.msra.mxu0 0
      %1353 = vmatprep.subr.bf16.mxu0 0
      %1354 = vmatpush1.bf16.msra.mxu0 0
      %1355 = vmatprep.subr.bf16.mxu0 0
      %1356 = vmatpush1.bf16.msra.mxu0 %v1339
      %1357 = vmatprep.subr.bf16.mxu0 0
      %1358 = vmatpush2.bf16.msra.mxu0 0
      %1359 = vmatprep.subr.bf16.mxu0 0
      %1360 = vmatpush2.bf16.msra.mxu0 0
      %1361 = vmatprep.subr.bf16.mxu0 0
      %1362 = vmatpush2.bf16.msra.mxu0 0
      %1363 = vmatprep.subr.bf16.mxu0 0
      %1364 = vmatpush2.bf16.msra.mxu0 0
      %1365 = vmatprep.subr.bf16.mxu0 0
      %1366 = vmatpush2.bf16.msra.mxu0 0
      %1367 = vmatprep.subr.bf16.mxu0 0
      %1368 = vmatpush2.bf16.msra.mxu0 0
      %1369 = vmatprep.subr.bf16.mxu0 0
      %1370 = vmatpush2.bf16.msra.mxu0 0
      %1371 = vmatprep.subr.bf16.mxu0 0
      %1372 = vmatpush2.bf16.msra.mxu0 0
      %1373 = vmatprep.mubr.bf16.mxu0 0
      %1374 = vmatmul.mubr.bf16.gmra.mxu0 %v1336
      %v1375 = vpop.f32.mrf.mxu0
      %v1376 = vadd.f32 0.0, %v1375
      %v1377 = vpop.f32.mrf.mxu0
      %v1378 = vpop.f32.mrf.mxu0
      %v1379 = vpop.f32.mrf.mxu0
      %1380 = vdwg.mxu0
      %v1381 = vpack.c.bf16 %v1376, %v1376
      %v1382 = vld [vmem:[%s8 + $0xc] sm:$0xf]
      %v1384 = vsel %vm795, %v1381, 0
      %v1387 = vsel %vm858, %v1382, 0
      %1389 = vmatprep.subr.bf16.mxu0 0
      %1390 = vmatpush1.bf16.msra.mxu0 0
      %1391 = vmatprep.subr.bf16.mxu0 0
      %1392 = vmatpush1.bf16.msra.mxu0 0
      %1393 = vmatprep.subr.bf16.mxu0 0
      %1394 = vmatpush1.bf16.msra.mxu0 0
      %1395 = vmatprep.subr.bf16.mxu0 0
      %1396 = vmatpush1.bf16.msra.mxu0 0
      %1397 = vmatprep.subr.bf16.mxu0 0
      %1398 = vmatpush1.bf16.msra.mxu0 0
      %1399 = vmatprep.subr.bf16.mxu0 0
      %1400 = vmatpush1.bf16.msra.mxu0 0
      %1401 = vmatprep.subr.bf16.mxu0 0
      %1402 = vmatpush1.bf16.msra.mxu0 0
      %1403 = vmatprep.subr.bf16.mxu0 0
      %1404 = vmatpush1.bf16.msra.mxu0 %v1387
      %1405 = vmatprep.subr.bf16.mxu0 0
      %1406 = vmatpush2.bf16.msra.mxu0 0
      %1407 = vmatprep.subr.bf16.mxu0 0
      %1408 = vmatpush2.bf16.msra.mxu0 0
      %1409 = vmatprep.subr.bf16.mxu0 0
      %1410 = vmatpush2.bf16.msra.mxu0 0
      %1411 = vmatprep.subr.bf16.mxu0 0
      %1412 = vmatpush2.bf16.msra.mxu0 0
      %1413 = vmatprep.subr.bf16.mxu0 0
      %1414 = vmatpush2.bf16.msra.mxu0 0
      %1415 = vmatprep.subr.bf16.mxu0 0
      %1416 = vmatpush2.bf16.msra.mxu0 0
      %1417 = vmatprep.subr.bf16.mxu0 0
      %1418 = vmatpush2.bf16.msra.mxu0 0
      %1419 = vmatprep.subr.bf16.mxu0 0
      %1420 = vmatpush2.bf16.msra.mxu0 0
      %1421 = vmatprep.mubr.bf16.mxu0 0
      %1422 = vmatmul.mubr.bf16.gmra.mxu0 %v1384
      %v1423 = vpop.f32.mrf.mxu0
      %v1424 = vadd.f32 0.0, %v1423
      %v1425 = vpop.f32.mrf.mxu0
      %v1426 = vpop.f32.mrf.mxu0
      %v1427 = vpop.f32.mrf.mxu0
      %1428 = vdwg.mxu0
      %v1429 = vadd.f32 %v1269, %v1424
      %v1430 = vld [vmem:[%s9] sm:$0x1]
      %v1432 = vlaneseq
      %v1433 = vshrl.u32 %v1432, 7
      %v1434 = vsub.s32 0, %v1433
      %v1435 = vrot.slane %v1430, %v1434
      %v1437 = vadd.f32 %v1429, %v1435
      %v1438 = vadd.f32 %v652, %v1437
      %v1439 = vld [vmem:[%s10] sm:$0x1]
      %v1440 = vld [vmem:[%s11] sm:$0x1]
      %v1441 = vsel %vm679, %v1438, 0.0
      %1442 = vadd.xlane.f32.xlu0 %v1441
      %v1443 = vpop.xlane.xlu0 %1442
      %v1444 = vrcp.pop 32.0
      %v1445 = vmul.f32 %v1443, %v1444
      %v1446 = vsub.f32 %v1438, %v1445
      %v1447 = vmul.f32 %v1446, %v1446
      %v1448 = vsel %vm679, %v1447, 0.0
      %1449 = vadd.xlane.f32.xlu0 %v1448
      %v1450 = vpop.xlane.xlu0 %1449
      %v1451 = vmul.f32 %v1450, %v1444
      %v1452 = vadd.f32 %v1451, 1e-05
      %v1453 = vrsqrt.pop %v1452
      %v1454 = vmul.f32 %v1446, %v1453
      %v1456 = vlaneseq
      %v1457 = vshrl.u32 %v1456, 7
      %v1458 = vsub.s32 0, %v1457
      %v1459 = vrot.slane %v1439, %v1458
      %v1461 = vmul.f32 %v1454, %v1459
      %v1463 = vlaneseq
      %v1464 = vshrl.u32 %v1463, 7
      %v1465 = vsub.s32 0, %v1464
      %v1466 = vrot.slane %v1440, %v1465
      %v1468 = vadd.f32 %v1461, %v1466
      %1469 = vst.msk [vmem:[%s641] sm:$0xff] %vm679, %v1468
      %v1470 = vadd.f32 %v1468, %v653
      %v1471 = vpack.c.bf16 %v1470, %v1470
      %v1472 = vld [vmem:[%s12] sm:$0xf]
      %v1473 = vld [vmem:[%s12 + $0x4] sm:$0xf]
      %v1474 = vld [vmem:[%s12 + $0x8] sm:$0xf]
      %v1475 = vld [vmem:[%s12 + $0xc] sm:$0xf]
      %v1476 = vld [vmem:[%s13] sm:$0x1]
      %v1478 = vlaneseq
      %v1479 = vshrl.u32 %v1478, 7
      %v1480 = vsub.s32 0, %v1479
      %v1481 = vrot.slane %v1476, %v1480
      %v1487 = vunpack.c.l.b16 %v1472
      %v1488 = vunpack.c.l.b16 %v1473
      %v1489 = vunpack.c.l.b16 %v1474
      %v1490 = vunpack.c.l.b16 %v1475
      %v1491 = vpack.c.b16 %v1488, %v1487
      %v1492 = vpack.c.b16 %v1490, %v1489
      %v1496 = vsel %vm679, %v1471, 0
      %1498 = vmatprep.subr.bf16.mxu0 0
      %1499 = vmatpush1.bf16.msra.mxu0 0
      %1500 = vmatprep.subr.bf16.mxu0 0
      %1501 = vmatpush1.bf16.msra.mxu0 0
      %1502 = vmatprep.subr.bf16.mxu0 0
      %1503 = vmatpush1.bf16.msra.mxu0 0
      %1504 = vmatprep.subr.bf16.mxu0 0
      %1505 = vmatpush1.bf16.msra.mxu0 0
      %1506 = vmatprep.subr.bf16.mxu0 0
      %1507 = vmatpush1.bf16.msra.mxu0 0
      %1508 = vmatprep.subr.bf16.mxu0 0
      %1509 = vmatpush1.bf16.msra.mxu0 0
      %1510 = vmatprep.subr.bf16.mxu0 0
      %1511 = vmatpush1.bf16.msra.mxu0 %v1492
      %1512 = vmatprep.subr.bf16.mxu0 0
      %1513 = vmatpush1.bf16.msra.mxu0 %v1491
      %1514 = vmatprep.subr.bf16.mxu0 0
      %1515 = vmatpush2.bf16.msra.mxu0 0
      %1516 = vmatprep.subr.bf16.mxu0 0
      %1517 = vmatpush2.bf16.msra.mxu0 0
      %1518 = vmatprep.subr.bf16.mxu0 0
      %1519 = vmatpush2.bf16.msra.mxu0 0
      %1520 = vmatprep.subr.bf16.mxu0 0
      %1521 = vmatpush2.bf16.msra.mxu0 0
      %1522 = vmatprep.subr.bf16.mxu0 0
      %1523 = vmatpush2.bf16.msra.mxu0 0
      %1524 = vmatprep.subr.bf16.mxu0 0
      %1525 = vmatpush2.bf16.msra.mxu0 0
      %1526 = vmatprep.subr.bf16.mxu0 0
      %1527 = vmatpush2.bf16.msra.mxu0 0
      %1528 = vmatprep.subr.bf16.mxu0 0
      %1529 = vmatpush2.bf16.msra.mxu0 0
      %1530 = vmatprep.mubr.bf16.mxu0 0
      %1531 = vmatmul.mubr.bf16.gmra.mxu0 %v1496
      %v1532 = vpop.f32.mrf.mxu0
      %v1533 = vadd.f32 %v1481, %v1532
      %v1534 = vpop.f32.mrf.mxu0
      %v1535 = vpop.f32.mrf.mxu0
      %v1536 = vpop.f32.mrf.mxu0
      %1537 = vdwg.mxu0
      %vm1538 = vcmask 392192
      %1539 = vst.msk [vmem:[%s645] sm:$0xff] %vm1538, %v1533
      %v1540 = vld [vmem:[%s632] sm:$0xff]
      %v1541 = vld [vmem:[%s632 + $0x8] sm:$0xff]
      %v1542 = vld [vmem:[%s632 + $0x10] sm:$0xff]
      %v1543 = vld [vmem:[%s632 + $0x18] sm:$0xff]
      %v1544 = vld [vmem:[%s632 + $0x20] sm:$0xff]
      %v1545 = vld [vmem:[%s632 + $0x28] sm:$0xff]
      %v1546 = vld [vmem:[%s632 + $0x30] sm:$0xff]
      %v1547 = vld [vmem:[%s632 + $0x38] sm:$0xff]
      %v1548 = vld [vmem:[%s632 + $0x40] sm:$0xff]
      %v1549 = vld [vmem:[%s632 + $0x48] sm:$0xff]
      %v1550 = vpack.c.bf16 %v1541, %v1540
      %v1551 = vpack.c.bf16 %v1543, %v1542
      %v1552 = vpack.c.bf16 %v1545, %v1544
      %v1553 = vpack.c.bf16 %v1547, %v1546
      %v1554 = vpack.c.bf16 %v1549, %v1548
      %v1555 = vld [vmem:[%s14] sm:$0xf]
      %v1556 = vld [vmem:[%s14 + $0x4] sm:$0xf]
      %v1557 = vld [vmem:[%s14 + $0x8] sm:$0xf]
      %v1558 = vld [vmem:[%s14 + $0xc] sm:$0xf]
      %v1559 = vld [vmem:[%s15] sm:$0x1]
      %v1561 = vlaneseq
      %v1562 = vshrl.u32 %v1561, 7
      %v1563 = vsub.s32 0, %v1562
      %v1564 = vrot.slane %v1559, %v1563
      %v1570 = vunpack.c.l.b16 %v1555
      %v1571 = vunpack.c.l.b16 %v1556
      %v1572 = vunpack.c.l.b16 %v1557
      %v1573 = vunpack.c.l.b16 %v1558
      %v1574 = vpack.c.b16 %v1571, %v1570
      %v1575 = vpack.c.b16 %v1573, %v1572
      %v1579 = vsel %vm679, %v1550, 0
      %v1582 = vsel %vm679, %v1551, 0
      %v1585 = vsel %vm679, %v1552, 0
      %v1588 = vsel %vm679, %v1553, 0
      %v1591 = vsel %vm679, %v1554, 0
      %1593 = vmatprep.subr.bf16.mxu0 0
      %1594 = vmatpush1.bf16.msra.mxu0 0
      %1595 = vmatprep.subr.bf16.mxu0 0
      %1596 = vmatpush1.bf16.msra.mxu0 0
      %1597 = vmatprep.subr.bf16.mxu0 0
      %1598 = vmatpush1.bf16.msra.mxu0 0
      %1599 = vmatprep.subr.bf16.mxu0 0
      %1600 = vmatpush1.bf16.msra.mxu0 0
      %1601 = vmatprep.subr.bf16.mxu0 0
      %1602 = vmatpush1.bf16.msra.mxu0 0
      %1603 = vmatprep.subr.bf16.mxu0 0
      %1604 = vmatpush1.bf16.msra.mxu0 0
      %1605 = vmatprep.subr.bf16.mxu0 0
      %1606 = vmatpush1.bf16.msra.mxu0 %v1575
      %1607 = vmatprep.subr.bf16.mxu0 0
      %1608 = vmatpush1.bf16.msra.mxu0 %v1574
      %1609 = vmatprep.subr.bf16.mxu0 0
      %1610 = vmatpush2.bf16.msra.mxu0 0
      %1611 = vmatprep.subr.bf16.mxu0 0
      %1612 = vmatpush2.bf16.msra.mxu0 0
      %1613 = vmatprep.subr.bf16.mxu0 0
      %1614 = vmatpush2.bf16.msra.mxu0 0
      %1615 = vmatprep.subr.bf16.mxu0 0
      %1616 = vmatpush2.bf16.msra.mxu0 0
      %1617 = vmatprep.subr.bf16.mxu0 0
      %1618 = vmatpush2.bf16.msra.mxu0 0
      %1619 = vmatprep.subr.bf16.mxu0 0
      %1620 = vmatpush2.bf16.msra.mxu0 0
      %1621 = vmatprep.subr.bf16.mxu0 0
      %1622 = vmatpush2.bf16.msra.mxu0 0
      %1623 = vmatprep.subr.bf16.mxu0 0
      %1624 = vmatpush2.bf16.msra.mxu0 0
      %1625 = vmatprep.mubr.bf16.mxu0 0
      %1626 = vmatmul.mubr.bf16.gmra.mxu0 %v1579
      %v1627 = vpop.f32.mrf.mxu0
      %v1628 = vadd.f32 %v1564, %v1627
      %v1629 = vpop.f32.mrf.mxu0
      %v1630 = vpop.f32.mrf.mxu0
      %v1631 = vadd.f32 %v1564, %v1630
      %v1632 = vpop.f32.mrf.mxu0
      %1633 = vmatprep.mubr.bf16.mxu0 0
      %1634 = vmatmul.mubr.bf16.gmra.mxu0 %v1582
      %v1635 = vpop.f32.mrf.mxu0
      %v1636 = vadd.f32 %v1564, %v1635
      %v1637 = vpop.f32.mrf.mxu0
      %v1638 = vpop.f32.mrf.mxu0
      %v1639 = vadd.f32 %v1564, %v1638
      %v1640 = vpop.f32.mrf.mxu0
      %1641 = vmatprep.mubr.bf16.mxu0 0
      %1642 = vmatmul.mubr.bf16.gmra.mxu0 %v1585
      %v1643 = vpop.f32.mrf.mxu0
      %v1644 = vadd.f32 %v1564, %v1643
      %v1645 = vpop.f32.mrf.mxu0
      %v1646 = vpop.f32.mrf.mxu0
      %v1647 = vadd.f32 %v1564, %v1646
      %v1648 = vpop.f32.mrf.mxu0
      %1649 = vmatprep.mubr.bf16.mxu0 0
      %1650 = vmatmul.mubr.bf16.gmra.mxu0 %v1588
      %v1651 = vpop.f32.mrf.mxu0
      %v1652 = vadd.f32 %v1564, %v1651
      %v1653 = vpop.f32.mrf.mxu0
      %v1654 = vpop.f32.mrf.mxu0
      %v1655 = vadd.f32 %v1564, %v1654
      %v1656 = vpop.f32.mrf.mxu0
      %1657 = vmatprep.mubr.bf16.mxu0 0
      %1658 = vmatmul.mubr.bf16.gmra.mxu0 %v1591
      %v1659 = vpop.f32.mrf.mxu0
      %v1660 = vadd.f32 %v1564, %v1659
      %v1661 = vpop.f32.mrf.mxu0
      %v1662 = vpop.f32.mrf.mxu0
      %v1663 = vadd.f32 %v1564, %v1662
      %v1664 = vpop.f32.mrf.mxu0
      %1665 = vdwg.mxu0
      %v1666 = vld [vmem:[%s637] sm:$0xff]
      %v1667 = vld [vmem:[%s637 + $0x8] sm:$0xff]
      %v1668 = vld [vmem:[%s637 + $0x10] sm:$0xff]
      %v1669 = vld [vmem:[%s637 + $0x18] sm:$0xff]
      %v1670 = vld [vmem:[%s637 + $0x20] sm:$0xff]
      %v1671 = vld [vmem:[%s637 + $0x28] sm:$0xff]
      %v1672 = vld [vmem:[%s637 + $0x30] sm:$0xff]
      %v1673 = vld [vmem:[%s637 + $0x38] sm:$0xff]
      %v1674 = vld [vmem:[%s637 + $0x40] sm:$0xff]
      %v1675 = vld [vmem:[%s637 + $0x48] sm:$0xff]
      %1677 = vset.pattern.permute.xlu0 0
      %1678 = vperm.xlu0 %1677, %v1666
      %v1679 = vpop.permute.xlu0 %1678
      %1682 = vset.pattern.permute.xlu0 0
      %1683 = vperm.xlu0 %1682, %v1667
      %v1684 = vpop.permute.xlu0 %1683
      %1687 = vset.pattern.permute.xlu0 0
      %1688 = vperm.xlu0 %1687, %v1668
      %v1689 = vpop.permute.xlu0 %1688
      %1692 = vset.pattern.permute.xlu0 0
      %1693 = vperm.xlu0 %1692, %v1669
      %v1694 = vpop.permute.xlu0 %1693
      %1697 = vset.pattern.permute.xlu0 0
      %1698 = vperm.xlu0 %1697, %v1670
      %v1699 = vpop.permute.xlu0 %1698
      %1702 = vset.pattern.permute.xlu0 0
      %1703 = vperm.xlu0 %1702, %v1671
      %v1704 = vpop.permute.xlu0 %1703
      %1707 = vset.pattern.permute.xlu0 0
      %1708 = vperm.xlu0 %1707, %v1672
      %v1709 = vpop.permute.xlu0 %1708
      %1712 = vset.pattern.permute.xlu0 0
      %1713 = vperm.xlu0 %1712, %v1673
      %v1714 = vpop.permute.xlu0 %1713
      %1717 = vset.pattern.permute.xlu0 0
      %1718 = vperm.xlu0 %1717, %v1674
      %v1719 = vpop.permute.xlu0 %1718
      %1722 = vset.pattern.permute.xlu0 0
      %1723 = vperm.xlu0 %1722, %v1675
      %v1724 = vpop.permute.xlu0 %1723
      %v1726 = vmul.f32 %v1628, %v1679
      %v1727 = vmul.f32 %v1631, %v1684
      %v1728 = vmul.f32 %v1636, %v1689
      %v1729 = vmul.f32 %v1639, %v1694
      %v1730 = vmul.f32 %v1644, %v1699
      %v1731 = vmul.f32 %v1647, %v1704
      %v1732 = vmul.f32 %v1652, %v1709
      %v1733 = vmul.f32 %v1655, %v1714
      %v1734 = vmul.f32 %v1660, %v1719
      %v1735 = vmul.f32 %v1663, %v1724
      %1736 = vst.msk [vmem:[%s650] sm:$0xff] %vm679, %v1726
      %1737 = vst.msk [vmem:[%s650 + $0x8] sm:$0xff] %vm679, %v1727
      %1738 = vst.msk [vmem:[%s650 + $0x10] sm:$0xff] %vm679, %v1728
      %1739 = vst.msk [vmem:[%s650 + $0x18] sm:$0xff] %vm679, %v1729
      %1740 = vst.msk [vmem:[%s650 + $0x20] sm:$0xff] %vm679, %v1730
      %1741 = vst.msk [vmem:[%s650 + $0x28] sm:$0xff] %vm679, %v1731
      %1742 = vst.msk [vmem:[%s650 + $0x30] sm:$0xff] %vm679, %v1732
      %1743 = vst.msk [vmem:[%s650 + $0x38] sm:$0xff] %vm679, %v1733
      %1744 = vst.msk [vmem:[%s650 + $0x40] sm:$0xff] %vm679, %v1734
      %1745 = vst.msk [vmem:[%s650 + $0x48] sm:$0xff] %vm679, %v1735
      %p1746 = scmp.lt.s32.totalorder %s30, 1
      %s1747 = scalar_select %p1746, %s30, 1
      %s1748 = smul.addr %s1747, 8
      %s1749 = scalar_lea.vmem %s16, %s1748
      %p1750 = scmp.lt.s32.totalorder %s30, 1
      %s1751 = scalar_select %p1750, %s30, 1
      %s1752 = smul.addr %s1751, 8
      %s1753 = scalar_lea.vmem %s17, %s1752
      %p1754 = scmp.lt.s32.totalorder %s30, 1
      %s1755 = scalar_select %p1754, %s30, 1
      %s1756 = smul.addr %s1755, 10
      %s1757 = smul.addr %s1756, 8
      %s1758 = scalar_lea.vmem %s18, %s1757
      // Predicated region
      $region85: #{decoder_layer_forward.2} parent=83 // pred_check
        %p1759 = pneg %p404
      $region86: #{decoder_layer_forward.2} parent=83 // pred_check_branch
        %1761 = sbr.rel (%p1759) target = $region88
      $region87: #{decoder_layer_forward.2} parent=83 // pred_region
        _
      $region88: #{decoder_layer_forward.2} parent=83 // pred_fallthru
        _
      // Predicated region
      $region89: #{decoder_layer_forward.2} parent=83 // pred_check
        %p1762 = pneg %p430
      $region90: #{decoder_layer_forward.2} parent=83 // pred_check_branch
        %1764 = sbr.rel (%p1762) target = $region92
      $region91: #{decoder_layer_forward.2} parent=83 // pred_region
        _
      $region92: #{decoder_layer_forward.2} parent=83 // pred_fallthru
        _
      // Predicated region
      $region93: #{decoder_layer_forward.2} parent=83 // pred_check
        %p1765 = pneg %p456
      $region94: #{decoder_layer_forward.2} parent=83 // pred_check_branch
        %1767 = sbr.rel (%p1765) target = $region96
      $region95: #{decoder_layer_forward.2} parent=83 // pred_region
        _
      $region96: #{decoder_layer_forward.2} parent=83 // pred_fallthru
        _
    $region84: #{decoder_layer_forward.2} parent=5 // pred_fallthru
      _
    %p1768 = scmp.le.s32.totalorder 2, %s25
    // Predicated region
    $region97: #{decoder_layer_forward.2} parent=5 // pred_check
      %p1769 = pneg %p1768
    $region98: #{decoder_layer_forward.2} parent=5 // pred_check_branch
      %1771 = sbr.rel (%p1769) target = $region100
    $region99: #{decoder_layer_forward.2} parent=5 // pred_region
      %s1772 = ssub.s32 %s25, 2
      // Predicated region
      $region101: #{decoder_layer_forward.2} parent=99 // pred_check
        %p1773 = pneg %p410
      $region102: #{decoder_layer_forward.2} parent=99 // pred_check_branch
        %1775 = sbr.rel (%p1773) target = $region104
      $region103: #{decoder_layer_forward.2} parent=99 // pred_region
        %p1776 = scmp.lt.s32.totalorder %s31, 1
        %s1777 = scalar_select %p1776, %s31, 1
        %s1778 = smul.addr %s1777, 8
        %s1779 = scalar_lea.vmem %s16, %s1778
      $region104: #{decoder_layer_forward.2} parent=99 // pred_fallthru
        _
      // Predicated region
      $region105: #{decoder_layer_forward.2} parent=99 // pred_check
        %p1780 = pneg %p436
      $region106: #{decoder_layer_forward.2} parent=99 // pred_check_branch
        %1782 = sbr.rel (%p1780) target = $region108
      $region107: #{decoder_layer_forward.2} parent=99 // pred_region
        %p1783 = scmp.lt.s32.totalorder %s31, 1
        %s1784 = scalar_select %p1783, %s31, 1
        %s1785 = smul.addr %s1784, 8
        %s1786 = scalar_lea.vmem %s17, %s1785
      $region108: #{decoder_layer_forward.2} parent=99 // pred_fallthru
        _
      // Predicated region
      $region109: #{decoder_layer_forward.2} parent=99 // pred_check
        %p1787 = pneg %p462
      $region110: #{decoder_layer_forward.2} parent=99 // pred_check_branch
        %1789 = sbr.rel (%p1787) target = $region112
      $region111: #{decoder_layer_forward.2} parent=99 // pred_region
        %p1790 = scmp.lt.s32.totalorder %s31, 1
        %s1791 = scalar_select %p1790, %s31, 1
        %s1792 = smul.addr %s1791, 10
        %s1793 = smul.addr %s1792, 8
        %s1794 = scalar_lea.vmem %s18, %s1793
      $region112: #{decoder_layer_forward.2} parent=99 // pred_fallthru
        _
    $region100: #{decoder_layer_forward.2} parent=5 // pred_fallthru
      _
  $region6: #{decoder_layer_forward.2} parent=0 // loop_footer
    %s29 = sadd.s32 1, %s25
  $region7: #{decoder_layer_forward.2} parent=0 // loop_footer_branch
    %24 = sbr.rel target = $region3
  $region8: #{decoder_layer_forward.2} parent=0 // loop_exit
    _

// kernel: decoder_layer_forward.3
$region0: #{decoder_layer_forward.3}
  #allocation0 [shape = 'u32[]', space=smem, size = 0x4, offset = 0x4, fixed_abs, tag = 'smem constant byte address 0x4 - core index']
  #allocation1 [shape = 'u32[144,128]{1,0:T(1,128)}', space=vmem, size = 0x12000, scoped, tag = 'internal scratch']
  %s0 = inlined_call_operand.vmem [shape: f32[2,8,16], index: 0, kind: input, shape index: {}]
  %s1 = inlined_call_operand.vmem [shape: f32[2,8,4,32], index: 1, kind: input, shape index: {}]
  %s2 = inlined_call_operand.vmem [shape: f32[2,8,32], index: 2, kind: input, shape index: {}]
  %s3 = inlined_call_operand.vmem [shape: bf16[32,32], index: 3, kind: input, shape index: {}]
  %s4 = inlined_call_operand.vmem [shape: f32[1,32], index: 4, kind: input, shape index: {}]
  %s5 = inlined_call_operand.vmem [shape: f32[1,32], index: 5, kind: input, shape index: {}]
  %s6 = inlined_call_operand.vmem [shape: f32[1,32], index: 6, kind: input, shape index: {}]
  %s7 = inlined_call_operand.vmem [shape: bf16[32,64], index: 7, kind: input, shape index: {}]
  %s8 = inlined_call_operand.vmem [shape: f32[1,64], index: 8, kind: input, shape index: {}]
  %s9 = inlined_call_operand.vmem [shape: bf16[64,32], index: 9, kind: input, shape index: {}]
  %s10 = inlined_call_operand.vmem [shape: f32[1,32], index: 10, kind: input, shape index: {}]
  %s11 = inlined_call_operand.vmem [shape: f32[1,32], index: 11, kind: input, shape index: {}]
  %s12 = inlined_call_operand.vmem [shape: f32[1,32], index: 12, kind: input, shape index: {}]
  %s13 = inlined_call_operand.vmem [shape: f32[2,8,32], index: 13, kind: output, shape index: {}]
  %s14 = sld [smem:[#allocation0]]
  $region85: #{decoder_layer_forward.3} parent=0
    _
  %s16 = ssub.s32 1, %s14
  %s17 = scalar_select 0, %s16, %s14
  loop: start=0, step=1, limit=4
  $region2: #{decoder_layer_forward.3} parent=0 // loop_pre_header
    _
  $region3: #{decoder_layer_forward.3} parent=0 // loop_header
    %s19 = sphi 0, %s23
    %p20 = scmp.ge.s32.totalorder %s19, 4
    %s29 = sphi 0, %s31
    %s32 = sphi 0, %s29
    %s33 = sphi 0, %s32
    %s49 = sphi 0, %s33
    %s55 = sphi 0, %s57
    %s58 = sphi 0, %s55
    %s59 = sphi 0, %s58
    %s75 = sphi 0, %s59
    %s81 = sphi 0, %s83
    %s84 = sphi 0, %s81
    %s85 = sphi 0, %s84
    %s101 = sphi 0, %s85
    %s105 = sphi 0, %s105
    %s107 = sphi 0, %s105
    %s108 = sphi 0, %s107
    %s122 = sphi 0, %s108
    %s126 = sphi 0, %s126
    %s128 = sphi 0, %s126
    %s129 = sphi 0, %s128
    %s143 = sphi 0, %s129
    %s147 = sphi 0, %s147
    %s149 = sphi 0, %s147
    %s150 = sphi 0, %s149
    %s164 = sphi 0, %s150
    %s168 = sphi 0, %s168
    %s170 = sphi 0, %s168
    %s171 = sphi 0, %s170
    %s185 = sphi 0, %s171
    %s189 = sphi 0, %s189
    %s191 = sphi 0, %s189
    %s192 = sphi 0, %s191
    %s206 = sphi 0, %s192
    %s210 = sphi 0, %s210
    %s212 = sphi 0, %s210
    %s213 = sphi 0, %s212
    %s227 = sphi 0, %s213
    %s231 = sphi 0, %s231
    %s233 = sphi 0, %s231
    %s234 = sphi 0, %s233
    %s248 = sphi 0, %s234
    %s252 = sphi 0, %s252
    %s254 = sphi 0, %s252
    %s255 = sphi 0, %s254
    %s269 = sphi 0, %s255
    %s273 = sphi 0, %s273
    %s275 = sphi 0, %s273
    %s276 = sphi 0, %s275
    %s290 = sphi 0, %s276
    %s294 = sphi 0, %s294
    %s296 = sphi 0, %s294
    %s297 = sphi 0, %s296
    %s311 = sphi 0, %s297
    %s317 = sphi 0, %s319
    %s320 = sphi 0, %s317
    %s321 = sphi 0, %s320
    %s337 = sphi 0, %s321
  $region4: #{decoder_layer_forward.3} parent=0 // loop_header_branch
    %22 = sbr.rel (%p20) target = $region8
  $region5: #{decoder_layer_forward.3} parent=0 // loop_body
    %s24 = ssub.s32 %s19, 1
    %s25 = ssub.s32 %s19, 2
    %s26 = sadd.s32 %s19, 1
    %s27 = ssub.s32 %s19, %s26
    %p28 = scmp.eq.s32.totalorder %s27, 0
    %s30 = sadd.s32 %s29, 1
    %s31 = scalar_select %p28, %s29, %s30
    %p34 = pneg %p28
    %p35 = scmp.eq.s32.totalorder %s19, 1
    %p36 = por %p34, %p35
    %p37 = scmp.ne.s32.totalorder %s29, %s32
    %p38 = scmp.eq.s32.totalorder %s19, 0
    %p39 = por %p37, %p38
    %p40 = scmp.ne.s32.totalorder %s29, %s32
    %p41 = scmp.eq.s32.totalorder %s24, 1
    %p42 = por %p40, %p41
    %p43 = scmp.ne.s32.totalorder %s32, %s33
    %p44 = scmp.eq.s32.totalorder %s24, 0
    %p45 = por %p43, %p44
    %p46 = scmp.ne.s32.totalorder %s32, %s33
    %p47 = scmp.eq.s32.totalorder %s25, 1
    %p48 = por %p46, %p47
    %p50 = scmp.ne.s32.totalorder %s33, %s49
    %p51 = scmp.eq.s32.totalorder %s25, 0
    %p52 = por %p50, %p51
    %s53 = ssub.s32 %s19, %s26
    %p54 = scmp.eq.s32.totalorder %s53, 0
    %s56 = sadd.s32 %s55, 1
    %s57 = scalar_select %p54, %s55, %s56
    %p60 = pneg %p54
    %p61 = scmp.eq.s32.totalorder %s19, 1
    %p62 = por %p60, %p61
    %p63 = scmp.ne.s32.totalorder %s55, %s58
    %p64 = scmp.eq.s32.totalorder %s19, 0
    %p65 = por %p63, %p64
    %p66 = scmp.ne.s32.totalorder %s55, %s58
    %p67 = scmp.eq.s32.totalorder %s24, 1
    %p68 = por %p66, %p67
    %p69 = scmp.ne.s32.totalorder %s58, %s59
    %p70 = scmp.eq.s32.totalorder %s24, 0
    %p71 = por %p69, %p70
    %p72 = scmp.ne.s32.totalorder %s58, %s59
    %p73 = scmp.eq.s32.totalorder %s25, 1
    %p74 = por %p72, %p73
    %p76 = scmp.ne.s32.totalorder %s59, %s75
    %p77 = scmp.eq.s32.totalorder %s25, 0
    %p78 = por %p76, %p77
    %s79 = ssub.s32 %s19, %s26
    %p80 = scmp.eq.s32.totalorder %s79, 0
    %s82 = sadd.s32 %s81, 1
    %s83 = scalar_select %p80, %s81, %s82
    %p86 = pneg %p80
    %p87 = scmp.eq.s32.totalorder %s19, 1
    %p88 = por %p86, %p87
    %p89 = scmp.ne.s32.totalorder %s81, %s84
    %p90 = scmp.eq.s32.totalorder %s19, 0
    %p91 = por %p89, %p90
    %p92 = scmp.ne.s32.totalorder %s81, %s84
    %p93 = scmp.eq.s32.totalorder %s24, 1
    %p94 = por %p92, %p93
    %p95 = scmp.ne.s32.totalorder %s84, %s85
    %p96 = scmp.eq.s32.totalorder %s24, 0
    %p97 = por %p95, %p96
    %p98 = scmp.ne.s32.totalorder %s84, %s85
    %p99 = scmp.eq.s32.totalorder %s25, 1
    %p100 = por %p98, %p99
    %p102 = scmp.ne.s32.totalorder %s85, %s101
    %p103 = scmp.eq.s32.totalorder %s25, 0
    %p104 = por %p102, %p103
    %s106 = sadd.s32 %s105, 1
    %p109 = scmp.eq.s32.totalorder %s19, 1
    %p110 = scmp.ne.s32.totalorder %s105, %s107
    %p111 = scmp.eq.s32.totalorder %s19, 0
    %p112 = por %p110, %p111
    %p113 = scmp.ne.s32.totalorder %s105, %s107
    %p114 = scmp.eq.s32.totalorder %s24, 1
    %p115 = por %p113, %p114
    %p116 = scmp.ne.s32.totalorder %s107, %s108
    %p117 = scmp.eq.s32.totalorder %s24, 0
    %p118 = por %p116, %p117
    %p119 = scmp.ne.s32.totalorder %s107, %s108
    %p120 = scmp.eq.s32.totalorder %s25, 1
    %p121 = por %p119, %p120
    %p123 = scmp.ne.s32.totalorder %s108, %s122
    %p124 = scmp.eq.s32.totalorder %s25, 0
    %p125 = por %p123, %p124
    %s127 = sadd.s32 %s126, 1
    %p130 = scmp.eq.s32.totalorder %s19, 1
    %p131 = scmp.ne.s32.totalorder %s126, %s128
    %p132 = scmp.eq.s32.totalorder %s19, 0
    %p133 = por %p131, %p132
    %p134 = scmp.ne.s32.totalorder %s126, %s128
    %p135 = scmp.eq.s32.totalorder %s24, 1
    %p136 = por %p134, %p135
    %p137 = scmp.ne.s32.totalorder %s128, %s129
    %p138 = scmp.eq.s32.totalorder %s24, 0
    %p139 = por %p137, %p138
    %p140 = scmp.ne.s32.totalorder %s128, %s129
    %p141 = scmp.eq.s32.totalorder %s25, 1
    %p142 = por %p140, %p141
    %p144 = scmp.ne.s32.totalorder %s129, %s143
    %p145 = scmp.eq.s32.totalorder %s25, 0
    %p146 = por %p144, %p145
    %s148 = sadd.s32 %s147, 1
    %p151 = scmp.eq.s32.totalorder %s19, 1
    %p152 = scmp.ne.s32.totalorder %s147, %s149
    %p153 = scmp.eq.s32.totalorder %s19, 0
    %p154 = por %p152, %p153
    %p155 = scmp.ne.s32.totalorder %s147, %s149
    %p156 = scmp.eq.s32.totalorder %s24, 1
    %p157 = por %p155, %p156
    %p158 = scmp.ne.s32.totalorder %s149, %s150
    %p159 = scmp.eq.s32.totalorder %s24, 0
    %p160 = por %p158, %p159
    %p161 = scmp.ne.s32.totalorder %s149, %s150
    %p162 = scmp.eq.s32.totalorder %s25, 1
    %p163 = por %p161, %p162
    %p165 = scmp.ne.s32.totalorder %s150, %s164
    %p166 = scmp.eq.s32.totalorder %s25, 0
    %p167 = por %p165, %p166
    %s169 = sadd.s32 %s168, 1
    %p172 = scmp.eq.s32.totalorder %s19, 1
    %p173 = scmp.ne.s32.totalorder %s168, %s170
    %p174 = scmp.eq.s32.totalorder %s19, 0
    %p175 = por %p173, %p174
    %p176 = scmp.ne.s32.totalorder %s168, %s170
    %p177 = scmp.eq.s32.totalorder %s24, 1
    %p178 = por %p176, %p177
    %p179 = scmp.ne.s32.totalorder %s170, %s171
    %p180 = scmp.eq.s32.totalorder %s24, 0
    %p181 = por %p179, %p180
    %p182 = scmp.ne.s32.totalorder %s170, %s171
    %p183 = scmp.eq.s32.totalorder %s25, 1
    %p184 = por %p182, %p183
    %p186 = scmp.ne.s32.totalorder %s171, %s185
    %p187 = scmp.eq.s32.totalorder %s25, 0
    %p188 = por %p186, %p187
    %s190 = sadd.s32 %s189, 1
    %p193 = scmp.eq.s32.totalorder %s19, 1
    %p194 = scmp.ne.s32.totalorder %s189, %s191
    %p195 = scmp.eq.s32.totalorder %s19, 0
    %p196 = por %p194, %p195
    %p197 = scmp.ne.s32.totalorder %s189, %s191
    %p198 = scmp.eq.s32.totalorder %s24, 1
    %p199 = por %p197, %p198
    %p200 = scmp.ne.s32.totalorder %s191, %s192
    %p201 = scmp.eq.s32.totalorder %s24, 0
    %p202 = por %p200, %p201
    %p203 = scmp.ne.s32.totalorder %s191, %s192
    %p204 = scmp.eq.s32.totalorder %s25, 1
    %p205 = por %p203, %p204
    %p207 = scmp.ne.s32.totalorder %s192, %s206
    %p208 = scmp.eq.s32.totalorder %s25, 0
    %p209 = por %p207, %p208
    %s211 = sadd.s32 %s210, 1
    %p214 = scmp.eq.s32.totalorder %s19, 1
    %p215 = scmp.ne.s32.totalorder %s210, %s212
    %p216 = scmp.eq.s32.totalorder %s19, 0
    %p217 = por %p215, %p216
    %p218 = scmp.ne.s32.totalorder %s210, %s212
    %p219 = scmp.eq.s32.totalorder %s24, 1
    %p220 = por %p218, %p219
    %p221 = scmp.ne.s32.totalorder %s212, %s213
    %p222 = scmp.eq.s32.totalorder %s24, 0
    %p223 = por %p221, %p222
    %p224 = scmp.ne.s32.totalorder %s212, %s213
    %p225 = scmp.eq.s32.totalorder %s25, 1
    %p226 = por %p224, %p225
    %p228 = scmp.ne.s32.totalorder %s213, %s227
    %p229 = scmp.eq.s32.totalorder %s25, 0
    %p230 = por %p228, %p229
    %s232 = sadd.s32 %s231, 1
    %p235 = scmp.eq.s32.totalorder %s19, 1
    %p236 = scmp.ne.s32.totalorder %s231, %s233
    %p237 = scmp.eq.s32.totalorder %s19, 0
    %p238 = por %p236, %p237
    %p239 = scmp.ne.s32.totalorder %s231, %s233
    %p240 = scmp.eq.s32.totalorder %s24, 1
    %p241 = por %p239, %p240
    %p242 = scmp.ne.s32.totalorder %s233, %s234
    %p243 = scmp.eq.s32.totalorder %s24, 0
    %p244 = por %p242, %p243
    %p245 = scmp.ne.s32.totalorder %s233, %s234
    %p246 = scmp.eq.s32.totalorder %s25, 1
    %p247 = por %p245, %p246
    %p249 = scmp.ne.s32.totalorder %s234, %s248
    %p250 = scmp.eq.s32.totalorder %s25, 0
    %p251 = por %p249, %p250
    %s253 = sadd.s32 %s252, 1
    %p256 = scmp.eq.s32.totalorder %s19, 1
    %p257 = scmp.ne.s32.totalorder %s252, %s254
    %p258 = scmp.eq.s32.totalorder %s19, 0
    %p259 = por %p257, %p258
    %p260 = scmp.ne.s32.totalorder %s252, %s254
    %p261 = scmp.eq.s32.totalorder %s24, 1
    %p262 = por %p260, %p261
    %p263 = scmp.ne.s32.totalorder %s254, %s255
    %p264 = scmp.eq.s32.totalorder %s24, 0
    %p265 = por %p263, %p264
    %p266 = scmp.ne.s32.totalorder %s254, %s255
    %p267 = scmp.eq.s32.totalorder %s25, 1
    %p268 = por %p266, %p267
    %p270 = scmp.ne.s32.totalorder %s255, %s269
    %p271 = scmp.eq.s32.totalorder %s25, 0
    %p272 = por %p270, %p271
    %s274 = sadd.s32 %s273, 1
    %p277 = scmp.eq.s32.totalorder %s19, 1
    %p278 = scmp.ne.s32.totalorder %s273, %s275
    %p279 = scmp.eq.s32.totalorder %s19, 0
    %p280 = por %p278, %p279
    %p281 = scmp.ne.s32.totalorder %s273, %s275
    %p282 = scmp.eq.s32.totalorder %s24, 1
    %p283 = por %p281, %p282
    %p284 = scmp.ne.s32.totalorder %s275, %s276
    %p285 = scmp.eq.s32.totalorder %s24, 0
    %p286 = por %p284, %p285
    %p287 = scmp.ne.s32.totalorder %s275, %s276
    %p288 = scmp.eq.s32.totalorder %s25, 1
    %p289 = por %p287, %p288
    %p291 = scmp.ne.s32.totalorder %s276, %s290
    %p292 = scmp.eq.s32.totalorder %s25, 0
    %p293 = por %p291, %p292
    %s295 = sadd.s32 %s294, 1
    %p298 = scmp.eq.s32.totalorder %s19, 1
    %p299 = scmp.ne.s32.totalorder %s294, %s296
    %p300 = scmp.eq.s32.totalorder %s19, 0
    %p301 = por %p299, %p300
    %p302 = scmp.ne.s32.totalorder %s294, %s296
    %p303 = scmp.eq.s32.totalorder %s24, 1
    %p304 = por %p302, %p303
    %p305 = scmp.ne.s32.totalorder %s296, %s297
    %p306 = scmp.eq.s32.totalorder %s24, 0
    %p307 = por %p305, %p306
    %p308 = scmp.ne.s32.totalorder %s296, %s297
    %p309 = scmp.eq.s32.totalorder %s25, 1
    %p310 = por %p308, %p309
    %p312 = scmp.ne.s32.totalorder %s297, %s311
    %p313 = scmp.eq.s32.totalorder %s25, 0
    %p314 = por %p312, %p313
    %s315 = ssub.s32 %s19, %s26
    %p316 = scmp.eq.s32.totalorder %s315, 0
    %s318 = sadd.s32 %s317, 1
    %s319 = scalar_select %p316, %s317, %s318
    %p322 = pneg %p316
    %p323 = scmp.eq.s32.totalorder %s19, 1
    %p324 = por %p322, %p323
    %p325 = scmp.ne.s32.totalorder %s317, %s320
    %p326 = scmp.eq.s32.totalorder %s19, 0
    %p327 = por %p325, %p326
    %p328 = scmp.ne.s32.totalorder %s317, %s320
    %p329 = scmp.eq.s32.totalorder %s24, 1
    %p330 = por %p328, %p329
    %p331 = scmp.ne.s32.totalorder %s320, %s321
    %p332 = scmp.eq.s32.totalorder %s24, 0
    %p333 = por %p331, %p332
    %p334 = scmp.ne.s32.totalorder %s320, %s321
    %p335 = scmp.eq.s32.totalorder %s25, 1
    %p336 = por %p334, %p335
    %p338 = scmp.ne.s32.totalorder %s321, %s337
    %p339 = scmp.eq.s32.totalorder %s25, 0
    %p340 = por %p338, %p339
    %p341 = scmp.le.s32.totalorder 1, %s19
    %p342 = scmp.lt.s32.totalorder %s19, 3
    %p343 = pnand %p341, %p342
    %p344 = pneg %p343
    // Predicated region
    $region9: #{decoder_layer_forward.3} parent=5 // pred_check
      _
    $region10: #{decoder_layer_forward.3} parent=5 // pred_check_branch
      %346 = sbr.rel (%p343) target = $region12
    $region11: #{decoder_layer_forward.3} parent=5 // pred_region
      %s347 = ssub.s32 %s19, 1
      // Predicated region
      $region13: #{decoder_layer_forward.3} parent=11 // pred_check
        %p348 = pneg %p118
      $region14: #{decoder_layer_forward.3} parent=11 // pred_check_branch
        %350 = sbr.rel (%p348) target = $region16
      $region15: #{decoder_layer_forward.3} parent=11 // pred_region
        _
      $region16: #{decoder_layer_forward.3} parent=11 // pred_fallthru
        _
      // Predicated region
      $region17: #{decoder_layer_forward.3} parent=11 // pred_check
        %p351 = pneg %p139
      $region18: #{decoder_layer_forward.3} parent=11 // pred_check_branch
        %353 = sbr.rel (%p351) target = $region20
      $region19: #{decoder_layer_forward.3} parent=11 // pred_region
        _
      $region20: #{decoder_layer_forward.3} parent=11 // pred_fallthru
        _
      // Predicated region
      $region21: #{decoder_layer_forward.3} parent=11 // pred_check
        %p354 = pneg %p160
      $region22: #{decoder_layer_forward.3} parent=11 // pred_check_branch
        %356 = sbr.rel (%p354) target = $region24
      $region23: #{decoder_layer_forward.3} parent=11 // pred_region
        _
      $region24: #{decoder_layer_forward.3} parent=11 // pred_fallthru
        _
      // Predicated region
      $region25: #{decoder_layer_forward.3} parent=11 // pred_check
        %p357 = pneg %p181
      $region26: #{decoder_layer_forward.3} parent=11 // pred_check_branch
        %359 = sbr.rel (%p357) target = $region28
      $region27: #{decoder_layer_forward.3} parent=11 // pred_region
        _
      $region28: #{decoder_layer_forward.3} parent=11 // pred_fallthru
        _
      // Predicated region
      $region29: #{decoder_layer_forward.3} parent=11 // pred_check
        %p360 = pneg %p202
      $region30: #{decoder_layer_forward.3} parent=11 // pred_check_branch
        %362 = sbr.rel (%p360) target = $region32
      $region31: #{decoder_layer_forward.3} parent=11 // pred_region
        _
      $region32: #{decoder_layer_forward.3} parent=11 // pred_fallthru
        _
      // Predicated region
      $region33: #{decoder_layer_forward.3} parent=11 // pred_check
        %p363 = pneg %p223
      $region34: #{decoder_layer_forward.3} parent=11 // pred_check_branch
        %365 = sbr.rel (%p363) target = $region36
      $region35: #{decoder_layer_forward.3} parent=11 // pred_region
        _
      $region36: #{decoder_layer_forward.3} parent=11 // pred_fallthru
        _
      // Predicated region
      $region37: #{decoder_layer_forward.3} parent=11 // pred_check
        %p366 = pneg %p244
      $region38: #{decoder_layer_forward.3} parent=11 // pred_check_branch
        %368 = sbr.rel (%p366) target = $region40
      $region39: #{decoder_layer_forward.3} parent=11 // pred_region
        _
      $region40: #{decoder_layer_forward.3} parent=11 // pred_fallthru
        _
      // Predicated region
      $region41: #{decoder_layer_forward.3} parent=11 // pred_check
        %p369 = pneg %p265
      $region42: #{decoder_layer_forward.3} parent=11 // pred_check_branch
        %371 = sbr.rel (%p369) target = $region44
      $region43: #{decoder_layer_forward.3} parent=11 // pred_region
        _
      $region44: #{decoder_layer_forward.3} parent=11 // pred_fallthru
        _
      // Predicated region
      $region45: #{decoder_layer_forward.3} parent=11 // pred_check
        %p372 = pneg %p286
      $region46: #{decoder_layer_forward.3} parent=11 // pred_check_branch
        %374 = sbr.rel (%p372) target = $region48
      $region47: #{decoder_layer_forward.3} parent=11 // pred_region
        _
      $region48: #{decoder_layer_forward.3} parent=11 // pred_fallthru
        _
      // Predicated region
      $region49: #{decoder_layer_forward.3} parent=11 // pred_check
        %p375 = pneg %p307
      $region50: #{decoder_layer_forward.3} parent=11 // pred_check_branch
        %377 = sbr.rel (%p375) target = $region52
      $region51: #{decoder_layer_forward.3} parent=11 // pred_region
        _
      $region52: #{decoder_layer_forward.3} parent=11 // pred_fallthru
        _
    $region12: #{decoder_layer_forward.3} parent=5 // pred_fallthru
      _
    %p378 = scmp.lt.s32.totalorder %s19, 2
    // Predicated region
    $region53: #{decoder_layer_forward.3} parent=5 // pred_check
      %p379 = pneg %p378
    $region54: #{decoder_layer_forward.3} parent=5 // pred_check_branch
      %381 = sbr.rel (%p379) target = $region56
    $region55: #{decoder_layer_forward.3} parent=5 // pred_region
      // Predicated region
      $region57: #{decoder_layer_forward.3} parent=55 // pred_check
        %p382 = pneg %p39
      $region58: #{decoder_layer_forward.3} parent=55 // pred_check_branch
        %384 = sbr.rel (%p382) target = $region60
      $region59: #{decoder_layer_forward.3} parent=55 // pred_region
        %p385 = scmp.lt.s32.totalorder %s19, 1
        %s386 = scalar_select %p385, %s19, 1
        %s387 = smul.addr %s386, 8
        %s388 = scalar_lea.vmem %s0, %s387
      $region60: #{decoder_layer_forward.3} parent=55 // pred_fallthru
        _
      // Predicated region
      $region61: #{decoder_layer_forward.3} parent=55 // pred_check
        %p389 = pneg %p65
      $region62: #{decoder_layer_forward.3} parent=55 // pred_check_branch
        %391 = sbr.rel (%p389) target = $region64
      $region63: #{decoder_layer_forward.3} parent=55 // pred_region
        %p392 = scmp.lt.s32.totalorder %s19, 1
        %s393 = scalar_select %p392, %s19, 1
        %s394 = smul.addr %s393, 8
        %s395 = smul.addr %s394, 4
        %s396 = scalar_lea.vmem %s1, %s395
      $region64: #{decoder_layer_forward.3} parent=55 // pred_fallthru
        _
      // Predicated region
      $region65: #{decoder_layer_forward.3} parent=55 // pred_check
        %p397 = pneg %p91
      $region66: #{decoder_layer_forward.3} parent=55 // pred_check_branch
        %399 = sbr.rel (%p397) target = $region68
      $region67: #{decoder_layer_forward.3} parent=55 // pred_region
        %p400 = scmp.lt.s32.totalorder %s19, 1
        %s401 = scalar_select %p400, %s19, 1
        %s402 = smul.addr %s401, 8
        %s403 = scalar_lea.vmem %s2, %s402
      $region68: #{decoder_layer_forward.3} parent=55 // pred_fallthru
        _
    $region56: #{decoder_layer_forward.3} parent=5 // pred_fallthru
      _
    %p404 = scmp.le.s32.totalorder 1, %s19
    %p405 = scmp.lt.s32.totalorder %s19, 3
    %p406 = pnand %p404, %p405
    %p407 = pneg %p406
    // Predicated region
    $region69: #{decoder_layer_forward.3} parent=5 // pred_check
      _
    $region70: #{decoder_layer_forward.3} parent=5 // pred_check_branch
      %409 = sbr.rel (%p406) target = $region72
    $region71: #{decoder_layer_forward.3} parent=5 // pred_region
      %s410 = ssub.s32 %s19, 1
      %p411 = scmp.lt.s32.totalorder %s24, 1
      %s412 = scalar_select %p411, %s24, 1
      %s413 = smul.addr %s412, 8
      %s414 = scalar_lea.vmem %s0, %s413
      %p415 = pneg %p45
      %p416 = pneg %p42
      %p417 = scmp.lt.s32.totalorder %s24, 1
      %s418 = scalar_select %p417, %s24, 1
      %s419 = smul.addr %s418, 8
      %s420 = smul.addr %s419, 4
      %s421 = scalar_lea.vmem %s1, %s420
      %p422 = pneg %p71
      %p423 = pneg %p68
      %p424 = scmp.lt.s32.totalorder %s24, 1
      %s425 = scalar_select %p424, %s24, 1
      %s426 = smul.addr %s425, 8
      %s427 = scalar_lea.vmem %s2, %s426
      %p428 = pneg %p97
      %p429 = pneg %p94
      %p430 = pneg %p118
      %p431 = pneg %p115
      %p432 = pneg %p139
      %p433 = pneg %p136
      %p434 = pneg %p160
      %p435 = pneg %p157
      %p436 = pneg %p181
      %p437 = pneg %p178
      %p438 = pneg %p202
      %p439 = pneg %p199
      %p440 = pneg %p223
      %p441 = pneg %p220
      %p442 = pneg %p244
      %p443 = pneg %p241
      %p444 = pneg %p265
      %p445 = pneg %p262
      %p446 = pneg %p286
      %p447 = pneg %p283
      %p448 = pneg %p307
      %p449 = pneg %p304
      %p450 = pneg %p333
      %p451 = pneg %p330
      %p452 = scmp.lt.s32.totalorder %s24, 1
      %s453 = scalar_select %p452, %s24, 1
      %s454 = smul.addr %s453, 8
      %s455 = scalar_lea.vmem %s13, %s454
      %p456 = scmp.lt.s32.totalorder %s24, 1
      %s457 = scalar_select %p456, %s24, 1
      %s458 = smul.addr %s457, 8
      %s459 = scalar_lea.vmem %s0, %s458
      %p460 = scmp.lt.s32.totalorder %s24, 1
      %s461 = scalar_select %p460, %s24, 1
      %s462 = smul.addr %s461, 8
      %s463 = smul.addr %s462, 4
      %s464 = scalar_lea.vmem %s1, %s463
      %p465 = scmp.lt.s32.totalorder %s24, 1
      %s466 = scalar_select %p465, %s24, 1
      %s467 = smul.addr %s466, 8
      %s468 = scalar_lea.vmem %s2, %s467
      %p469 = scmp.lt.s32.totalorder %s24, 1
      %s470 = scalar_select %p469, %s24, 1
      %s471 = smul.addr %s470, 8
      %s472 = scalar_lea.vmem %s13, %s471
      %v474 = vld [vmem:[%s468] sm:$0xff]
      %v475 = vld [vmem:[%s459] sm:$0xff]
      %v476 = vld [vmem:[%s464] sm:$0xf]
      %v477 = vld [vmem:[%s464 + $0x4] sm:$0xf]
      %v478 = vld [vmem:[%s464 + $0x8] sm:$0xf]
      %v479 = vld [vmem:[%s464 + $0xc] sm:$0xf]
      %v480 = vld [vmem:[%s464 + $0x10] sm:$0xf]
      %v481 = vld [vmem:[%s464 + $0x14] sm:$0xf]
      %v482 = vld [vmem:[%s464 + $0x18] sm:$0xf]
      %v483 = vld [vmem:[%s464 + $0x1c] sm:$0xf]
      %vm484 = vcmask 31744
      %v485 = vsel %vm484, %v475, -inf
      %486 = vmax.xlane.f32.xlu0 %v485
      %v487 = vpop.xlane.xlu0 %486
      %v488 = vsub.f32 %v475, %v487
      %v489 = vmul.f32 %v488, 1.442695
      %v490 = vpow.pop %v489
      %v491 = vsel %vm484, %v490, 0.0
      %492 = vadd.xlane.f32.xlu0 %v491
      %v493 = vpop.xlane.xlu0 %492
      %v494 = vrcp.pop %v493
      %v495 = vmul.f32 %v490, %v494
      %v496 = vlaneseq
      %v497 = vshrl.u32 %v496, 7
      %v498 = vsub.s32 0, %v497
      %v499 = vrot.slane %v495, %v498
      %501 = vbcast.lane.b32.xlu0 %v499, 256
      %v502 = vpop.permute.xlu0 %501
      %v503 = vlaneseq
      %v504 = vshrl.u32 %v503, 7
      %v505 = vsub.s32 1, %v504
      %v506 = vrot.slane %v495, %v505
      %508 = vbcast.lane.b32.xlu0 %v506, 256
      %v509 = vpop.permute.xlu0 %508
      %v510 = vlaneseq
      %v511 = vshrl.u32 %v510, 7
      %v512 = vsub.s32 2, %v511
      %v513 = vrot.slane %v495, %v512
      %515 = vbcast.lane.b32.xlu0 %v513, 256
      %v516 = vpop.permute.xlu0 %515
      %v517 = vlaneseq
      %v518 = vshrl.u32 %v517, 7
      %v519 = vsub.s32 3, %v518
      %v520 = vrot.slane %v495, %v519
      %522 = vbcast.lane.b32.xlu0 %v520, 256
      %v523 = vpop.permute.xlu0 %522
      %v524 = vlaneseq
      %v525 = vshrl.u32 %v524, 7
      %v526 = vsub.s32 4, %v525
      %v527 = vrot.slane %v495, %v526
      %529 = vbcast.lane.b32.xlu0 %v527, 256
      %v530 = vpop.permute.xlu0 %529
      %v531 = vlaneseq
      %v532 = vshrl.u32 %v531, 7
      %v533 = vsub.s32 5, %v532
      %v534 = vrot.slane %v495, %v533
      %536 = vbcast.lane.b32.xlu0 %v534, 256
      %v537 = vpop.permute.xlu0 %536
      %v538 = vlaneseq
      %v539 = vshrl.u32 %v538, 7
      %v540 = vsub.s32 6, %v539
      %v541 = vrot.slane %v495, %v540
      %543 = vbcast.lane.b32.xlu0 %v541, 256
      %v544 = vpop.permute.xlu0 %543
      %v545 = vlaneseq
      %v546 = vshrl.u32 %v545, 7
      %v547 = vsub.s32 7, %v546
      %v548 = vrot.slane %v495, %v547
      %550 = vbcast.lane.b32.xlu0 %v548, 256
      %v551 = vpop.permute.xlu0 %550
      %v552 = vmul.f32 %v476, %v502
      %v553 = vmul.f32 %v477, %v509
      %v554 = vmul.f32 %v478, %v516
      %v555 = vmul.f32 %v479, %v523
      %v556 = vmul.f32 %v480, %v530
      %v557 = vmul.f32 %v481, %v537
      %v558 = vmul.f32 %v482, %v544
      %v559 = vmul.f32 %v483, %v551
      %vm560 = vcmask 60416
      %v561 = vsel %vm560, %v552, 0.0
      %v562 = vrot.slane %v561, 4
      %v563 = vadd.f32 %v561, %v562
      %v564 = vrot.slane %v563, 2
      %v565 = vadd.f32 %v563, %v564
      %v566 = vrot.slane %v565, 1
      %v567 = vadd.f32 %v565, %v566
      %v568 = vsel %vm560, %v553, 0.0
      %v569 = vrot.slane %v568, 4
      %v570 = vadd.f32 %v568, %v569
      %v571 = vrot.slane %v570, 2
      %v572 = vadd.f32 %v570, %v571
      %v573 = vrot.slane %v572, 1
      %v574 = vadd.f32 %v572, %v573
      %v575 = vsel %vm560, %v554, 0.0
      %v576 = vrot.slane %v575, 4
      %v577 = vadd.f32 %v575, %v576
      %v578 = vrot.slane %v577, 2
      %v579 = vadd.f32 %v577, %v578
      %v580 = vrot.slane %v579, 1
      %v581 = vadd.f32 %v579, %v580
      %v582 = vsel %vm560, %v555, 0.0
      %v583 = vrot.slane %v582, 4
      %v584 = vadd.f32 %v582, %v583
      %v585 = vrot.slane %v584, 2
      %v586 = vadd.f32 %v584, %v585
      %v587 = vrot.slane %v586, 1
      %v588 = vadd.f32 %v586, %v587
      %v589 = vsel %vm560, %v556, 0.0
      %v590 = vrot.slane %v589, 4
      %v591 = vadd.f32 %v589, %v590
      %v592 = vrot.slane %v591, 2
      %v593 = vadd.f32 %v591, %v592
      %v594 = vrot.slane %v593, 1
      %v595 = vadd.f32 %v593, %v594
      %v596 = vsel %vm560, %v557, 0.0
      %v597 = vrot.slane %v596, 4
      %v598 = vadd.f32 %v596, %v597
      %v599 = vrot.slane %v598, 2
      %v600 = vadd.f32 %v598, %v599
      %v601 = vrot.slane %v600, 1
      %v602 = vadd.f32 %v600, %v601
      %v603 = vsel %vm560, %v558, 0.0
      %v604 = vrot.slane %v603, 4
      %v605 = vadd.f32 %v603, %v604
      %v606 = vrot.slane %v605, 2
      %v607 = vadd.f32 %v605, %v606
      %v608 = vrot.slane %v607, 1
      %v609 = vadd.f32 %v607, %v608
      %v610 = vsel %vm560, %v559, 0.0
      %v611 = vrot.slane %v610, 4
      %v612 = vadd.f32 %v610, %v611
      %v613 = vrot.slane %v612, 2
      %v614 = vadd.f32 %v612, %v613
      %v615 = vrot.slane %v614, 1
      %v616 = vadd.f32 %v614, %v615
      %v617 = vpack.c.bf16 %v567, %v567
      %v618 = vpack.c.bf16 %v574, %v574
      %v619 = vpack.c.bf16 %v581, %v581
      %v620 = vpack.c.bf16 %v588, %v588
      %v621 = vpack.c.bf16 %v595, %v595
      %v622 = vpack.c.bf16 %v602, %v602
      %v623 = vpack.c.bf16 %v609, %v609
      %v624 = vpack.c.bf16 %v616, %v616
      %v625 = vld [vmem:[%s3] sm:$0xf]
      %vm626 = vcmask 64544
      %v627 = vsel %vm626, %v475, -inf
      %628 = vmax.xlane.f32.xlu0 %v627
      %v629 = vpop.xlane.xlu0 %628
      %v630 = vsub.f32 %v475, %v629
      %v631 = vmul.f32 %v630, 1.442695
      %v632 = vpow.pop %v631
      %634 = vrot.lane.b32.xlu0 %v632, 124
      %v635 = vpop.permute.xlu0 %634
      %v637 = vsel %vm484, %v635, 0.0
      %638 = vadd.xlane.f32.xlu0 %v637
      %v639 = vpop.xlane.xlu0 %638
      %v640 = vrcp.pop %v639
      %v641 = vmul.f32 %v632, %v640
      %v642 = vlaneseq
      %v643 = vshrl.u32 %v642, 7
      %v644 = vsub.s32 0, %v643
      %v645 = vrot.slane %v641, %v644
      %s647 = sor.u32 256, 4
      %648 = vbcast.lane.b32.xlu0 %v645, %s647
      %v649 = vpop.permute.xlu0 %648
      %v650 = vlaneseq
      %v651 = vshrl.u32 %v650, 7
      %v652 = vsub.s32 1, %v651
      %v653 = vrot.slane %v641, %v652
      %s655 = sor.u32 256, 4
      %656 = vbcast.lane.b32.xlu0 %v653, %s655
      %v657 = vpop.permute.xlu0 %656
      %v658 = vlaneseq
      %v659 = vshrl.u32 %v658, 7
      %v660 = vsub.s32 2, %v659
      %v661 = vrot.slane %v641, %v660
      %s663 = sor.u32 256, 4
      %664 = vbcast.lane.b32.xlu0 %v661, %s663
      %v665 = vpop.permute.xlu0 %664
      %v666 = vlaneseq
      %v667 = vshrl.u32 %v666, 7
      %v668 = vsub.s32 3, %v667
      %v669 = vrot.slane %v641, %v668
      %s671 = sor.u32 256, 4
      %672 = vbcast.lane.b32.xlu0 %v669, %s671
      %v673 = vpop.permute.xlu0 %672
      %v674 = vlaneseq
      %v675 = vshrl.u32 %v674, 7
      %v676 = vsub.s32 4, %v675
      %v677 = vrot.slane %v641, %v676
      %s679 = sor.u32 256, 4
      %680 = vbcast.lane.b32.xlu0 %v677, %s679
      %v681 = vpop.permute.xlu0 %680
      %v682 = vlaneseq
      %v683 = vshrl.u32 %v682, 7
      %v684 = vsub.s32 5, %v683
      %v685 = vrot.slane %v641, %v684
      %s687 = sor.u32 256, 4
      %688 = vbcast.lane.b32.xlu0 %v685, %s687
      %v689 = vpop.permute.xlu0 %688
      %v690 = vlaneseq
      %v691 = vshrl.u32 %v690, 7
      %v692 = vsub.s32 6, %v691
      %v693 = vrot.slane %v641, %v692
      %s695 = sor.u32 256, 4
      %696 = vbcast.lane.b32.xlu0 %v693, %s695
      %v697 = vpop.permute.xlu0 %696
      %v698 = vlaneseq
      %v699 = vshrl.u32 %v698, 7
      %v700 = vsub.s32 7, %v699
      %v701 = vrot.slane %v641, %v700
      %s703 = sor.u32 256, 4
      %704 = vbcast.lane.b32.xlu0 %v701, %s703
      %v705 = vpop.permute.xlu0 %704
      %v706 = vmul.f32 %v476, %v649
      %v707 = vmul.f32 %v477, %v657
      %v708 = vmul.f32 %v478, %v665
      %v709 = vmul.f32 %v479, %v673
      %v710 = vmul.f32 %v480, %v681
      %v711 = vmul.f32 %v481, %v689
      %v712 = vmul.f32 %v482, %v697
      %v713 = vmul.f32 %v483, %v705
      %vm714 = vcmask 126016
      %v715 = vsel %vm714, %v706, 0.0
      %v716 = vrot.slane %v715, 4
      %v717 = vadd.f32 %v715, %v716
      %v718 = vrot.slane %v717, 2
      %v719 = vadd.f32 %v717, %v718
      %v720 = vrot.slane %v719, 1
      %v721 = vadd.f32 %v719, %v720
      %v722 = vsel %vm714, %v707, 0.0
      %v723 = vrot.slane %v722, 4
      %v724 = vadd.f32 %v722, %v723
      %v725 = vrot.slane %v724, 2
      %v726 = vadd.f32 %v724, %v725
      %v727 = vrot.slane %v726, 1
      %v728 = vadd.f32 %v726, %v727
      %v729 = vsel %vm714, %v708, 0.0
      %v730 = vrot.slane %v729, 4
      %v731 = vadd.f32 %v729, %v730
      %v732 = vrot.slane %v731, 2
      %v733 = vadd.f32 %v731, %v732
      %v734 = vrot.slane %v733, 1
      %v735 = vadd.f32 %v733, %v734
      %v736 = vsel %vm714, %v709, 0.0
      %v737 = vrot.slane %v736, 4
      %v738 = vadd.f32 %v736, %v737
      %v739 = vrot.slane %v738, 2
      %v740 = vadd.f32 %v738, %v739
      %v741 = vrot.slane %v740, 1
      %v742 = vadd.f32 %v740, %v741
      %v743 = vsel %vm714, %v710, 0.0
      %v744 = vrot.slane %v743, 4
      %v745 = vadd.f32 %v743, %v744
      %v746 = vrot.slane %v745, 2
      %v747 = vadd.f32 %v745, %v746
      %v748 = vrot.slane %v747, 1
      %v749 = vadd.f32 %v747, %v748
      %v750 = vsel %vm714, %v711, 0.0
      %v751 = vrot.slane %v750, 4
      %v752 = vadd.f32 %v750, %v751
      %v753 = vrot.slane %v752, 2
      %v754 = vadd.f32 %v752, %v753
      %v755 = vrot.slane %v754, 1
      %v756 = vadd.f32 %v754, %v755
      %v757 = vsel %vm714, %v712, 0.0
      %v758 = vrot.slane %v757, 4
      %v759 = vadd.f32 %v757, %v758
      %v760 = vrot.slane %v759, 2
      %v761 = vadd.f32 %v759, %v760
      %v762 = vrot.slane %v761, 1
      %v763 = vadd.f32 %v761, %v762
      %v764 = vsel %vm714, %v713, 0.0
      %v765 = vrot.slane %v764, 4
      %v766 = vadd.f32 %v764, %v765
      %v767 = vrot.slane %v766, 2
      %v768 = vadd.f32 %v766, %v767
      %v769 = vrot.slane %v768, 1
      %v770 = vadd.f32 %v768, %v769
      %v771 = vpack.c.bf16 %v721, %v721
      %v772 = vpack.c.bf16 %v728, %v728
      %v773 = vpack.c.bf16 %v735, %v735
      %v774 = vpack.c.bf16 %v742, %v742
      %v775 = vpack.c.bf16 %v749, %v749
      %v776 = vpack.c.bf16 %v756, %v756
      %v777 = vpack.c.bf16 %v763, %v763
      %v778 = vpack.c.bf16 %v770, %v770
      %v779 = vld [vmem:[%s3 + $0x4] sm:$0xf]
      %v788 = vunpack.c.l.b16 %v771
      %v789 = vunpack.c.l.b16 %v772
      %v790 = vunpack.c.l.b16 %v773
      %v791 = vunpack.c.l.b16 %v774
      %v792 = vunpack.c.l.b16 %v775
      %v793 = vunpack.c.l.b16 %v776
      %v794 = vunpack.c.l.b16 %v777
      %v795 = vunpack.c.l.b16 %v778
      %vm796 = vcmask 1041409
      %v797 = vsel %vm796, %v789, %v788
      %vm798 = vcmask 1042434
      %v799 = vsel %vm798, %v790, %v797
      %vm800 = vcmask 1043459
      %v801 = vsel %vm800, %v791, %v799
      %vm802 = vcmask 1044484
      %v803 = vsel %vm802, %v792, %v801
      %vm804 = vcmask 1045509
      %v805 = vsel %vm804, %v793, %v803
      %vm806 = vcmask 1046534
      %v807 = vsel %vm806, %v794, %v805
      %vm808 = vcmask 1047559
      %v809 = vsel %vm808, %v795, %v807
      %v810 = vpack.c.b16 %v809, %v809
      %811 = vrot.lane.b32.xlu0 %v810, 120
      %v812 = vpop.permute.xlu0 %811
      %vm813 = vcmask 64512
      %v815 = vsel %vm813, %v812, 0
      %vm817 = vcmask 1043456
      %v819 = vsel %vm817, %v779, 0
      %821 = vmatprep.subr.bf16.mxu0 0
      %822 = vmatpush1.bf16.msra.mxu0 0
      %823 = vmatprep.subr.bf16.mxu0 0
      %824 = vmatpush1.bf16.msra.mxu0 0
      %825 = vmatprep.subr.bf16.mxu0 0
      %826 = vmatpush1.bf16.msra.mxu0 0
      %827 = vmatprep.subr.bf16.mxu0 0
      %828 = vmatpush1.bf16.msra.mxu0 0
      %829 = vmatprep.subr.bf16.mxu0 0
      %830 = vmatpush1.bf16.msra.mxu0 0
      %831 = vmatprep.subr.bf16.mxu0 0
      %832 = vmatpush1.bf16.msra.mxu0 0
      %833 = vmatprep.subr.bf16.mxu0 0
      %834 = vmatpush1.bf16.msra.mxu0 0
      %835 = vmatprep.subr.bf16.mxu0 0
      %836 = vmatpush1.bf16.msra.mxu0 %v819
      %837 = vmatprep.subr.bf16.mxu0 0
      %838 = vmatpush2.bf16.msra.mxu0 0
      %839 = vmatprep.subr.bf16.mxu0 0
      %840 = vmatpush2.bf16.msra.mxu0 0
      %841 = vmatprep.subr.bf16.mxu0 0
      %842 = vmatpush2.bf16.msra.mxu0 0
      %843 = vmatprep.subr.bf16.mxu0 0
      %844 = vmatpush2.bf16.msra.mxu0 0
      %845 = vmatprep.subr.bf16.mxu0 0
      %846 = vmatpush2.bf16.msra.mxu0 0
      %847 = vmatprep.subr.bf16.mxu0 0
      %848 = vmatpush2.bf16.msra.mxu0 0
      %849 = vmatprep.subr.bf16.mxu0 0
      %850 = vmatpush2.bf16.msra.mxu0 0
      %851 = vmatprep.subr.bf16.mxu0 0
      %852 = vmatpush2.bf16.msra.mxu0 0
      %853 = vmatprep.mubr.bf16.mxu0 0
      %854 = vmatmul.mubr.bf16.gmra.mxu0 %v815
      %v855 = vpop.f32.mrf.mxu0
      %v856 = vadd.f32 0.0, %v855
      %v857 = vpop.f32.mrf.mxu0
      %v858 = vpop.f32.mrf.mxu0
      %v859 = vpop.f32.mrf.mxu0
      %860 = vdwg.mxu0
      %v869 = vunpack.c.l.b16 %v617
      %v870 = vunpack.c.l.b16 %v618
      %v871 = vunpack.c.l.b16 %v619
      %v872 = vunpack.c.l.b16 %v620
      %v873 = vunpack.c.l.b16 %v621
      %v874 = vunpack.c.l.b16 %v622
      %v875 = vunpack.c.l.b16 %v623
      %v876 = vunpack.c.l.b16 %v624
      %v877 = vsel %vm796, %v870, %v869
      %v878 = vsel %vm798, %v871, %v877
      %v879 = vsel %vm800, %v872, %v878
      %v880 = vsel %vm802, %v873, %v879
      %v881 = vsel %vm804, %v874, %v880
      %v882 = vsel %vm806, %v875, %v881
      %v883 = vsel %vm808, %v876, %v882
      %v884 = vpack.c.b16 %v883, %v883
      %v886 = vsel %vm813, %v884, 0
      %v889 = vsel %vm817, %v625, 0
      %891 = vmatprep.subr.bf16.mxu0 0
      %892 = vmatpush1.bf16.msra.mxu0 0
      %893 = vmatprep.subr.bf16.mxu0 0
      %894 = vmatpush1.bf16.msra.mxu0 0
      %895 = vmatprep.subr.bf16.mxu0 0
      %896 = vmatpush1.bf16.msra.mxu0 0
      %897 = vmatprep.subr.bf16.mxu0 0
      %898 = vmatpush1.bf16.msra.mxu0 0
      %899 = vmatprep.subr.bf16.mxu0 0
      %900 = vmatpush1.bf16.msra.mxu0 0
      %901 = vmatprep.subr.bf16.mxu0 0
      %902 = vmatpush1.bf16.msra.mxu0 0
      %903 = vmatprep.subr.bf16.mxu0 0
      %904 = vmatpush1.bf16.msra.mxu0 0
      %905 = vmatprep.subr.bf16.mxu0 0
      %906 = vmatpush1.bf16.msra.mxu0 %v889
      %907 = vmatprep.subr.bf16.mxu0 0
      %908 = vmatpush2.bf16.msra.mxu0 0
      %909 = vmatprep.subr.bf16.mxu0 0
      %910 = vmatpush2.bf16.msra.mxu0 0
      %911 = vmatprep.subr.bf16.mxu0 0
      %912 = vmatpush2.bf16.msra.mxu0 0
      %913 = vmatprep.subr.bf16.mxu0 0
      %914 = vmatpush2.bf16.msra.mxu0 0
      %915 = vmatprep.subr.bf16.mxu0 0
      %916 = vmatpush2.bf16.msra.mxu0 0
      %917 = vmatprep.subr.bf16.mxu0 0
      %918 = vmatpush2.bf16.msra.mxu0 0
      %919 = vmatprep.subr.bf16.mxu0 0
      %920 = vmatpush2.bf16.msra.mxu0 0
      %921 = vmatprep.subr.bf16.mxu0 0
      %922 = vmatpush2.bf16.msra.mxu0 0
      %923 = vmatprep.mubr.bf16.mxu0 0
      %924 = vmatmul.mubr.bf16.gmra.mxu0 %v886
      %v925 = vpop.f32.mrf.mxu0
      %v926 = vadd.f32 %v856, %v925
      %v927 = vpop.f32.mrf.mxu0
      %v928 = vpop.f32.mrf.mxu0
      %v929 = vpop.f32.mrf.mxu0
      %930 = vdwg.mxu0
      %vm931 = vcmask 97344
      %v932 = vsel %vm931, %v475, -inf
      %933 = vmax.xlane.f32.xlu0 %v932
      %v934 = vpop.xlane.xlu0 %933
      %v935 = vsub.f32 %v475, %v934
      %v936 = vmul.f32 %v935, 1.442695
      %v937 = vpow.pop %v936
      %939 = vrot.lane.b32.xlu0 %v937, 120
      %v940 = vpop.permute.xlu0 %939
      %v942 = vsel %vm484, %v940, 0.0
      %943 = vadd.xlane.f32.xlu0 %v942
      %v944 = vpop.xlane.xlu0 %943
      %v945 = vrcp.pop %v944
      %v946 = vmul.f32 %v937, %v945
      %v947 = vlaneseq
      %v948 = vshrl.u32 %v947, 7
      %v949 = vsub.s32 0, %v948
      %v950 = vrot.slane %v946, %v949
      %s952 = sor.u32 256, 8
      %953 = vbcast.lane.b32.xlu0 %v950, %s952
      %v954 = vpop.permute.xlu0 %953
      %v955 = vlaneseq
      %v956 = vshrl.u32 %v955, 7
      %v957 = vsub.s32 1, %v956
      %v958 = vrot.slane %v946, %v957
      %s960 = sor.u32 256, 8
      %961 = vbcast.lane.b32.xlu0 %v958, %s960
      %v962 = vpop.permute.xlu0 %961
      %v963 = vlaneseq
      %v964 = vshrl.u32 %v963, 7
      %v965 = vsub.s32 2, %v964
      %v966 = vrot.slane %v946, %v965
      %s968 = sor.u32 256, 8
      %969 = vbcast.lane.b32.xlu0 %v966, %s968
      %v970 = vpop.permute.xlu0 %969
      %v971 = vlaneseq
      %v972 = vshrl.u32 %v971, 7
      %v973 = vsub.s32 3, %v972
      %v974 = vrot.slane %v946, %v973
      %s976 = sor.u32 256, 8
      %977 = vbcast.lane.b32.xlu0 %v974, %s976
      %v978 = vpop.permute.xlu0 %977
      %v979 = vlaneseq
      %v980 = vshrl.u32 %v979, 7
      %v981 = vsub.s32 4, %v980
      %v982 = vrot.slane %v946, %v981
      %s984 = sor.u32 256, 8
      %985 = vbcast.lane.b32.xlu0 %v982, %s984
      %v986 = vpop.permute.xlu0 %985
      %v987 = vlaneseq
      %v988 = vshrl.u32 %v987, 7
      %v989 = vsub.s32 5, %v988
      %v990 = vrot.slane %v946, %v989
      %s992 = sor.u32 256, 8
      %993 = vbcast.lane.b32.xlu0 %v990, %s992
      %v994 = vpop.permute.xlu0 %993
      %v995 = vlaneseq
      %v996 = vshrl.u32 %v995, 7
      %v997 = vsub.s32 6, %v996
      %v998 = vrot.slane %v946, %v997
      %s1000 = sor.u32 256, 8
      %1001 = vbcast.lane.b32.xlu0 %v998, %s1000
      %v1002 = vpop.permute.xlu0 %1001
      %v1003 = vlaneseq
      %v1004 = vshrl.u32 %v1003, 7
      %v1005 = vsub.s32 7, %v1004
      %v1006 = vrot.slane %v946, %v1005
      %s1008 = sor.u32 256, 8
      %1009 = vbcast.lane.b32.xlu0 %v1006, %s1008
      %v1010 = vpop.permute.xlu0 %1009
      %v1011 = vmul.f32 %v476, %v954
      %v1012 = vmul.f32 %v477, %v962
      %v1013 = vmul.f32 %v478, %v970
      %v1014 = vmul.f32 %v479, %v978
      %v1015 = vmul.f32 %v480, %v986
      %v1016 = vmul.f32 %v481, %v994
      %v1017 = vmul.f32 %v482, %v1002
      %v1018 = vmul.f32 %v483, %v1010
      %vm1019 = vcmask 191616
      %v1020 = vsel %vm1019, %v1011, 0.0
      %v1021 = vrot.slane %v1020, 4
      %v1022 = vadd.f32 %v1020, %v1021
      %v1023 = vrot.slane %v1022, 2
      %v1024 = vadd.f32 %v1022, %v1023
      %v1025 = vrot.slane %v1024, 1
      %v1026 = vadd.f32 %v1024, %v1025
      %v1027 = vsel %vm1019, %v1012, 0.0
      %v1028 = vrot.slane %v1027, 4
      %v1029 = vadd.f32 %v1027, %v1028
      %v1030 = vrot.slane %v1029, 2
      %v1031 = vadd.f32 %v1029, %v1030
      %v1032 = vrot.slane %v1031, 1
      %v1033 = vadd.f32 %v1031, %v1032
      %v1034 = vsel %vm1019, %v1013, 0.0
      %v1035 = vrot.slane %v1034, 4
      %v1036 = vadd.f32 %v1034, %v1035
      %v1037 = vrot.slane %v1036, 2
      %v1038 = vadd.f32 %v1036, %v1037
      %v1039 = vrot.slane %v1038, 1
      %v1040 = vadd.f32 %v1038, %v1039
      %v1041 = vsel %vm1019, %v1014, 0.0
      %v1042 = vrot.slane %v1041, 4
      %v1043 = vadd.f32 %v1041, %v1042
      %v1044 = vrot.slane %v1043, 2
      %v1045 = vadd.f32 %v1043, %v1044
      %v1046 = vrot.slane %v1045, 1
      %v1047 = vadd.f32 %v1045, %v1046
      %v1048 = vsel %vm1019, %v1015, 0.0
      %v1049 = vrot.slane %v1048, 4
      %v1050 = vadd.f32 %v1048, %v1049
      %v1051 = vrot.slane %v1050, 2
      %v1052 = vadd.f32 %v1050, %v1051
      %v1053 = vrot.slane %v1052, 1
      %v1054 = vadd.f32 %v1052, %v1053
      %v1055 = vsel %vm1019, %v1016, 0.0
      %v1056 = vrot.slane %v1055, 4
      %v1057 = vadd.f32 %v1055, %v1056
      %v1058 = vrot.slane %v1057, 2
      %v1059 = vadd.f32 %v1057, %v1058
      %v1060 = vrot.slane %v1059, 1
      %v1061 = vadd.f32 %v1059, %v1060
      %v1062 = vsel %vm1019, %v1017, 0.0
      %v1063 = vrot.slane %v1062, 4
      %v1064 = vadd.f32 %v1062, %v1063
      %v1065 = vrot.slane %v1064, 2
      %v1066 = vadd.f32 %v1064, %v1065
      %v1067 = vrot.slane %v1066, 1
      %v1068 = vadd.f32 %v1066, %v1067
      %v1069 = vsel %vm1019, %v1018, 0.0
      %v1070 = vrot.slane %v1069, 4
      %v1071 = vadd.f32 %v1069, %v1070
      %v1072 = vrot.slane %v1071, 2
      %v1073 = vadd.f32 %v1071, %v1072
      %v1074 = vrot.slane %v1073, 1
      %v1075 = vadd.f32 %v1073, %v1074
      %v1076 = vpack.c.bf16 %v1026, %v1026
      %v1077 = vpack.c.bf16 %v1033, %v1033
      %v1078 = vpack.c.bf16 %v1040, %v1040
      %v1079 = vpack.c.bf16 %v1047, %v1047
      %v1080 = vpack.c.bf16 %v1054, %v1054
      %v1081 = vpack.c.bf16 %v1061, %v1061
      %v1082 = vpack.c.bf16 %v1068, %v1068
      %v1083 = vpack.c.bf16 %v1075, %v1075
      %v1084 = vld [vmem:[%s3 + $0x8] sm:$0xf]
      %v1093 = vunpack.c.l.b16 %v1076
      %v1094 = vunpack.c.l.b16 %v1077
      %v1095 = vunpack.c.l.b16 %v1078
      %v1096 = vunpack.c.l.b16 %v1079
      %v1097 = vunpack.c.l.b16 %v1080
      %v1098 = vunpack.c.l.b16 %v1081
      %v1099 = vunpack.c.l.b16 %v1082
      %v1100 = vunpack.c.l.b16 %v1083
      %v1101 = vsel %vm796, %v1094, %v1093
      %v1102 = vsel %vm798, %v1095, %v1101
      %v1103 = vsel %vm800, %v1096, %v1102
      %v1104 = vsel %vm802, %v1097, %v1103
      %v1105 = vsel %vm804, %v1098, %v1104
      %v1106 = vsel %vm806, %v1099, %v1105
      %v1107 = vsel %vm808, %v1100, %v1106
      %v1108 = vpack.c.b16 %v1107, %v1107
      %1109 = vrot.lane.b32.xlu0 %v1108, 112
      %v1110 = vpop.permute.xlu0 %1109
      %v1112 = vsel %vm813, %v1110, 0
      %v1115 = vsel %vm817, %v1084, 0
      %1117 = vmatprep.subr.bf16.mxu0 0
      %1118 = vmatpush1.bf16.msra.mxu0 0
      %1119 = vmatprep.subr.bf16.mxu0 0
      %1120 = vmatpush1.bf16.msra.mxu0 0
      %1121 = vmatprep.subr.bf16.mxu0 0
      %1122 = vmatpush1.bf16.msra.mxu0 0
      %1123 = vmatprep.subr.bf16.mxu0 0
      %1124 = vmatpush1.bf16.msra.mxu0 0
      %1125 = vmatprep.subr.bf16.mxu0 0
      %1126 = vmatpush1.bf16.msra.mxu0 0
      %1127 = vmatprep.subr.bf16.mxu0 0
      %1128 = vmatpush1.bf16.msra.mxu0 0
      %1129 = vmatprep.subr.bf16.mxu0 0
      %1130 = vmatpush1.bf16.msra.mxu0 0
      %1131 = vmatprep.subr.bf16.mxu0 0
      %1132 = vmatpush1.bf16.msra.mxu0 %v1115
      %1133 = vmatprep.subr.bf16.mxu0 0
      %1134 = vmatpush2.bf16.msra.mxu0 0
      %1135 = vmatprep.subr.bf16.mxu0 0
      %1136 = vmatpush2.bf16.msra.mxu0 0
      %1137 = vmatprep.subr.bf16.mxu0 0
      %1138 = vmatpush2.bf16.msra.mxu0 0
      %1139 = vmatprep.subr.bf16.mxu0 0
      %1140 = vmatpush2.bf16.msra.mxu0 0
      %1141 = vmatprep.subr.bf16.mxu0 0
      %1142 = vmatpush2.bf16.msra.mxu0 0
      %1143 = vmatprep.subr.bf16.mxu0 0
      %1144 = vmatpush2.bf16.msra.mxu0 0
      %1145 = vmatprep.subr.bf16.mxu0 0
      %1146 = vmatpush2.bf16.msra.mxu0 0
      %1147 = vmatprep.subr.bf16.mxu0 0
      %1148 = vmatpush2.bf16.msra.mxu0 0
      %1149 = vmatprep.mubr.bf16.mxu0 0
      %1150 = vmatmul.mubr.bf16.gmra.mxu0 %v1112
      %v1151 = vpop.f32.mrf.mxu0
      %v1152 = vadd.f32 0.0, %v1151
      %v1153 = vpop.f32.mrf.mxu0
      %v1154 = vpop.f32.mrf.mxu0
      %v1155 = vpop.f32.mrf.mxu0
      %1156 = vdwg.mxu0
      %v1157 = vadd.f32 %v926, %v1152
      %vm1158 = vcmask 130144
      %v1159 = vsel %vm1158, %v475, -inf
      %1160 = vmax.xlane.f32.xlu0 %v1159
      %v1161 = vpop.xlane.xlu0 %1160
      %v1162 = vsub.f32 %v475, %v1161
      %v1163 = vmul.f32 %v1162, 1.442695
      %v1164 = vpow.pop %v1163
      %1166 = vrot.lane.b32.xlu0 %v1164, 116
      %v1167 = vpop.permute.xlu0 %1166
      %v1169 = vsel %vm484, %v1167, 0.0
      %1170 = vadd.xlane.f32.xlu0 %v1169
      %v1171 = vpop.xlane.xlu0 %1170
      %v1172 = vrcp.pop %v1171
      %v1173 = vmul.f32 %v1164, %v1172
      %v1174 = vlaneseq
      %v1175 = vshrl.u32 %v1174, 7
      %v1176 = vsub.s32 0, %v1175
      %v1177 = vrot.slane %v1173, %v1176
      %s1179 = sor.u32 256, 12
      %1180 = vbcast.lane.b32.xlu0 %v1177, %s1179
      %v1181 = vpop.permute.xlu0 %1180
      %v1182 = vlaneseq
      %v1183 = vshrl.u32 %v1182, 7
      %v1184 = vsub.s32 1, %v1183
      %v1185 = vrot.slane %v1173, %v1184
      %s1187 = sor.u32 256, 12
      %1188 = vbcast.lane.b32.xlu0 %v1185, %s1187
      %v1189 = vpop.permute.xlu0 %1188
      %v1190 = vlaneseq
      %v1191 = vshrl.u32 %v1190, 7
      %v1192 = vsub.s32 2, %v1191
      %v1193 = vrot.slane %v1173, %v1192
      %s1195 = sor.u32 256, 12
      %1196 = vbcast.lane.b32.xlu0 %v1193, %s1195
      %v1197 = vpop.permute.xlu0 %1196
      %v1198 = vlaneseq
      %v1199 = vshrl.u32 %v1198, 7
      %v1200 = vsub.s32 3, %v1199
      %v1201 = vrot.slane %v1173, %v1200
      %s1203 = sor.u32 256, 12
      %1204 = vbcast.lane.b32.xlu0 %v1201, %s1203
      %v1205 = vpop.permute.xlu0 %1204
      %v1206 = vlaneseq
      %v1207 = vshrl.u32 %v1206, 7
      %v1208 = vsub.s32 4, %v1207
      %v1209 = vrot.slane %v1173, %v1208
      %s1211 = sor.u32 256, 12
      %1212 = vbcast.lane.b32.xlu0 %v1209, %s1211
      %v1213 = vpop.permute.xlu0 %1212
      %v1214 = vlaneseq
      %v1215 = vshrl.u32 %v1214, 7
      %v1216 = vsub.s32 5, %v1215
      %v1217 = vrot.slane %v1173, %v1216
      %s1219 = sor.u32 256, 12
      %1220 = vbcast.lane.b32.xlu0 %v1217, %s1219
      %v1221 = vpop.permute.xlu0 %1220
      %v1222 = vlaneseq
      %v1223 = vshrl.u32 %v1222, 7
      %v1224 = vsub.s32 6, %v1223
      %v1225 = vrot.slane %v1173, %v1224
      %s1227 = sor.u32 256, 12
      %1228 = vbcast.lane.b32.xlu0 %v1225, %s1227
      %v1229 = vpop.permute.xlu0 %1228
      %v1230 = vlaneseq
      %v1231 = vshrl.u32 %v1230, 7
      %v1232 = vsub.s32 7, %v1231
      %v1233 = vrot.slane %v1173, %v1232
      %s1235 = sor.u32 256, 12
      %1236 = vbcast.lane.b32.xlu0 %v1233, %s1235
      %v1237 = vpop.permute.xlu0 %1236
      %v1238 = vmul.f32 %v476, %v1181
      %v1239 = vmul.f32 %v477, %v1189
      %v1240 = vmul.f32 %v478, %v1197
      %v1241 = vmul.f32 %v479, %v1205
      %v1242 = vmul.f32 %v480, %v1213
      %v1243 = vmul.f32 %v481, %v1221
      %v1244 = vmul.f32 %v482, %v1229
      %v1245 = vmul.f32 %v483, %v1237
      %vm1246 = vcmask 257216
      %v1247 = vsel %vm1246, %v1238, 0.0
      %v1248 = vrot.slane %v1247, 4
      %v1249 = vadd.f32 %v1247, %v1248
      %v1250 = vrot.slane %v1249, 2
      %v1251 = vadd.f32 %v1249, %v1250
      %v1252 = vrot.slane %v1251, 1
      %v1253 = vadd.f32 %v1251, %v1252
      %v1254 = vsel %vm1246, %v1239, 0.0
      %v1255 = vrot.slane %v1254, 4
      %v1256 = vadd.f32 %v1254, %v1255
      %v1257 = vrot.slane %v1256, 2
      %v1258 = vadd.f32 %v1256, %v1257
      %v1259 = vrot.slane %v1258, 1
      %v1260 = vadd.f32 %v1258, %v1259
      %v1261 = vsel %vm1246, %v1240, 0.0
      %v1262 = vrot.slane %v1261, 4
      %v1263 = vadd.f32 %v1261, %v1262
      %v1264 = vrot.slane %v1263, 2
      %v1265 = vadd.f32 %v1263, %v1264
      %v1266 = vrot.slane %v1265, 1
      %v1267 = vadd.f32 %v1265, %v1266
      %v1268 = vsel %vm1246, %v1241, 0.0
      %v1269 = vrot.slane %v1268, 4
      %v1270 = vadd.f32 %v1268, %v1269
      %v1271 = vrot.slane %v1270, 2
      %v1272 = vadd.f32 %v1270, %v1271
      %v1273 = vrot.slane %v1272, 1
      %v1274 = vadd.f32 %v1272, %v1273
      %v1275 = vsel %vm1246, %v1242, 0.0
      %v1276 = vrot.slane %v1275, 4
      %v1277 = vadd.f32 %v1275, %v1276
      %v1278 = vrot.slane %v1277, 2
      %v1279 = vadd.f32 %v1277, %v1278
      %v1280 = vrot.slane %v1279, 1
      %v1281 = vadd.f32 %v1279, %v1280
      %v1282 = vsel %vm1246, %v1243, 0.0
      %v1283 = vrot.slane %v1282, 4
      %v1284 = vadd.f32 %v1282, %v1283
      %v1285 = vrot.slane %v1284, 2
      %v1286 = vadd.f32 %v1284, %v1285
      %v1287 = vrot.slane %v1286, 1
      %v1288 = vadd.f32 %v1286, %v1287
      %v1289 = vsel %vm1246, %v1244, 0.0
      %v1290 = vrot.slane %v1289, 4
      %v1291 = vadd.f32 %v1289, %v1290
      %v1292 = vrot.slane %v1291, 2
      %v1293 = vadd.f32 %v1291, %v1292
      %v1294 = vrot.slane %v1293, 1
      %v1295 = vadd.f32 %v1293, %v1294
      %v1296 = vsel %vm1246, %v1245, 0.0
      %v1297 = vrot.slane %v1296, 4
      %v1298 = vadd.f32 %v1296, %v1297
      %v1299 = vrot.slane %v1298, 2
      %v1300 = vadd.f32 %v1298, %v1299
      %v1301 = vrot.slane %v1300, 1
      %v1302 = vadd.f32 %v1300, %v1301
      %v1303 = vpack.c.bf16 %v1253, %v1253
      %v1304 = vpack.c.bf16 %v1260, %v1260
      %v1305 = vpack.c.bf16 %v1267, %v1267
      %v1306 = vpack.c.bf16 %v1274, %v1274
      %v1307 = vpack.c.bf16 %v1281, %v1281
      %v1308 = vpack.c.bf16 %v1288, %v1288
      %v1309 = vpack.c.bf16 %v1295, %v1295
      %v1310 = vpack.c.bf16 %v1302, %v1302
      %v1311 = vld [vmem:[%s3 + $0xc] sm:$0xf]
      %v1320 = vunpack.c.l.b16 %v1303
      %v1321 = vunpack.c.l.b16 %v1304
      %v1322 = vunpack.c.l.b16 %v1305
      %v1323 = vunpack.c.l.b16 %v1306
      %v1324 = vunpack.c.l.b16 %v1307
      %v1325 = vunpack.c.l.b16 %v1308
      %v1326 = vunpack.c.l.b16 %v1309
      %v1327 = vunpack.c.l.b16 %v1310
      %v1328 = vsel %vm796, %v1321, %v1320
      %v1329 = vsel %vm798, %v1322, %v1328
      %v1330 = vsel %vm800, %v1323, %v1329
      %v1331 = vsel %vm802, %v1324, %v1330
      %v1332 = vsel %vm804, %v1325, %v1331
      %v1333 = vsel %vm806, %v1326, %v1332
      %v1334 = vsel %vm808, %v1327, %v1333
      %v1335 = vpack.c.b16 %v1334, %v1334
      %1336 = vrot.lane.b32.xlu0 %v1335, 104
      %v1337 = vpop.permute.xlu0 %1336
      %v1339 = vsel %vm813, %v1337, 0
      %v1342 = vsel %vm817, %v1311, 0
      %1344 = vmatprep.subr.bf16.mxu0 0
      %1345 = vmatpush1.bf16.msra.mxu0 0
      %1346 = vmatprep.subr.bf16.mxu0 0
      %1347 = vmatpush1.bf16.msra.mxu0 0
      %1348 = vmatprep.subr.bf16.mxu0 0
      %1349 = vmatpush1.bf16.msra.mxu0 0
      %1350 = vmatprep.subr.bf16.mxu0 0
      %1351 = vmatpush1.bf16.msra.mxu0 0
      %1352 = vmatprep.subr.bf16.mxu0 0
      %1353 = vmatpush1.bf16.msra.mxu0 0
      %1354 = vmatprep.subr.bf16.mxu0 0
      %1355 = vmatpush1.bf16.msra.mxu0 0
      %1356 = vmatprep.subr.bf16.mxu0 0
      %1357 = vmatpush1.bf16.msra.mxu0 0
      %1358 = vmatprep.subr.bf16.mxu0 0
      %1359 = vmatpush1.bf16.msra.mxu0 %v1342
      %1360 = vmatprep.subr.bf16.mxu0 0
      %1361 = vmatpush2.bf16.msra.mxu0 0
      %1362 = vmatprep.subr.bf16.mxu0 0
      %1363 = vmatpush2.bf16.msra.mxu0 0
      %1364 = vmatprep.subr.bf16.mxu0 0
      %1365 = vmatpush2.bf16.msra.mxu0 0
      %1366 = vmatprep.subr.bf16.mxu0 0
      %1367 = vmatpush2.bf16.msra.mxu0 0
      %1368 = vmatprep.subr.bf16.mxu0 0
      %1369 = vmatpush2.bf16.msra.mxu0 0
      %1370 = vmatprep.subr.bf16.mxu0 0
      %1371 = vmatpush2.bf16.msra.mxu0 0
      %1372 = vmatprep.subr.bf16.mxu0 0
      %1373 = vmatpush2.bf16.msra.mxu0 0
      %1374 = vmatprep.subr.bf16.mxu0 0
      %1375 = vmatpush2.bf16.msra.mxu0 0
      %1376 = vmatprep.mubr.bf16.mxu0 0
      %1377 = vmatmul.mubr.bf16.gmra.mxu0 %v1339
      %v1378 = vpop.f32.mrf.mxu0
      %v1379 = vadd.f32 0.0, %v1378
      %v1380 = vpop.f32.mrf.mxu0
      %v1381 = vpop.f32.mrf.mxu0
      %v1382 = vpop.f32.mrf.mxu0
      %1383 = vdwg.mxu0
      %v1384 = vadd.f32 %v1157, %v1379
      %v1385 = vld [vmem:[%s4] sm:$0x1]
      %v1387 = vlaneseq
      %v1388 = vshrl.u32 %v1387, 7
      %v1389 = vsub.s32 0, %v1388
      %v1390 = vrot.slane %v1385, %v1389
      %v1392 = vadd.f32 %v1384, %v1390
      %v1393 = vadd.f32 %v474, %v1392
      %v1394 = vld [vmem:[%s5] sm:$0x1]
      %v1395 = vld [vmem:[%s6] sm:$0x1]
      %vm1396 = vcmask 261120
      %v1397 = vsel %vm1396, %v1393, 0.0
      %1398 = vadd.xlane.f32.xlu0 %v1397
      %v1399 = vpop.xlane.xlu0 %1398
      %v1400 = vrcp.pop 32.0
      %v1401 = vmul.f32 %v1399, %v1400
      %v1402 = vsub.f32 %v1393, %v1401
      %v1403 = vmul.f32 %v1402, %v1402
      %v1404 = vsel %vm1396, %v1403, 0.0
      %1405 = vadd.xlane.f32.xlu0 %v1404
      %v1406 = vpop.xlane.xlu0 %1405
      %v1407 = vmul.f32 %v1406, %v1400
      %v1408 = vadd.f32 %v1407, 1e-05
      %v1409 = vrsqrt.pop %v1408
      %v1410 = vmul.f32 %v1402, %v1409
      %v1412 = vlaneseq
      %v1413 = vshrl.u32 %v1412, 7
      %v1414 = vsub.s32 0, %v1413
      %v1415 = vrot.slane %v1394, %v1414
      %v1417 = vmul.f32 %v1410, %v1415
      %v1419 = vlaneseq
      %v1420 = vshrl.u32 %v1419, 7
      %v1421 = vsub.s32 0, %v1420
      %v1422 = vrot.slane %v1395, %v1421
      %v1424 = vadd.f32 %v1417, %v1422
      %v1425 = vpack.c.bf16 %v1424, %v1424
      %v1426 = vld [vmem:[%s7] sm:$0xf]
      %v1427 = vld [vmem:[%s7 + $0x4] sm:$0xf]
      %v1428 = vld [vmem:[%s7 + $0x8] sm:$0xf]
      %v1429 = vld [vmem:[%s7 + $0xc] sm:$0xf]
      %v1430 = vld [vmem:[%s8] sm:$0x1]
      %v1432 = vlaneseq
      %v1433 = vshrl.u32 %v1432, 7
      %v1434 = vsub.s32 0, %v1433
      %v1435 = vrot.slane %v1430, %v1434
      %v1441 = vunpack.c.l.b16 %v1426
      %v1442 = vunpack.c.l.b16 %v1427
      %v1443 = vunpack.c.l.b16 %v1428
      %v1444 = vunpack.c.l.b16 %v1429
      %v1445 = vpack.c.b16 %v1442, %v1441
      %v1446 = vpack.c.b16 %v1444, %v1443
      %v1450 = vsel %vm1396, %v1425, 0
      %1452 = vmatprep.subr.bf16.mxu0 0
      %1453 = vmatpush1.bf16.msra.mxu0 0
      %1454 = vmatprep.subr.bf16.mxu0 0
      %1455 = vmatpush1.bf16.msra.mxu0 0
      %1456 = vmatprep.subr.bf16.mxu0 0
      %1457 = vmatpush1.bf16.msra.mxu0 0
      %1458 = vmatprep.subr.bf16.mxu0 0
      %1459 = vmatpush1.bf16.msra.mxu0 0
      %1460 = vmatprep.subr.bf16.mxu0 0
      %1461 = vmatpush1.bf16.msra.mxu0 0
      %1462 = vmatprep.subr.bf16.mxu0 0
      %1463 = vmatpush1.bf16.msra.mxu0 0
      %1464 = vmatprep.subr.bf16.mxu0 0
      %1465 = vmatpush1.bf16.msra.mxu0 %v1446
      %1466 = vmatprep.subr.bf16.mxu0 0
      %1467 = vmatpush1.bf16.msra.mxu0 %v1445
      %1468 = vmatprep.subr.bf16.mxu0 0
      %1469 = vmatpush2.bf16.msra.mxu0 0
      %1470 = vmatprep.subr.bf16.mxu0 0
      %1471 = vmatpush2.bf16.msra.mxu0 0
      %1472 = vmatprep.subr.bf16.mxu0 0
      %1473 = vmatpush2.bf16.msra.mxu0 0
      %1474 = vmatprep.subr.bf16.mxu0 0
      %1475 = vmatpush2.bf16.msra.mxu0 0
      %1476 = vmatprep.subr.bf16.mxu0 0
      %1477 = vmatpush2.bf16.msra.mxu0 0
      %1478 = vmatprep.subr.bf16.mxu0 0
      %1479 = vmatpush2.bf16.msra.mxu0 0
      %1480 = vmatprep.subr.bf16.mxu0 0
      %1481 = vmatpush2.bf16.msra.mxu0 0
      %1482 = vmatprep.subr.bf16.mxu0 0
      %1483 = vmatpush2.bf16.msra.mxu0 0
      %1484 = vmatprep.mubr.bf16.mxu0 0
      %1485 = vmatmul.mubr.bf16.gmra.mxu0 %v1450
      %v1486 = vpop.f32.mrf.mxu0
      %v1487 = vadd.f32 %v1435, %v1486
      %v1488 = vpop.f32.mrf.mxu0
      %v1489 = vpop.f32.mrf.mxu0
      %v1490 = vpop.f32.mrf.mxu0
      %1491 = vdwg.mxu0
      %v1492 = vmax.f32 %v1487, 0.0
      %v1493 = vpack.c.bf16 %v1492, %v1492
      %v1494 = vld [vmem:[%s9] sm:$0xf]
      %v1495 = vld [vmem:[%s9 + $0x4] sm:$0xf]
      %v1496 = vld [vmem:[%s9 + $0x8] sm:$0xf]
      %v1497 = vld [vmem:[%s9 + $0xc] sm:$0xf]
      %v1498 = vld [vmem:[%s9 + $0x10] sm:$0xf]
      %v1499 = vld [vmem:[%s9 + $0x14] sm:$0xf]
      %v1500 = vld [vmem:[%s9 + $0x18] sm:$0xf]
      %v1501 = vld [vmem:[%s9 + $0x1c] sm:$0xf]
      %v1502 = vld [vmem:[%s10] sm:$0x1]
      %v1504 = vlaneseq
      %v1505 = vshrl.u32 %v1504, 7
      %v1506 = vsub.s32 0, %v1505
      %v1507 = vrot.slane %v1502, %v1506
      %v1517 = vunpack.c.l.b16 %v1494
      %v1518 = vunpack.c.l.b16 %v1495
      %v1519 = vunpack.c.l.b16 %v1496
      %v1520 = vunpack.c.l.b16 %v1497
      %v1521 = vunpack.c.l.b16 %v1498
      %v1522 = vunpack.c.l.b16 %v1499
      %v1523 = vunpack.c.l.b16 %v1500
      %v1524 = vunpack.c.l.b16 %v1501
      %v1525 = vpack.c.b16 %v1518, %v1517
      %v1526 = vpack.c.b16 %v1520, %v1519
      %v1527 = vpack.c.b16 %v1522, %v1521
      %v1528 = vpack.c.b16 %v1524, %v1523
      %vm1533 = vcmask 523264
      %v1535 = vsel %vm1533, %v1493, 0
      %1537 = vmatprep.subr.bf16.mxu0 0
      %1538 = vmatpush1.bf16.msra.mxu0 0
      %1539 = vmatprep.subr.bf16.mxu0 0
      %1540 = vmatpush1.bf16.msra.mxu0 0
      %1541 = vmatprep.subr.bf16.mxu0 0
      %1542 = vmatpush1.bf16.msra.mxu0 0
      %1543 = vmatprep.subr.bf16.mxu0 0
      %1544 = vmatpush1.bf16.msra.mxu0 0
      %1545 = vmatprep.subr.bf16.mxu0 0
      %1546 = vmatpush1.bf16.msra.mxu0 %v1528
      %1547 = vmatprep.subr.bf16.mxu0 0
      %1548 = vmatpush1.bf16.msra.mxu0 %v1527
      %1549 = vmatprep.subr.bf16.mxu0 0
      %1550 = vmatpush1.bf16.msra.mxu0 %v1526
      %1551 = vmatprep.subr.bf16.mxu0 0
      %1552 = vmatpush1.bf16.msra.mxu0 %v1525
      %1553 = vmatprep.subr.bf16.mxu0 0
      %1554 = vmatpush2.bf16.msra.mxu0 0
      %1555 = vmatprep.subr.bf16.mxu0 0
      %1556 = vmatpush2.bf16.msra.mxu0 0
      %1557 = vmatprep.subr.bf16.mxu0 0
      %1558 = vmatpush2.bf16.msra.mxu0 0
      %1559 = vmatprep.subr.bf16.mxu0 0
      %1560 = vmatpush2.bf16.msra.mxu0 0
      %1561 = vmatprep.subr.bf16.mxu0 0
      %1562 = vmatpush2.bf16.msra.mxu0 0
      %1563 = vmatprep.subr.bf16.mxu0 0
      %1564 = vmatpush2.bf16.msra.mxu0 0
      %1565 = vmatprep.subr.bf16.mxu0 0
      %1566 = vmatpush2.bf16.msra.mxu0 0
      %1567 = vmatprep.subr.bf16.mxu0 0
      %1568 = vmatpush2.bf16.msra.mxu0 0
      %1569 = vmatprep.mubr.bf16.mxu0 0
      %1570 = vmatmul.mubr.bf16.gmra.mxu0 %v1535
      %v1571 = vpop.f32.mrf.mxu0
      %v1572 = vadd.f32 %v1507, %v1571
      %v1573 = vpop.f32.mrf.mxu0
      %v1574 = vpop.f32.mrf.mxu0
      %v1575 = vpop.f32.mrf.mxu0
      %1576 = vdwg.mxu0
      %v1577 = vadd.f32 %v1424, %v1572
      %v1578 = vld [vmem:[%s11] sm:$0x1]
      %v1579 = vld [vmem:[%s12] sm:$0x1]
      %v1580 = vsel %vm1396, %v1577, 0.0
      %1581 = vadd.xlane.f32.xlu0 %v1580
      %v1582 = vpop.xlane.xlu0 %1581
      %v1583 = vmul.f32 %v1582, %v1400
      %v1584 = vsub.f32 %v1577, %v1583
      %v1585 = vmul.f32 %v1584, %v1584
      %v1586 = vsel %vm1396, %v1585, 0.0
      %1587 = vadd.xlane.f32.xlu0 %v1586
      %v1588 = vpop.xlane.xlu0 %1587
      %v1589 = vmul.f32 %v1588, %v1400
      %v1590 = vadd.f32 %v1589, 1e-05
      %v1591 = vrsqrt.pop %v1590
      %v1592 = vmul.f32 %v1584, %v1591
      %v1594 = vlaneseq
      %v1595 = vshrl.u32 %v1594, 7
      %v1596 = vsub.s32 0, %v1595
      %v1597 = vrot.slane %v1578, %v1596
      %v1599 = vmul.f32 %v1592, %v1597
      %v1601 = vlaneseq
      %v1602 = vshrl.u32 %v1601, 7
      %v1603 = vsub.s32 0, %v1602
      %v1604 = vrot.slane %v1579, %v1603
      %v1606 = vadd.f32 %v1599, %v1604
      %1607 = vst.msk [vmem:[%s472] sm:$0xff] %vm1396, %v1606
      %p1608 = scmp.lt.s32.totalorder %s24, 1
      %s1609 = scalar_select %p1608, %s24, 1
      %s1610 = smul.addr %s1609, 8
      %s1611 = scalar_lea.vmem %s13, %s1610
      // Predicated region
      $region73: #{decoder_layer_forward.3} parent=71 // pred_check
        %p1612 = pneg %p330
      $region74: #{decoder_layer_forward.3} parent=71 // pred_check_branch
        %1614 = sbr.rel (%p1612) target = $region76
      $region75: #{decoder_layer_forward.3} parent=71 // pred_region
        _
      $region76: #{decoder_layer_forward.3} parent=71 // pred_fallthru
        _
    $region72: #{decoder_layer_forward.3} parent=5 // pred_fallthru
      _
    %p1615 = scmp.le.s32.totalorder 2, %s19
    // Predicated region
    $region77: #{decoder_layer_forward.3} parent=5 // pred_check
      %p1616 = pneg %p1615
    $region78: #{decoder_layer_forward.3} parent=5 // pred_check_branch
      %1618 = sbr.rel (%p1616) target = $region80
    $region79: #{decoder_layer_forward.3} parent=5 // pred_region
      %s1619 = ssub.s32 %s19, 2
      // Predicated region
      $region81: #{decoder_layer_forward.3} parent=79 // pred_check
        %p1620 = pneg %p336
      $region82: #{decoder_layer_forward.3} parent=79 // pred_check_branch
        %1622 = sbr.rel (%p1620) target = $region84
      $region83: #{decoder_layer_forward.3} parent=79 // pred_region
        %p1623 = scmp.lt.s32.totalorder %s25, 1
        %s1624 = scalar_select %p1623, %s25, 1
        %s1625 = smul.addr %s1624, 8
        %s1626 = scalar_lea.vmem %s13, %s1625
      $region84: #{decoder_layer_forward.3} parent=79 // pred_fallthru
        _
    $region80: #{decoder_layer_forward.3} parent=5 // pred_fallthru
      _
  $region6: #{decoder_layer_forward.3} parent=0 // loop_footer
    %s23 = sadd.s32 1, %s19
  $region7: #{decoder_layer_forward.3} parent=0 // loop_footer_branch
    %18 = sbr.rel target = $region3
  $region8: #{decoder_layer_forward.3} parent=0 // loop_exit
    _

</llo_original>
